<compile_context>
chip_gen: v5e
topology: v5e:2x2
jax: 0.10.0
libtpu: 0.0.40
codegen_flags: <defaults>
</compile_context>

<pallas_src>
import math

import jax
import jax.numpy as jnp
from jax import lax
from jax.experimental import pallas as pl
from jax.experimental.pallas import tpu as pltpu

_CONV_K = 5

# Matmul operand dtype. f32 keeps exact eval-mode semantics; on v6e/v7x the MXU
# is bf16-native, so setting this to jnp.bfloat16 gives ~2x matmul throughput
# (accumulation stays f32; softmax / layernorm math is always f32).
_MM_DTYPE = jnp.float32


# ----------------------------------------------------------------------------
# Fused kernel
# ----------------------------------------------------------------------------

def _make_fused_kernel(d_model, n_heads, n_layers, q_factor):
    hd = d_model // n_heads
    scale = 1.0 / math.sqrt(hd)

    def mm(a, b):
        return jnp.dot(a.astype(_MM_DTYPE), b.astype(_MM_DTYPE),
                       preferred_element_type=jnp.float32)

    def gather_mat(t_out, t_in, stride, off, clip):
        # 0/1 matrix G with G[t, j] = 1 iff j == (clip of) stride*t + off.
        rows = lax.broadcasted_iota(jnp.int32, (t_out, t_in), 0)
        cols = lax.broadcasted_iota(jnp.int32, (t_out, t_in), 1)
        src = rows * stride + off
        if clip:
            src = jnp.clip(src, 0, t_in - 1)
        return (cols == src).astype(jnp.float32)

    def conv_lrelu_bn(x, tap_w, cbs, stride):
        # Conv1d(k=5, padding=2, padding_mode='replicate') as 5 accumulated
        # matmuls over replicate-shifted rows; the shift (and the stride-2
        # downsample of stage 0) is a 0/1 gather matmul -> stays on the MXU,
        # no strided slices / concats inside the kernel.
        t_in = x.shape[0]
        t_out = t_in // stride
        acc = None
        for k in range(_CONV_K):
            off = k - 2
            if stride == 1 and off == 0:
                xk = x
            else:
                xk = mm(gather_mat(t_out, t_in, stride, off, True), x)
            part = mm(xk, tap_w(k))
            acc = part if acc is None else acc + part
        y = acc + cbs[0:1, :]                      # conv bias
        y = jnp.maximum(y, 0.2 * y)                # LeakyReLU(0.2)
        return y * cbs[1:2, :] + cbs[2:3, :]       # BatchNorm1d (eval, pre-folded)

    def maxpool2(y):
        t_in = y.shape[0]
        even = mm(gather_mat(t_in // 2, t_in, 2, 0, False), y)
        odd = mm(gather_mat(t_in // 2, t_in, 2, 1, False), y)
        return jnp.maximum(even, odd)

    def layer_norm(v, g, b):
        mu = jnp.mean(v, axis=-1, keepdims=True)
        var = jnp.mean(jnp.square(v - mu), axis=-1, keepdims=True)
        return (v - mu) * lax.rsqrt(var + 1e-5) * g + b

    def kernel(x_ref, wc0_ref, wcr_ref, cb_ref, we_ref, be_ref,
               wqkv_ref, bqkv_ref, wo_ref, bo_ref, ln1g_ref, ln1b_ref,
               w1_ref, b1_ref, w2_ref, b2_ref, ln2g_ref, ln2b_ref,
               o_ref, qh_ref, kh_ref, vh_ref, attn_ref):
        d = d_model
        h = x_ref[...]                                        # (T, in_dim)

        # ---- squasher: Conv(s=2)+LReLU+BN, then (Q-1) x [Conv(s=1)+LReLU+BN+MaxPool2]
        h = conv_lrelu_bn(h, lambda k: wc0_ref[k], cb_ref[0], stride=2)
        for s in range(1, q_factor):
            h = conv_lrelu_bn(h, lambda k, st=s: wcr_ref[(st - 1) * _CONV_K + k],
                              cb_ref[s], stride=1)
            h = maxpool2(h)

        # ---- LinearEmbedding
        h = mm(h, we_ref[...]) + be_ref[...]                  # (Tq, D)

        # ---- nn.TransformerEncoder (post-norm, GELU, eval / no dropout, no mask)
        for li in range(n_layers):
            qkv = mm(h, wqkv_ref[li]) + bqkv_ref[li]          # (Tq, 3D)
            # head-major shuffle through VMEM scratch (plain lane-slice stores),
            # then batched einsums over all heads at once.
            for hh in range(n_heads):
                qh_ref[hh] = qkv[:, hh * hd:(hh + 1) * hd] * scale
                kh_ref[hh] = qkv[:, d + hh * hd:d + (hh + 1) * hd]
                vh_ref[hh] = qkv[:, 2 * d + hh * hd:2 * d + (hh + 1) * hd]
            sc = jnp.einsum("htd,hsd->hts", qh_ref[...], kh_ref[...],
                            preferred_element_type=jnp.float32)
            sc = sc - jnp.max(sc, axis=-1, keepdims=True)
            pr = jnp.exp(sc)
            pr = pr / jnp.sum(pr, axis=-1, keepdims=True)
            ctx = jnp.einsum("hts,hsd->htd", pr, vh_ref[...],
                             preferred_element_type=jnp.float32)
            for hh in range(n_heads):
                attn_ref[:, hh * hd:(hh + 1) * hd] = ctx[hh]
            attn = mm(attn_ref[...], wo_ref[li]) + bo_ref[li]

            h = layer_norm(h + attn, ln1g_ref[li], ln1b_ref[li])     # norm1
            ff = mm(h, w1_ref[li]) + b1_ref[li]
            # TODO(synk): PyTorch activation='gelu' is erf-exact; tanh approximation used here.
            ff = jax.nn.gelu(ff, approximate=True)
            ff = mm(ff, w2_ref[li]) + b2_ref[li]
            h = layer_norm(h + ff, ln2g_ref[li], ln2b_ref[li])       # norm2

        o_ref[...] = h

    return kernel


# ----------------------------------------------------------------------------
# Wrapper: weight re-layout + single pallas_call
# ----------------------------------------------------------------------------

def transformer_encoder_forward(x, params, cfg):
    """x: (B, T, in_dim) -> (B, T / 2**quant_factor, hidden_size)."""
    B, T, Cin = x.shape
    Q = cfg["quant_factor"]
    D = cfg["hidden_size"]
    H = cfg["num_attention_heads"]
    L = cfg["num_hidden_layers"]
    assert Q >= 2 and T % (2 ** Q) == 0 and D % H == 0
    Tq = T // (2 ** Q)
    hd = D // H

    sq = params["squasher"]
    # Conv weights: PyTorch (Cout, Cin, K) -> per-tap matmul layout (K, Cin, Cout).
    wc0 = jnp.transpose(sq[0]["w"], (2, 1, 0))                               # (K, Cin, D)
    wcr = jnp.concatenate([jnp.transpose(p["w"], (2, 1, 0)) for p in sq[1:]],
                          axis=0)                                            # ((Q-1)*K, D, D)
    # Fold eval-mode BatchNorm1d into per-channel scale/shift applied AFTER the
    # LeakyReLU: y*a + c with a = gamma*rsqrt(var+eps), c = beta - mean*a.
    cb_rows = []
    for p in sq:
        a = p["gamma"] * lax.rsqrt(p["var"] + 1e-5)
        c = p["beta"] - p["mean"] * a
        cb_rows.append(jnp.stack([p["b"], a, c], axis=0))                    # (3, D)
    cb = jnp.stack(cb_rows, axis=0)                                          # (Q, 3, D)

    stack = lambda k: jnp.stack([lp[k] for lp in params["layers"]], axis=0)
    weights = [wc0, wcr, cb, params["emb_w"], params["emb_b"],
               stack("wqkv"), stack("bqkv"), stack("wo"), stack("bo"),
               stack("ln1_g"), stack("ln1_b"), stack("w1"), stack("b1"),
               stack("w2"), stack("b2"), stack("ln2_g"), stack("ln2_b")]

    in_specs = [pl.BlockSpec((None, T, Cin), lambda b: (b, 0, 0))]
    in_specs += [pl.BlockSpec(w.shape, lambda b, nd=w.ndim: (0,) * nd)
                 for w in weights]

    return pl.pallas_call(
        _make_fused_kernel(D, H, L, Q),
        out_shape=jax.ShapeDtypeStruct((B, Tq, D), jnp.float32),
        grid=(B,),
        in_specs=in_specs,
        out_specs=pl.BlockSpec((None, Tq, D), lambda b: (b, 0, 0)),
        scratch_shapes=[pltpu.VMEM((H, Tq, hd), jnp.float32),   # q (head-major)
                        pltpu.VMEM((H, Tq, hd), jnp.float32),   # k
                        pltpu.VMEM((H, Tq, hd), jnp.float32),   # v
                        pltpu.VMEM((Tq, D), jnp.float32)],      # concat(heads)
        compiler_params=pltpu.CompilerParams(
            dimension_semantics=("parallel",)),
    )(x, *weights)


# ----------------------------------------------------------------------------
# Pure-JAX reference (for validation only)
# ----------------------------------------------------------------------------

def reference_forward(x, params, cfg):
    Q = cfg["quant_factor"]
    D = cfg["hidden_size"]
    H = cfg["num_attention_heads"]
    hd = D // H

    def conv_lrelu_bn(h, p, stride):
        B, T, _ = h.shape
        hp = jnp.pad(h, ((0, 0), (2, 2), (0, 0)), mode="edge")   # replicate pad
        t_out = (T + 4 - _CONV_K) // stride + 1
        w = jnp.transpose(p["w"], (2, 1, 0))
        y = p["b"] + jnp.zeros((B, t_out, w.shape[-1]), jnp.float32)
        for k in range(_CONV_K):
            xs = hp[:, k:k + (t_out - 1) * stride + 1:stride, :]
            y = y + jnp.einsum("btc,cd->btd", xs, w[k])
        y = jnp.maximum(y, 0.2 * y)
        a = p["gamma"] * lax.rsqrt(p["var"] + 1e-5)
        return y * a + (p["beta"] - p["mean"] * a)

    def layer_norm(v, g, b):
        mu = jnp.mean(v, axis=-1, keepdims=True)
        var = jnp.mean(jnp.square(v - mu), axis=-1, keepdims=True)
        return (v - mu) * lax.rsqrt(var + 1e-5) * g + b

    h = conv_lrelu_bn(x, params["squasher"][0], 2)
    for s in range(1, Q):
        h = conv_lrelu_bn(h, params["squasher"][s], 1)
        h = jnp.maximum(h[:, 0::2, :], h[:, 1::2, :])
    h = h @ params["emb_w"] + params["emb_b"]
    B, T, _ = h.shape
    for lp in params["layers"]:
        qkv = h @ lp["wqkv"] + lp["bqkv"]
        q = qkv[..., :D].reshape(B, T, H, hd).transpose(0, 2, 1, 3) / math.sqrt(hd)
        k = qkv[..., D:2 * D].reshape(B, T, H, hd).transpose(0, 2, 1, 3)
        v = qkv[..., 2 * D:].reshape(B, T, H, hd).transpose(0, 2, 1, 3)
        p = jax.nn.softmax(jnp.einsum("bhtd,bhsd->bhts", q, k), axis=-1)
        o = jnp.einsum("bhts,bhsd->bhtd", p, v).transpose(0, 2, 1, 3).reshape(B, T, D)
        h = layer_norm(h + o @ lp["wo"] + lp["bo"], lp["ln1_g"], lp["ln1_b"])
        ff = jax.nn.gelu(h @ lp["w1"] + lp["b1"], approximate=True)
        ff = ff @ lp["w2"] + lp["b2"]
        h = layer_norm(h + ff, lp["ln2_g"], lp["ln2_b"])
    return h


# ----------------------------------------------------------------------------
# Deterministic parameter init (shapes from the module's __init__)
# ----------------------------------------------------------------------------

def init_params(key, cfg):
    keys = iter(jax.random.split(key, 64))

    def nrm(shape, scale=0.1):
        return scale * jax.random.normal(next(keys), shape, jnp.float32)

    D = cfg["hidden_size"]
    F = cfg["intermediate_size"]

    squasher = []
    cin = cfg["in_dim"]
    for _ in range(cfg["quant_factor"]):
        squasher.append({
            "w": nrm((D, cin, _CONV_K)),                 # PyTorch Conv1d weight
            "b": nrm((D,)),
            "gamma": 1.0 + nrm((D,)),
            "beta": nrm((D,)),
            "mean": nrm((D,)),                           # BN running_mean (eval)
            "var": 1.0 + 0.05 * jnp.abs(nrm((D,))),      # BN running_var  (eval)
        })
        cin = D

    emb_w = nrm((D, D))          # nn.Linear weight, stored transposed (in, out)
    emb_b = nrm((1, D))

    layers = []
    for _ in range(cfg["num_hidden_layers"]):
        layers.append({
            "wqkv": nrm((D, 3 * D)),   # MHA in_proj_weight^T, columns = [q|k|v]
            "bqkv": nrm((1, 3 * D)),
            "wo": nrm((D, D)),         # MHA out_proj weight^T
            "bo": nrm((1, D)),
            "ln1_g": 1.0 + nrm((1, D)),
            "ln1_b": nrm((1, D)),
            "w1": nrm((D, F)),
            "b1": nrm((1, F)),
            "w2": nrm((F, D)),
            "b2": nrm((1, D)),
            "ln2_g": 1.0 + nrm((1, D)),
            "ln2_b": nrm((1, D)),
        })

    return {"squasher": squasher, "emb_w": emb_w, "emb_b": emb_b,
            "layers": layers}


# ----------------------------------------------------------------------------

if __name__ == "__main__":
    cfg = dict(
        in_dim=16,
        hidden_size=64,
        quant_factor=3,
        num_attention_heads=4,
        intermediate_size=128,
        num_hidden_layers=2,
        pos_encoding="none",
        temporal_bias="none",
        quant_sequence_length=8,
    )
    key = jax.random.PRNGKey(0)
    kp, kx = jax.random.split(key)
    params = init_params(kp, cfg)

    B, T = 2, 64
    x = jax.random.normal(kx, (B, T, cfg["in_dim"]), jnp.float32)

    fwd = jax.jit(lambda xx, pp: transformer_encoder_forward(xx, pp, cfg))
    out = jax.block_until_ready(fwd(x, params))

    expected = (B, T // (2 ** cfg["quant_factor"]), cfg["hidden_size"])
    assert out.shape == expected, (out.shape, expected)
    assert bool(jnp.all(jnp.isfinite(out)))

    ref = jax.block_until_ready(reference_forward(x, params, cfg))
    assert bool(jnp.allclose(out, ref, atol=5e-2, rtol=5e-2)), \
        float(jnp.max(jnp.abs(out - ref)))

    print("KERNEL_OK")
</pallas_src>

<mosaic_0001>
module attributes {stable_mosaic.version = 11 : i64} {
  func.func @kernel(%arg0: i32, %arg1: memref<1x64x16xf32, #tpu.memory_space<vmem>>, %arg2: memref<5x16x64xf32, #tpu.memory_space<vmem>>, %arg3: memref<10x64x64xf32, #tpu.memory_space<vmem>>, %arg4: memref<3x3x64xf32, #tpu.memory_space<vmem>>, %arg5: memref<64x64xf32, #tpu.memory_space<vmem>>, %arg6: memref<1x64xf32, #tpu.memory_space<vmem>>, %arg7: memref<2x64x192xf32, #tpu.memory_space<vmem>>, %arg8: memref<2x1x192xf32, #tpu.memory_space<vmem>>, %arg9: memref<2x64x64xf32, #tpu.memory_space<vmem>>, %arg10: memref<2x1x64xf32, #tpu.memory_space<vmem>>, %arg11: memref<2x1x64xf32, #tpu.memory_space<vmem>>, %arg12: memref<2x1x64xf32, #tpu.memory_space<vmem>>, %arg13: memref<2x64x128xf32, #tpu.memory_space<vmem>>, %arg14: memref<2x1x128xf32, #tpu.memory_space<vmem>>, %arg15: memref<2x128x64xf32, #tpu.memory_space<vmem>>, %arg16: memref<2x1x64xf32, #tpu.memory_space<vmem>>, %arg17: memref<2x1x64xf32, #tpu.memory_space<vmem>>, %arg18: memref<2x1x64xf32, #tpu.memory_space<vmem>>, %arg19: memref<1x8x64xf32, #tpu.memory_space<vmem>>, %arg20: memref<4x8x16xf32, #tpu.memory_space<vmem>>, %arg21: memref<4x8x16xf32, #tpu.memory_space<vmem>>, %arg22: memref<4x8x16xf32, #tpu.memory_space<vmem>>, %arg23: memref<8x64xf32, #tpu.memory_space<vmem>>) attributes {dimension_semantics = [#tpu.dimension_semantics<parallel>], iteration_bounds = array<i64: 2>, scalar_prefetch = 0 : i64, scratch_operands = 4 : i64, tpu.core_type = #tpu.core_type<tc>, window_params = [{transform_indices = @transform_0, window_bounds = array<i64: 1, 64, 16>}, {pipeline_mode = #tpu.pipeline_mode<synchronous>, transform_indices = @transform_1, window_bounds = array<i64: 5, 16, 64>}, {pipeline_mode = #tpu.pipeline_mode<synchronous>, transform_indices = @transform_2, window_bounds = array<i64: 10, 64, 64>}, {pipeline_mode = #tpu.pipeline_mode<synchronous>, transform_indices = @transform_3, window_bounds = array<i64: 3, 3, 64>}, {pipeline_mode = #tpu.pipeline_mode<synchronous>, transform_indices = @transform_4, window_bounds = array<i64: 64, 64>}, {pipeline_mode = #tpu.pipeline_mode<synchronous>, transform_indices = @transform_5, window_bounds = array<i64: 1, 64>}, {pipeline_mode = #tpu.pipeline_mode<synchronous>, transform_indices = @transform_6, window_bounds = array<i64: 2, 64, 192>}, {pipeline_mode = #tpu.pipeline_mode<synchronous>, transform_indices = @transform_7, window_bounds = array<i64: 2, 1, 192>}, {pipeline_mode = #tpu.pipeline_mode<synchronous>, transform_indices = @transform_8, window_bounds = array<i64: 2, 64, 64>}, {pipeline_mode = #tpu.pipeline_mode<synchronous>, transform_indices = @transform_9, window_bounds = array<i64: 2, 1, 64>}, {pipeline_mode = #tpu.pipeline_mode<synchronous>, transform_indices = @transform_10, window_bounds = array<i64: 2, 1, 64>}, {pipeline_mode = #tpu.pipeline_mode<synchronous>, transform_indices = @transform_11, window_bounds = array<i64: 2, 1, 64>}, {pipeline_mode = #tpu.pipeline_mode<synchronous>, transform_indices = @transform_12, window_bounds = array<i64: 2, 64, 128>}, {pipeline_mode = #tpu.pipeline_mode<synchronous>, transform_indices = @transform_13, window_bounds = array<i64: 2, 1, 128>}, {pipeline_mode = #tpu.pipeline_mode<synchronous>, transform_indices = @transform_14, window_bounds = array<i64: 2, 128, 64>}, {pipeline_mode = #tpu.pipeline_mode<synchronous>, transform_indices = @transform_15, window_bounds = array<i64: 2, 1, 64>}, {pipeline_mode = #tpu.pipeline_mode<synchronous>, transform_indices = @transform_16, window_bounds = array<i64: 2, 1, 64>}, {pipeline_mode = #tpu.pipeline_mode<synchronous>, transform_indices = @transform_17, window_bounds = array<i64: 2, 1, 64>}, {transform_indices = @transform_18, window_bounds = array<i64: 1, 8, 64>}]} {
    %c0 = arith.constant 0 : index
    %c0_0 = arith.constant 0 : index
    %c0_1 = arith.constant 0 : index
    %0 = vector.load %arg1[%c0, %c0_0, %c0_1] : memref<1x64x16xf32, #tpu.memory_space<vmem>>, vector<1x64x16xf32>
    %1 = vector.shape_cast %0 : vector<1x64x16xf32> to vector<64x16xf32>
    %c0_2 = arith.constant 0 : index
    %c0_3 = arith.constant 0 : index
    %c0_4 = arith.constant 0 : index
    %2 = vector.load %arg4[%c0_2, %c0_3, %c0_4] : memref<3x3x64xf32, #tpu.memory_space<vmem>>, vector<1x3x64xf32>
    %3 = vector.shape_cast %2 : vector<1x3x64xf32> to vector<3x64xf32>
    %4 = tpu.iota {dimensions = array<i32: 0>} : vector<32x64xi32>
    %5 = tpu.iota {dimensions = array<i32: 1>} : vector<32x64xi32>
    %c2_i32 = arith.constant 2 : i32
    %6 = vector.broadcast %c2_i32 : i32 to vector<32x64xi32>
    %7 = arith.muli %4, %6 : vector<32x64xi32>
    %c-2_i32 = arith.constant -2 : i32
    %8 = vector.broadcast %c-2_i32 : i32 to vector<32x64xi32>
    %9 = arith.addi %7, %8 : vector<32x64xi32>
    %c0_i32 = arith.constant 0 : i32
    %c63_i32 = arith.constant 63 : i32
    %10 = vector.broadcast %c0_i32 : i32 to vector<32x64xi32>
    %11 = arith.maxsi %10, %9 : vector<32x64xi32>
    %12 = vector.broadcast %c63_i32 : i32 to vector<32x64xi32>
    %13 = arith.minsi %12, %11 : vector<32x64xi32>
    %14 = arith.cmpi eq, %5, %13 : vector<32x64xi32>
    %15 = arith.extui %14 : vector<32x64xi1> to vector<32x64xi32>
    %16 = arith.sitofp %15 : vector<32x64xi32> to vector<32x64xf32>
    %cst = arith.constant dense<0.000000e+00> : vector<32x16xf32>
    %17 = tpu.matmul %16, %1, %cst {dimension_numbers = #tpu.dot_dimension_numbers<[1], [0], [0], [1], [0, 0, 1, 1], [], []>} : vector<32x64xf32>, vector<64x16xf32>, vector<32x16xf32> -> vector<32x16xf32>
    %c0_5 = arith.constant 0 : index
    %c0_6 = arith.constant 0 : index
    %c0_7 = arith.constant 0 : index
    %18 = vector.load %arg2[%c0_5, %c0_6, %c0_7] : memref<5x16x64xf32, #tpu.memory_space<vmem>>, vector<1x16x64xf32>
    %19 = vector.shape_cast %18 : vector<1x16x64xf32> to vector<16x64xf32>
    %cst_8 = arith.constant dense<0.000000e+00> : vector<32x64xf32>
    %20 = tpu.matmul %17, %19, %cst_8 {dimension_numbers = #tpu.dot_dimension_numbers<[1], [0], [0], [1], [0, 0, 1, 1], [], []>} : vector<32x16xf32>, vector<16x64xf32>, vector<32x64xf32> -> vector<32x64xf32>
    %21 = tpu.iota {dimensions = array<i32: 0>} : vector<32x64xi32>
    %22 = tpu.iota {dimensions = array<i32: 1>} : vector<32x64xi32>
    %c2_i32_9 = arith.constant 2 : i32
    %23 = vector.broadcast %c2_i32_9 : i32 to vector<32x64xi32>
    %24 = arith.muli %21, %23 : vector<32x64xi32>
    %c-1_i32 = arith.constant -1 : i32
    %25 = vector.broadcast %c-1_i32 : i32 to vector<32x64xi32>
    %26 = arith.addi %24, %25 : vector<32x64xi32>
    %c0_i32_10 = arith.constant 0 : i32
    %c63_i32_11 = arith.constant 63 : i32
    %27 = vector.broadcast %c0_i32_10 : i32 to vector<32x64xi32>
    %28 = arith.maxsi %27, %26 : vector<32x64xi32>
    %29 = vector.broadcast %c63_i32_11 : i32 to vector<32x64xi32>
    %30 = arith.minsi %29, %28 : vector<32x64xi32>
    %31 = arith.cmpi eq, %22, %30 : vector<32x64xi32>
    %32 = arith.extui %31 : vector<32x64xi1> to vector<32x64xi32>
    %33 = arith.sitofp %32 : vector<32x64xi32> to vector<32x64xf32>
    %cst_12 = arith.constant dense<0.000000e+00> : vector<32x16xf32>
    %34 = tpu.matmul %33, %1, %cst_12 {dimension_numbers = #tpu.dot_dimension_numbers<[1], [0], [0], [1], [0, 0, 1, 1], [], []>} : vector<32x64xf32>, vector<64x16xf32>, vector<32x16xf32> -> vector<32x16xf32>
    %c1 = arith.constant 1 : index
    %c0_13 = arith.constant 0 : index
    %c0_14 = arith.constant 0 : index
    %35 = vector.load %arg2[%c1, %c0_13, %c0_14] : memref<5x16x64xf32, #tpu.memory_space<vmem>>, vector<1x16x64xf32>
    %36 = vector.shape_cast %35 : vector<1x16x64xf32> to vector<16x64xf32>
    %cst_15 = arith.constant dense<0.000000e+00> : vector<32x64xf32>
    %37 = tpu.matmul %34, %36, %cst_15 {dimension_numbers = #tpu.dot_dimension_numbers<[1], [0], [0], [1], [0, 0, 1, 1], [], []>} : vector<32x16xf32>, vector<16x64xf32>, vector<32x64xf32> -> vector<32x64xf32>
    %38 = arith.addf %20, %37 : vector<32x64xf32>
    %39 = tpu.iota {dimensions = array<i32: 0>} : vector<32x64xi32>
    %40 = tpu.iota {dimensions = array<i32: 1>} : vector<32x64xi32>
    %c2_i32_16 = arith.constant 2 : i32
    %41 = vector.broadcast %c2_i32_16 : i32 to vector<32x64xi32>
    %42 = arith.muli %39, %41 : vector<32x64xi32>
    %c0_i32_17 = arith.constant 0 : i32
    %43 = vector.broadcast %c0_i32_17 : i32 to vector<32x64xi32>
    %44 = arith.addi %42, %43 : vector<32x64xi32>
    %c0_i32_18 = arith.constant 0 : i32
    %c63_i32_19 = arith.constant 63 : i32
    %45 = vector.broadcast %c0_i32_18 : i32 to vector<32x64xi32>
    %46 = arith.maxsi %45, %44 : vector<32x64xi32>
    %47 = vector.broadcast %c63_i32_19 : i32 to vector<32x64xi32>
    %48 = arith.minsi %47, %46 : vector<32x64xi32>
    %49 = arith.cmpi eq, %40, %48 : vector<32x64xi32>
    %50 = arith.extui %49 : vector<32x64xi1> to vector<32x64xi32>
    %51 = arith.sitofp %50 : vector<32x64xi32> to vector<32x64xf32>
    %cst_20 = arith.constant dense<0.000000e+00> : vector<32x16xf32>
    %52 = tpu.matmul %51, %1, %cst_20 {dimension_numbers = #tpu.dot_dimension_numbers<[1], [0], [0], [1], [0, 0, 1, 1], [], []>} : vector<32x64xf32>, vector<64x16xf32>, vector<32x16xf32> -> vector<32x16xf32>
    %c2 = arith.constant 2 : index
    %c0_21 = arith.constant 0 : index
    %c0_22 = arith.constant 0 : index
    %53 = vector.load %arg2[%c2, %c0_21, %c0_22] : memref<5x16x64xf32, #tpu.memory_space<vmem>>, vector<1x16x64xf32>
    %54 = vector.shape_cast %53 : vector<1x16x64xf32> to vector<16x64xf32>
    %cst_23 = arith.constant dense<0.000000e+00> : vector<32x64xf32>
    %55 = tpu.matmul %52, %54, %cst_23 {dimension_numbers = #tpu.dot_dimension_numbers<[1], [0], [0], [1], [0, 0, 1, 1], [], []>} : vector<32x16xf32>, vector<16x64xf32>, vector<32x64xf32> -> vector<32x64xf32>
    %56 = arith.addf %38, %55 : vector<32x64xf32>
    %57 = tpu.iota {dimensions = array<i32: 0>} : vector<32x64xi32>
    %58 = tpu.iota {dimensions = array<i32: 1>} : vector<32x64xi32>
    %c2_i32_24 = arith.constant 2 : i32
    %59 = vector.broadcast %c2_i32_24 : i32 to vector<32x64xi32>
    %60 = arith.muli %57, %59 : vector<32x64xi32>
    %c1_i32 = arith.constant 1 : i32
    %61 = vector.broadcast %c1_i32 : i32 to vector<32x64xi32>
    %62 = arith.addi %60, %61 : vector<32x64xi32>
    %c0_i32_25 = arith.constant 0 : i32
    %c63_i32_26 = arith.constant 63 : i32
    %63 = vector.broadcast %c0_i32_25 : i32 to vector<32x64xi32>
    %64 = arith.maxsi %63, %62 : vector<32x64xi32>
    %65 = vector.broadcast %c63_i32_26 : i32 to vector<32x64xi32>
    %66 = arith.minsi %65, %64 : vector<32x64xi32>
    %67 = arith.cmpi eq, %58, %66 : vector<32x64xi32>
    %68 = arith.extui %67 : vector<32x64xi1> to vector<32x64xi32>
    %69 = arith.sitofp %68 : vector<32x64xi32> to vector<32x64xf32>
    %cst_27 = arith.constant dense<0.000000e+00> : vector<32x16xf32>
    %70 = tpu.matmul %69, %1, %cst_27 {dimension_numbers = #tpu.dot_dimension_numbers<[1], [0], [0], [1], [0, 0, 1, 1], [], []>} : vector<32x64xf32>, vector<64x16xf32>, vector<32x16xf32> -> vector<32x16xf32>
    %c3 = arith.constant 3 : index
    %c0_28 = arith.constant 0 : index
    %c0_29 = arith.constant 0 : index
    %71 = vector.load %arg2[%c3, %c0_28, %c0_29] : memref<5x16x64xf32, #tpu.memory_space<vmem>>, vector<1x16x64xf32>
    %72 = vector.shape_cast %71 : vector<1x16x64xf32> to vector<16x64xf32>
    %cst_30 = arith.constant dense<0.000000e+00> : vector<32x64xf32>
    %73 = tpu.matmul %70, %72, %cst_30 {dimension_numbers = #tpu.dot_dimension_numbers<[1], [0], [0], [1], [0, 0, 1, 1], [], []>} : vector<32x16xf32>, vector<16x64xf32>, vector<32x64xf32> -> vector<32x64xf32>
    %74 = arith.addf %56, %73 : vector<32x64xf32>
    %75 = tpu.iota {dimensions = array<i32: 0>} : vector<32x64xi32>
    %76 = tpu.iota {dimensions = array<i32: 1>} : vector<32x64xi32>
    %c2_i32_31 = arith.constant 2 : i32
    %77 = vector.broadcast %c2_i32_31 : i32 to vector<32x64xi32>
    %78 = arith.muli %75, %77 : vector<32x64xi32>
    %c2_i32_32 = arith.constant 2 : i32
    %79 = vector.broadcast %c2_i32_32 : i32 to vector<32x64xi32>
    %80 = arith.addi %78, %79 : vector<32x64xi32>
    %c0_i32_33 = arith.constant 0 : i32
    %c63_i32_34 = arith.constant 63 : i32
    %81 = vector.broadcast %c0_i32_33 : i32 to vector<32x64xi32>
    %82 = arith.maxsi %81, %80 : vector<32x64xi32>
    %83 = vector.broadcast %c63_i32_34 : i32 to vector<32x64xi32>
    %84 = arith.minsi %83, %82 : vector<32x64xi32>
    %85 = arith.cmpi eq, %76, %84 : vector<32x64xi32>
    %86 = arith.extui %85 : vector<32x64xi1> to vector<32x64xi32>
    %87 = arith.sitofp %86 : vector<32x64xi32> to vector<32x64xf32>
    %cst_35 = arith.constant dense<0.000000e+00> : vector<32x16xf32>
    %88 = tpu.matmul %87, %1, %cst_35 {dimension_numbers = #tpu.dot_dimension_numbers<[1], [0], [0], [1], [0, 0, 1, 1], [], []>} : vector<32x64xf32>, vector<64x16xf32>, vector<32x16xf32> -> vector<32x16xf32>
    %c4 = arith.constant 4 : index
    %c0_36 = arith.constant 0 : index
    %c0_37 = arith.constant 0 : index
    %89 = vector.load %arg2[%c4, %c0_36, %c0_37] : memref<5x16x64xf32, #tpu.memory_space<vmem>>, vector<1x16x64xf32>
    %90 = vector.shape_cast %89 : vector<1x16x64xf32> to vector<16x64xf32>
    %cst_38 = arith.constant dense<0.000000e+00> : vector<32x64xf32>
    %91 = tpu.matmul %88, %90, %cst_38 {dimension_numbers = #tpu.dot_dimension_numbers<[1], [0], [0], [1], [0, 0, 1, 1], [], []>} : vector<32x16xf32>, vector<16x64xf32>, vector<32x64xf32> -> vector<32x64xf32>
    %92 = arith.addf %74, %91 : vector<32x64xf32>
    %93 = vector.extract_strided_slice %3 {offsets = [0, 0], sizes = [1, 64], strides = [1, 1]} : vector<3x64xf32> to vector<1x64xf32>
    %94 = vector.broadcast %93 : vector<1x64xf32> to vector<32x64xf32>
    %95 = arith.addf %92, %94 : vector<32x64xf32>
    %cst_39 = arith.constant 2.000000e-01 : f32
    %96 = vector.broadcast %cst_39 : f32 to vector<32x64xf32>
    %97 = arith.mulf %96, %95 : vector<32x64xf32>
    %98 = arith.maximumf %95, %97 : vector<32x64xf32>
    %99 = vector.extract_strided_slice %3 {offsets = [1, 0], sizes = [1, 64], strides = [1, 1]} : vector<3x64xf32> to vector<1x64xf32>
    %100 = vector.broadcast %99 : vector<1x64xf32> to vector<32x64xf32>
    %101 = arith.mulf %98, %100 : vector<32x64xf32>
    %102 = vector.extract_strided_slice %3 {offsets = [2, 0], sizes = [1, 64], strides = [1, 1]} : vector<3x64xf32> to vector<1x64xf32>
    %103 = vector.broadcast %102 : vector<1x64xf32> to vector<32x64xf32>
    %104 = arith.addf %101, %103 : vector<32x64xf32>
    %c1_40 = arith.constant 1 : index
    %c0_41 = arith.constant 0 : index
    %c0_42 = arith.constant 0 : index
    %105 = vector.load %arg4[%c1_40, %c0_41, %c0_42] : memref<3x3x64xf32, #tpu.memory_space<vmem>>, vector<1x3x64xf32>
    %106 = vector.shape_cast %105 : vector<1x3x64xf32> to vector<3x64xf32>
    %107 = tpu.iota {dimensions = array<i32: 0>} : vector<32x32xi32>
    %108 = tpu.iota {dimensions = array<i32: 1>} : vector<32x32xi32>
    %c1_i32_43 = arith.constant 1 : i32
    %109 = vector.broadcast %c1_i32_43 : i32 to vector<32x32xi32>
    %110 = arith.muli %107, %109 : vector<32x32xi32>
    %c-2_i32_44 = arith.constant -2 : i32
    %111 = vector.broadcast %c-2_i32_44 : i32 to vector<32x32xi32>
    %112 = arith.addi %110, %111 : vector<32x32xi32>
    %c0_i32_45 = arith.constant 0 : i32
    %c31_i32 = arith.constant 31 : i32
    %113 = vector.broadcast %c0_i32_45 : i32 to vector<32x32xi32>
    %114 = arith.maxsi %113, %112 : vector<32x32xi32>
    %115 = vector.broadcast %c31_i32 : i32 to vector<32x32xi32>
    %116 = arith.minsi %115, %114 : vector<32x32xi32>
    %117 = arith.cmpi eq, %108, %116 : vector<32x32xi32>
    %118 = arith.extui %117 : vector<32x32xi1> to vector<32x32xi32>
    %119 = arith.sitofp %118 : vector<32x32xi32> to vector<32x32xf32>
    %cst_46 = arith.constant dense<0.000000e+00> : vector<32x64xf32>
    %120 = tpu.matmul %119, %104, %cst_46 {dimension_numbers = #tpu.dot_dimension_numbers<[1], [0], [0], [1], [0, 0, 1, 1], [], []>} : vector<32x32xf32>, vector<32x64xf32>, vector<32x64xf32> -> vector<32x64xf32>
    %c0_47 = arith.constant 0 : index
    %c0_48 = arith.constant 0 : index
    %c0_49 = arith.constant 0 : index
    %121 = vector.load %arg3[%c0_47, %c0_48, %c0_49] : memref<10x64x64xf32, #tpu.memory_space<vmem>>, vector<1x64x64xf32>
    %122 = vector.shape_cast %121 : vector<1x64x64xf32> to vector<64x64xf32>
    %cst_50 = arith.constant dense<0.000000e+00> : vector<32x64xf32>
    %123 = tpu.matmul %120, %122, %cst_50 {dimension_numbers = #tpu.dot_dimension_numbers<[1], [0], [0], [1], [0, 0, 1, 1], [], []>} : vector<32x64xf32>, vector<64x64xf32>, vector<32x64xf32> -> vector<32x64xf32>
    %124 = tpu.iota {dimensions = array<i32: 0>} : vector<32x32xi32>
    %125 = tpu.iota {dimensions = array<i32: 1>} : vector<32x32xi32>
    %c1_i32_51 = arith.constant 1 : i32
    %126 = vector.broadcast %c1_i32_51 : i32 to vector<32x32xi32>
    %127 = arith.muli %124, %126 : vector<32x32xi32>
    %c-1_i32_52 = arith.constant -1 : i32
    %128 = vector.broadcast %c-1_i32_52 : i32 to vector<32x32xi32>
    %129 = arith.addi %127, %128 : vector<32x32xi32>
    %c0_i32_53 = arith.constant 0 : i32
    %c31_i32_54 = arith.constant 31 : i32
    %130 = vector.broadcast %c0_i32_53 : i32 to vector<32x32xi32>
    %131 = arith.maxsi %130, %129 : vector<32x32xi32>
    %132 = vector.broadcast %c31_i32_54 : i32 to vector<32x32xi32>
    %133 = arith.minsi %132, %131 : vector<32x32xi32>
    %134 = arith.cmpi eq, %125, %133 : vector<32x32xi32>
    %135 = arith.extui %134 : vector<32x32xi1> to vector<32x32xi32>
    %136 = arith.sitofp %135 : vector<32x32xi32> to vector<32x32xf32>
    %cst_55 = arith.constant dense<0.000000e+00> : vector<32x64xf32>
    %137 = tpu.matmul %136, %104, %cst_55 {dimension_numbers = #tpu.dot_dimension_numbers<[1], [0], [0], [1], [0, 0, 1, 1], [], []>} : vector<32x32xf32>, vector<32x64xf32>, vector<32x64xf32> -> vector<32x64xf32>
    %c1_56 = arith.constant 1 : index
    %c0_57 = arith.constant 0 : index
    %c0_58 = arith.constant 0 : index
    %138 = vector.load %arg3[%c1_56, %c0_57, %c0_58] : memref<10x64x64xf32, #tpu.memory_space<vmem>>, vector<1x64x64xf32>
    %139 = vector.shape_cast %138 : vector<1x64x64xf32> to vector<64x64xf32>
    %cst_59 = arith.constant dense<0.000000e+00> : vector<32x64xf32>
    %140 = tpu.matmul %137, %139, %cst_59 {dimension_numbers = #tpu.dot_dimension_numbers<[1], [0], [0], [1], [0, 0, 1, 1], [], []>} : vector<32x64xf32>, vector<64x64xf32>, vector<32x64xf32> -> vector<32x64xf32>
    %141 = arith.addf %123, %140 : vector<32x64xf32>
    %c2_60 = arith.constant 2 : index
    %c0_61 = arith.constant 0 : index
    %c0_62 = arith.constant 0 : index
    %142 = vector.load %arg3[%c2_60, %c0_61, %c0_62] : memref<10x64x64xf32, #tpu.memory_space<vmem>>, vector<1x64x64xf32>
    %143 = vector.shape_cast %142 : vector<1x64x64xf32> to vector<64x64xf32>
    %cst_63 = arith.constant dense<0.000000e+00> : vector<32x64xf32>
    %144 = tpu.matmul %104, %143, %cst_63 {dimension_numbers = #tpu.dot_dimension_numbers<[1], [0], [0], [1], [0, 0, 1, 1], [], []>} : vector<32x64xf32>, vector<64x64xf32>, vector<32x64xf32> -> vector<32x64xf32>
    %145 = arith.addf %141, %144 : vector<32x64xf32>
    %146 = tpu.iota {dimensions = array<i32: 0>} : vector<32x32xi32>
    %147 = tpu.iota {dimensions = array<i32: 1>} : vector<32x32xi32>
    %c1_i32_64 = arith.constant 1 : i32
    %148 = vector.broadcast %c1_i32_64 : i32 to vector<32x32xi32>
    %149 = arith.muli %146, %148 : vector<32x32xi32>
    %c1_i32_65 = arith.constant 1 : i32
    %150 = vector.broadcast %c1_i32_65 : i32 to vector<32x32xi32>
    %151 = arith.addi %149, %150 : vector<32x32xi32>
    %c0_i32_66 = arith.constant 0 : i32
    %c31_i32_67 = arith.constant 31 : i32
    %152 = vector.broadcast %c0_i32_66 : i32 to vector<32x32xi32>
    %153 = arith.maxsi %152, %151 : vector<32x32xi32>
    %154 = vector.broadcast %c31_i32_67 : i32 to vector<32x32xi32>
    %155 = arith.minsi %154, %153 : vector<32x32xi32>
    %156 = arith.cmpi eq, %147, %155 : vector<32x32xi32>
    %157 = arith.extui %156 : vector<32x32xi1> to vector<32x32xi32>
    %158 = arith.sitofp %157 : vector<32x32xi32> to vector<32x32xf32>
    %cst_68 = arith.constant dense<0.000000e+00> : vector<32x64xf32>
    %159 = tpu.matmul %158, %104, %cst_68 {dimension_numbers = #tpu.dot_dimension_numbers<[1], [0], [0], [1], [0, 0, 1, 1], [], []>} : vector<32x32xf32>, vector<32x64xf32>, vector<32x64xf32> -> vector<32x64xf32>
    %c3_69 = arith.constant 3 : index
    %c0_70 = arith.constant 0 : index
    %c0_71 = arith.constant 0 : index
    %160 = vector.load %arg3[%c3_69, %c0_70, %c0_71] : memref<10x64x64xf32, #tpu.memory_space<vmem>>, vector<1x64x64xf32>
    %161 = vector.shape_cast %160 : vector<1x64x64xf32> to vector<64x64xf32>
    %cst_72 = arith.constant dense<0.000000e+00> : vector<32x64xf32>
    %162 = tpu.matmul %159, %161, %cst_72 {dimension_numbers = #tpu.dot_dimension_numbers<[1], [0], [0], [1], [0, 0, 1, 1], [], []>} : vector<32x64xf32>, vector<64x64xf32>, vector<32x64xf32> -> vector<32x64xf32>
    %163 = arith.addf %145, %162 : vector<32x64xf32>
    %164 = tpu.iota {dimensions = array<i32: 0>} : vector<32x32xi32>
    %165 = tpu.iota {dimensions = array<i32: 1>} : vector<32x32xi32>
    %c1_i32_73 = arith.constant 1 : i32
    %166 = vector.broadcast %c1_i32_73 : i32 to vector<32x32xi32>
    %167 = arith.muli %164, %166 : vector<32x32xi32>
    %c2_i32_74 = arith.constant 2 : i32
    %168 = vector.broadcast %c2_i32_74 : i32 to vector<32x32xi32>
    %169 = arith.addi %167, %168 : vector<32x32xi32>
    %c0_i32_75 = arith.constant 0 : i32
    %c31_i32_76 = arith.constant 31 : i32
    %170 = vector.broadcast %c0_i32_75 : i32 to vector<32x32xi32>
    %171 = arith.maxsi %170, %169 : vector<32x32xi32>
    %172 = vector.broadcast %c31_i32_76 : i32 to vector<32x32xi32>
    %173 = arith.minsi %172, %171 : vector<32x32xi32>
    %174 = arith.cmpi eq, %165, %173 : vector<32x32xi32>
    %175 = arith.extui %174 : vector<32x32xi1> to vector<32x32xi32>
    %176 = arith.sitofp %175 : vector<32x32xi32> to vector<32x32xf32>
    %cst_77 = arith.constant dense<0.000000e+00> : vector<32x64xf32>
    %177 = tpu.matmul %176, %104, %cst_77 {dimension_numbers = #tpu.dot_dimension_numbers<[1], [0], [0], [1], [0, 0, 1, 1], [], []>} : vector<32x32xf32>, vector<32x64xf32>, vector<32x64xf32> -> vector<32x64xf32>
    %c4_78 = arith.constant 4 : index
    %c0_79 = arith.constant 0 : index
    %c0_80 = arith.constant 0 : index
    %178 = vector.load %arg3[%c4_78, %c0_79, %c0_80] : memref<10x64x64xf32, #tpu.memory_space<vmem>>, vector<1x64x64xf32>
    %179 = vector.shape_cast %178 : vector<1x64x64xf32> to vector<64x64xf32>
    %cst_81 = arith.constant dense<0.000000e+00> : vector<32x64xf32>
    %180 = tpu.matmul %177, %179, %cst_81 {dimension_numbers = #tpu.dot_dimension_numbers<[1], [0], [0], [1], [0, 0, 1, 1], [], []>} : vector<32x64xf32>, vector<64x64xf32>, vector<32x64xf32> -> vector<32x64xf32>
    %181 = arith.addf %163, %180 : vector<32x64xf32>
    %182 = vector.extract_strided_slice %106 {offsets = [0, 0], sizes = [1, 64], strides = [1, 1]} : vector<3x64xf32> to vector<1x64xf32>
    %183 = vector.broadcast %182 : vector<1x64xf32> to vector<32x64xf32>
    %184 = arith.addf %181, %183 : vector<32x64xf32>
    %cst_82 = arith.constant 2.000000e-01 : f32
    %185 = vector.broadcast %cst_82 : f32 to vector<32x64xf32>
    %186 = arith.mulf %185, %184 : vector<32x64xf32>
    %187 = arith.maximumf %184, %186 : vector<32x64xf32>
    %188 = vector.extract_strided_slice %106 {offsets = [1, 0], sizes = [1, 64], strides = [1, 1]} : vector<3x64xf32> to vector<1x64xf32>
    %189 = vector.broadcast %188 : vector<1x64xf32> to vector<32x64xf32>
    %190 = arith.mulf %187, %189 : vector<32x64xf32>
    %191 = vector.extract_strided_slice %106 {offsets = [2, 0], sizes = [1, 64], strides = [1, 1]} : vector<3x64xf32> to vector<1x64xf32>
    %192 = vector.broadcast %191 : vector<1x64xf32> to vector<32x64xf32>
    %193 = arith.addf %190, %192 : vector<32x64xf32>
    %194 = tpu.iota {dimensions = array<i32: 0>} : vector<16x32xi32>
    %195 = tpu.iota {dimensions = array<i32: 1>} : vector<16x32xi32>
    %c2_i32_83 = arith.constant 2 : i32
    %196 = vector.broadcast %c2_i32_83 : i32 to vector<16x32xi32>
    %197 = arith.muli %194, %196 : vector<16x32xi32>
    %c0_i32_84 = arith.constant 0 : i32
    %198 = vector.broadcast %c0_i32_84 : i32 to vector<16x32xi32>
    %199 = arith.addi %197, %198 : vector<16x32xi32>
    %200 = arith.cmpi eq, %195, %199 : vector<16x32xi32>
    %201 = arith.extui %200 : vector<16x32xi1> to vector<16x32xi32>
    %202 = arith.sitofp %201 : vector<16x32xi32> to vector<16x32xf32>
    %cst_85 = arith.constant dense<0.000000e+00> : vector<16x64xf32>
    %203 = tpu.matmul %202, %193, %cst_85 {dimension_numbers = #tpu.dot_dimension_numbers<[1], [0], [0], [1], [0, 0, 1, 1], [], []>} : vector<16x32xf32>, vector<32x64xf32>, vector<16x64xf32> -> vector<16x64xf32>
    %204 = tpu.iota {dimensions = array<i32: 0>} : vector<16x32xi32>
    %205 = tpu.iota {dimensions = array<i32: 1>} : vector<16x32xi32>
    %c2_i32_86 = arith.constant 2 : i32
    %206 = vector.broadcast %c2_i32_86 : i32 to vector<16x32xi32>
    %207 = arith.muli %204, %206 : vector<16x32xi32>
    %c1_i32_87 = arith.constant 1 : i32
    %208 = vector.broadcast %c1_i32_87 : i32 to vector<16x32xi32>
    %209 = arith.addi %207, %208 : vector<16x32xi32>
    %210 = arith.cmpi eq, %205, %209 : vector<16x32xi32>
    %211 = arith.extui %210 : vector<16x32xi1> to vector<16x32xi32>
    %212 = arith.sitofp %211 : vector<16x32xi32> to vector<16x32xf32>
    %cst_88 = arith.constant dense<0.000000e+00> : vector<16x64xf32>
    %213 = tpu.matmul %212, %193, %cst_88 {dimension_numbers = #tpu.dot_dimension_numbers<[1], [0], [0], [1], [0, 0, 1, 1], [], []>} : vector<16x32xf32>, vector<32x64xf32>, vector<16x64xf32> -> vector<16x64xf32>
    %214 = arith.maximumf %203, %213 : vector<16x64xf32>
    %c2_89 = arith.constant 2 : index
    %c0_90 = arith.constant 0 : index
    %c0_91 = arith.constant 0 : index
    %215 = vector.load %arg4[%c2_89, %c0_90, %c0_91] : memref<3x3x64xf32, #tpu.memory_space<vmem>>, vector<1x3x64xf32>
    %216 = vector.shape_cast %215 : vector<1x3x64xf32> to vector<3x64xf32>
    %217 = tpu.iota {dimensions = array<i32: 0>} : vector<16x16xi32>
    %218 = tpu.iota {dimensions = array<i32: 1>} : vector<16x16xi32>
    %c1_i32_92 = arith.constant 1 : i32
    %219 = vector.broadcast %c1_i32_92 : i32 to vector<16x16xi32>
    %220 = arith.muli %217, %219 : vector<16x16xi32>
    %c-2_i32_93 = arith.constant -2 : i32
    %221 = vector.broadcast %c-2_i32_93 : i32 to vector<16x16xi32>
    %222 = arith.addi %220, %221 : vector<16x16xi32>
    %c0_i32_94 = arith.constant 0 : i32
    %c15_i32 = arith.constant 15 : i32
    %223 = vector.broadcast %c0_i32_94 : i32 to vector<16x16xi32>
    %224 = arith.maxsi %223, %222 : vector<16x16xi32>
    %225 = vector.broadcast %c15_i32 : i32 to vector<16x16xi32>
    %226 = arith.minsi %225, %224 : vector<16x16xi32>
    %227 = arith.cmpi eq, %218, %226 : vector<16x16xi32>
    %228 = arith.extui %227 : vector<16x16xi1> to vector<16x16xi32>
    %229 = arith.sitofp %228 : vector<16x16xi32> to vector<16x16xf32>
    %cst_95 = arith.constant dense<0.000000e+00> : vector<16x64xf32>
    %230 = tpu.matmul %229, %214, %cst_95 {dimension_numbers = #tpu.dot_dimension_numbers<[1], [0], [0], [1], [0, 0, 1, 1], [], []>} : vector<16x16xf32>, vector<16x64xf32>, vector<16x64xf32> -> vector<16x64xf32>
    %c5 = arith.constant 5 : index
    %c0_96 = arith.constant 0 : index
    %c0_97 = arith.constant 0 : index
    %231 = vector.load %arg3[%c5, %c0_96, %c0_97] : memref<10x64x64xf32, #tpu.memory_space<vmem>>, vector<1x64x64xf32>
    %232 = vector.shape_cast %231 : vector<1x64x64xf32> to vector<64x64xf32>
    %cst_98 = arith.constant dense<0.000000e+00> : vector<16x64xf32>
    %233 = tpu.matmul %230, %232, %cst_98 {dimension_numbers = #tpu.dot_dimension_numbers<[1], [0], [0], [1], [0, 0, 1, 1], [], []>} : vector<16x64xf32>, vector<64x64xf32>, vector<16x64xf32> -> vector<16x64xf32>
    %234 = tpu.iota {dimensions = array<i32: 0>} : vector<16x16xi32>
    %235 = tpu.iota {dimensions = array<i32: 1>} : vector<16x16xi32>
    %c1_i32_99 = arith.constant 1 : i32
    %236 = vector.broadcast %c1_i32_99 : i32 to vector<16x16xi32>
    %237 = arith.muli %234, %236 : vector<16x16xi32>
    %c-1_i32_100 = arith.constant -1 : i32
    %238 = vector.broadcast %c-1_i32_100 : i32 to vector<16x16xi32>
    %239 = arith.addi %237, %238 : vector<16x16xi32>
    %c0_i32_101 = arith.constant 0 : i32
    %c15_i32_102 = arith.constant 15 : i32
    %240 = vector.broadcast %c0_i32_101 : i32 to vector<16x16xi32>
    %241 = arith.maxsi %240, %239 : vector<16x16xi32>
    %242 = vector.broadcast %c15_i32_102 : i32 to vector<16x16xi32>
    %243 = arith.minsi %242, %241 : vector<16x16xi32>
    %244 = arith.cmpi eq, %235, %243 : vector<16x16xi32>
    %245 = arith.extui %244 : vector<16x16xi1> to vector<16x16xi32>
    %246 = arith.sitofp %245 : vector<16x16xi32> to vector<16x16xf32>
    %cst_103 = arith.constant dense<0.000000e+00> : vector<16x64xf32>
    %247 = tpu.matmul %246, %214, %cst_103 {dimension_numbers = #tpu.dot_dimension_numbers<[1], [0], [0], [1], [0, 0, 1, 1], [], []>} : vector<16x16xf32>, vector<16x64xf32>, vector<16x64xf32> -> vector<16x64xf32>
    %c6 = arith.constant 6 : index
    %c0_104 = arith.constant 0 : index
    %c0_105 = arith.constant 0 : index
    %248 = vector.load %arg3[%c6, %c0_104, %c0_105] : memref<10x64x64xf32, #tpu.memory_space<vmem>>, vector<1x64x64xf32>
    %249 = vector.shape_cast %248 : vector<1x64x64xf32> to vector<64x64xf32>
    %cst_106 = arith.constant dense<0.000000e+00> : vector<16x64xf32>
    %250 = tpu.matmul %247, %249, %cst_106 {dimension_numbers = #tpu.dot_dimension_numbers<[1], [0], [0], [1], [0, 0, 1, 1], [], []>} : vector<16x64xf32>, vector<64x64xf32>, vector<16x64xf32> -> vector<16x64xf32>
    %251 = arith.addf %233, %250 : vector<16x64xf32>
    %c7 = arith.constant 7 : index
    %c0_107 = arith.constant 0 : index
    %c0_108 = arith.constant 0 : index
    %252 = vector.load %arg3[%c7, %c0_107, %c0_108] : memref<10x64x64xf32, #tpu.memory_space<vmem>>, vector<1x64x64xf32>
    %253 = vector.shape_cast %252 : vector<1x64x64xf32> to vector<64x64xf32>
    %cst_109 = arith.constant dense<0.000000e+00> : vector<16x64xf32>
    %254 = tpu.matmul %214, %253, %cst_109 {dimension_numbers = #tpu.dot_dimension_numbers<[1], [0], [0], [1], [0, 0, 1, 1], [], []>} : vector<16x64xf32>, vector<64x64xf32>, vector<16x64xf32> -> vector<16x64xf32>
    %255 = arith.addf %251, %254 : vector<16x64xf32>
    %256 = tpu.iota {dimensions = array<i32: 0>} : vector<16x16xi32>
    %257 = tpu.iota {dimensions = array<i32: 1>} : vector<16x16xi32>
    %c1_i32_110 = arith.constant 1 : i32
    %258 = vector.broadcast %c1_i32_110 : i32 to vector<16x16xi32>
    %259 = arith.muli %256, %258 : vector<16x16xi32>
    %c1_i32_111 = arith.constant 1 : i32
    %260 = vector.broadcast %c1_i32_111 : i32 to vector<16x16xi32>
    %261 = arith.addi %259, %260 : vector<16x16xi32>
    %c0_i32_112 = arith.constant 0 : i32
    %c15_i32_113 = arith.constant 15 : i32
    %262 = vector.broadcast %c0_i32_112 : i32 to vector<16x16xi32>
    %263 = arith.maxsi %262, %261 : vector<16x16xi32>
    %264 = vector.broadcast %c15_i32_113 : i32 to vector<16x16xi32>
    %265 = arith.minsi %264, %263 : vector<16x16xi32>
    %266 = arith.cmpi eq, %257, %265 : vector<16x16xi32>
    %267 = arith.extui %266 : vector<16x16xi1> to vector<16x16xi32>
    %268 = arith.sitofp %267 : vector<16x16xi32> to vector<16x16xf32>
    %cst_114 = arith.constant dense<0.000000e+00> : vector<16x64xf32>
    %269 = tpu.matmul %268, %214, %cst_114 {dimension_numbers = #tpu.dot_dimension_numbers<[1], [0], [0], [1], [0, 0, 1, 1], [], []>} : vector<16x16xf32>, vector<16x64xf32>, vector<16x64xf32> -> vector<16x64xf32>
    %c8 = arith.constant 8 : index
    %c0_115 = arith.constant 0 : index
    %c0_116 = arith.constant 0 : index
    %270 = vector.load %arg3[%c8, %c0_115, %c0_116] : memref<10x64x64xf32, #tpu.memory_space<vmem>>, vector<1x64x64xf32>
    %271 = vector.shape_cast %270 : vector<1x64x64xf32> to vector<64x64xf32>
    %cst_117 = arith.constant dense<0.000000e+00> : vector<16x64xf32>
    %272 = tpu.matmul %269, %271, %cst_117 {dimension_numbers = #tpu.dot_dimension_numbers<[1], [0], [0], [1], [0, 0, 1, 1], [], []>} : vector<16x64xf32>, vector<64x64xf32>, vector<16x64xf32> -> vector<16x64xf32>
    %273 = arith.addf %255, %272 : vector<16x64xf32>
    %274 = tpu.iota {dimensions = array<i32: 0>} : vector<16x16xi32>
    %275 = tpu.iota {dimensions = array<i32: 1>} : vector<16x16xi32>
    %c1_i32_118 = arith.constant 1 : i32
    %276 = vector.broadcast %c1_i32_118 : i32 to vector<16x16xi32>
    %277 = arith.muli %274, %276 : vector<16x16xi32>
    %c2_i32_119 = arith.constant 2 : i32
    %278 = vector.broadcast %c2_i32_119 : i32 to vector<16x16xi32>
    %279 = arith.addi %277, %278 : vector<16x16xi32>
    %c0_i32_120 = arith.constant 0 : i32
    %c15_i32_121 = arith.constant 15 : i32
    %280 = vector.broadcast %c0_i32_120 : i32 to vector<16x16xi32>
    %281 = arith.maxsi %280, %279 : vector<16x16xi32>
    %282 = vector.broadcast %c15_i32_121 : i32 to vector<16x16xi32>
    %283 = arith.minsi %282, %281 : vector<16x16xi32>
    %284 = arith.cmpi eq, %275, %283 : vector<16x16xi32>
    %285 = arith.extui %284 : vector<16x16xi1> to vector<16x16xi32>
    %286 = arith.sitofp %285 : vector<16x16xi32> to vector<16x16xf32>
    %cst_122 = arith.constant dense<0.000000e+00> : vector<16x64xf32>
    %287 = tpu.matmul %286, %214, %cst_122 {dimension_numbers = #tpu.dot_dimension_numbers<[1], [0], [0], [1], [0, 0, 1, 1], [], []>} : vector<16x16xf32>, vector<16x64xf32>, vector<16x64xf32> -> vector<16x64xf32>
    %c9 = arith.constant 9 : index
    %c0_123 = arith.constant 0 : index
    %c0_124 = arith.constant 0 : index
    %288 = vector.load %arg3[%c9, %c0_123, %c0_124] : memref<10x64x64xf32, #tpu.memory_space<vmem>>, vector<1x64x64xf32>
    %289 = vector.shape_cast %288 : vector<1x64x64xf32> to vector<64x64xf32>
    %cst_125 = arith.constant dense<0.000000e+00> : vector<16x64xf32>
    %290 = tpu.matmul %287, %289, %cst_125 {dimension_numbers = #tpu.dot_dimension_numbers<[1], [0], [0], [1], [0, 0, 1, 1], [], []>} : vector<16x64xf32>, vector<64x64xf32>, vector<16x64xf32> -> vector<16x64xf32>
    %291 = arith.addf %273, %290 : vector<16x64xf32>
    %292 = vector.extract_strided_slice %216 {offsets = [0, 0], sizes = [1, 64], strides = [1, 1]} : vector<3x64xf32> to vector<1x64xf32>
    %293 = vector.broadcast %292 : vector<1x64xf32> to vector<16x64xf32>
    %294 = arith.addf %291, %293 : vector<16x64xf32>
    %cst_126 = arith.constant 2.000000e-01 : f32
    %295 = vector.broadcast %cst_126 : f32 to vector<16x64xf32>
    %296 = arith.mulf %295, %294 : vector<16x64xf32>
    %297 = arith.maximumf %294, %296 : vector<16x64xf32>
    %298 = vector.extract_strided_slice %216 {offsets = [1, 0], sizes = [1, 64], strides = [1, 1]} : vector<3x64xf32> to vector<1x64xf32>
    %299 = vector.broadcast %298 : vector<1x64xf32> to vector<16x64xf32>
    %300 = arith.mulf %297, %299 : vector<16x64xf32>
    %301 = vector.extract_strided_slice %216 {offsets = [2, 0], sizes = [1, 64], strides = [1, 1]} : vector<3x64xf32> to vector<1x64xf32>
    %302 = vector.broadcast %301 : vector<1x64xf32> to vector<16x64xf32>
    %303 = arith.addf %300, %302 : vector<16x64xf32>
    %304 = tpu.iota {dimensions = array<i32: 0>} : vector<8x16xi32>
    %305 = tpu.iota {dimensions = array<i32: 1>} : vector<8x16xi32>
    %c2_i32_127 = arith.constant 2 : i32
    %306 = vector.broadcast %c2_i32_127 : i32 to vector<8x16xi32>
    %307 = arith.muli %304, %306 : vector<8x16xi32>
    %c0_i32_128 = arith.constant 0 : i32
    %308 = vector.broadcast %c0_i32_128 : i32 to vector<8x16xi32>
    %309 = arith.addi %307, %308 : vector<8x16xi32>
    %310 = arith.cmpi eq, %305, %309 : vector<8x16xi32>
    %311 = arith.extui %310 : vector<8x16xi1> to vector<8x16xi32>
    %312 = arith.sitofp %311 : vector<8x16xi32> to vector<8x16xf32>
    %cst_129 = arith.constant dense<0.000000e+00> : vector<8x64xf32>
    %313 = tpu.matmul %312, %303, %cst_129 {dimension_numbers = #tpu.dot_dimension_numbers<[1], [0], [0], [1], [0, 0, 1, 1], [], []>} : vector<8x16xf32>, vector<16x64xf32>, vector<8x64xf32> -> vector<8x64xf32>
    %314 = tpu.iota {dimensions = array<i32: 0>} : vector<8x16xi32>
    %315 = tpu.iota {dimensions = array<i32: 1>} : vector<8x16xi32>
    %c2_i32_130 = arith.constant 2 : i32
    %316 = vector.broadcast %c2_i32_130 : i32 to vector<8x16xi32>
    %317 = arith.muli %314, %316 : vector<8x16xi32>
    %c1_i32_131 = arith.constant 1 : i32
    %318 = vector.broadcast %c1_i32_131 : i32 to vector<8x16xi32>
    %319 = arith.addi %317, %318 : vector<8x16xi32>
    %320 = arith.cmpi eq, %315, %319 : vector<8x16xi32>
    %321 = arith.extui %320 : vector<8x16xi1> to vector<8x16xi32>
    %322 = arith.sitofp %321 : vector<8x16xi32> to vector<8x16xf32>
    %cst_132 = arith.constant dense<0.000000e+00> : vector<8x64xf32>
    %323 = tpu.matmul %322, %303, %cst_132 {dimension_numbers = #tpu.dot_dimension_numbers<[1], [0], [0], [1], [0, 0, 1, 1], [], []>} : vector<8x16xf32>, vector<16x64xf32>, vector<8x64xf32> -> vector<8x64xf32>
    %324 = arith.maximumf %313, %323 : vector<8x64xf32>
    %c0_133 = arith.constant 0 : index
    %c0_134 = arith.constant 0 : index
    %325 = vector.load %arg5[%c0_133, %c0_134] : memref<64x64xf32, #tpu.memory_space<vmem>>, vector<64x64xf32>
    %cst_135 = arith.constant dense<0.000000e+00> : vector<8x64xf32>
    %326 = tpu.matmul %324, %325, %cst_135 {dimension_numbers = #tpu.dot_dimension_numbers<[1], [0], [0], [1], [0, 0, 1, 1], [], []>} : vector<8x64xf32>, vector<64x64xf32>, vector<8x64xf32> -> vector<8x64xf32>
    %c0_136 = arith.constant 0 : index
    %c0_137 = arith.constant 0 : index
    %327 = vector.load %arg6[%c0_136, %c0_137] : memref<1x64xf32, #tpu.memory_space<vmem>>, vector<1x64xf32>
    %328 = vector.broadcast %327 : vector<1x64xf32> to vector<8x64xf32>
    %329 = arith.addf %326, %328 : vector<8x64xf32>
    %c0_138 = arith.constant 0 : index
    %c0_139 = arith.constant 0 : index
    %c0_140 = arith.constant 0 : index
    %330 = vector.load %arg7[%c0_138, %c0_139, %c0_140] : memref<2x64x192xf32, #tpu.memory_space<vmem>>, vector<1x64x192xf32>
    %331 = vector.shape_cast %330 : vector<1x64x192xf32> to vector<64x192xf32>
    %cst_141 = arith.constant dense<0.000000e+00> : vector<8x192xf32>
    %332 = tpu.matmul %329, %331, %cst_141 {dimension_numbers = #tpu.dot_dimension_numbers<[1], [0], [0], [1], [0, 0, 1, 1], [], []>} : vector<8x64xf32>, vector<64x192xf32>, vector<8x192xf32> -> vector<8x192xf32>
    %c0_142 = arith.constant 0 : index
    %c0_143 = arith.constant 0 : index
    %c0_144 = arith.constant 0 : index
    %333 = vector.load %arg8[%c0_142, %c0_143, %c0_144] : memref<2x1x192xf32, #tpu.memory_space<vmem>>, vector<1x1x192xf32>
    %334 = vector.shape_cast %333 : vector<1x1x192xf32> to vector<1x192xf32>
    %335 = vector.broadcast %334 : vector<1x192xf32> to vector<8x192xf32>
    %336 = arith.addf %332, %335 : vector<8x192xf32>
    %337 = vector.extract_strided_slice %336 {offsets = [0, 0], sizes = [8, 16], strides = [1, 1]} : vector<8x192xf32> to vector<8x16xf32>
    %cst_145 = arith.constant 2.500000e-01 : f32
    %338 = vector.broadcast %cst_145 : f32 to vector<8x16xf32>
    %339 = arith.mulf %337, %338 : vector<8x16xf32>
    %c0_146 = arith.constant 0 : index
    %c0_147 = arith.constant 0 : index
    %c0_148 = arith.constant 0 : index
    %340 = vector.load %arg20[%c0_146, %c0_147, %c0_148] : memref<4x8x16xf32, #tpu.memory_space<vmem>>, vector<1x8x16xf32>
    %341 = vector.shape_cast %340 : vector<1x8x16xf32> to vector<8x16xf32>
    %342 = vector.shape_cast %339 : vector<8x16xf32> to vector<1x8x16xf32>
    tpu.vector_store %arg20[%c0_146, %c0_147, %c0_148], %342 {strides = array<i32>} : memref<4x8x16xf32, #tpu.memory_space<vmem>>, vector<1x8x16xf32>,
    %343 = vector.extract_strided_slice %336 {offsets = [0, 64], sizes = [8, 16], strides = [1, 1]} : vector<8x192xf32> to vector<8x16xf32>
    %c0_149 = arith.constant 0 : index
    %c0_150 = arith.constant 0 : index
    %c0_151 = arith.constant 0 : index
    %344 = vector.load %arg21[%c0_149, %c0_150, %c0_151] : memref<4x8x16xf32, #tpu.memory_space<vmem>>, vector<1x8x16xf32>
    %345 = vector.shape_cast %344 : vector<1x8x16xf32> to vector<8x16xf32>
    %346 = vector.shape_cast %343 : vector<8x16xf32> to vector<1x8x16xf32>
    tpu.vector_store %arg21[%c0_149, %c0_150, %c0_151], %346 {strides = array<i32>} : memref<4x8x16xf32, #tpu.memory_space<vmem>>, vector<1x8x16xf32>,
    %347 = vector.extract_strided_slice %336 {offsets = [0, 128], sizes = [8, 16], strides = [1, 1]} : vector<8x192xf32> to vector<8x16xf32>
    %c0_152 = arith.constant 0 : index
    %c0_153 = arith.constant 0 : index
    %c0_154 = arith.constant 0 : index
    %348 = vector.load %arg22[%c0_152, %c0_153, %c0_154] : memref<4x8x16xf32, #tpu.memory_space<vmem>>, vector<1x8x16xf32>
    %349 = vector.shape_cast %348 : vector<1x8x16xf32> to vector<8x16xf32>
    %350 = vector.shape_cast %347 : vector<8x16xf32> to vector<1x8x16xf32>
    tpu.vector_store %arg22[%c0_152, %c0_153, %c0_154], %350 {strides = array<i32>} : memref<4x8x16xf32, #tpu.memory_space<vmem>>, vector<1x8x16xf32>,
    %351 = vector.extract_strided_slice %336 {offsets = [0, 16], sizes = [8, 16], strides = [1, 1]} : vector<8x192xf32> to vector<8x16xf32>
    %cst_155 = arith.constant 2.500000e-01 : f32
    %352 = vector.broadcast %cst_155 : f32 to vector<8x16xf32>
    %353 = arith.mulf %351, %352 : vector<8x16xf32>
    %c1_156 = arith.constant 1 : index
    %c0_157 = arith.constant 0 : index
    %c0_158 = arith.constant 0 : index
    %354 = vector.load %arg20[%c1_156, %c0_157, %c0_158] : memref<4x8x16xf32, #tpu.memory_space<vmem>>, vector<1x8x16xf32>
    %355 = vector.shape_cast %354 : vector<1x8x16xf32> to vector<8x16xf32>
    %356 = vector.shape_cast %353 : vector<8x16xf32> to vector<1x8x16xf32>
    tpu.vector_store %arg20[%c1_156, %c0_157, %c0_158], %356 {strides = array<i32>} : memref<4x8x16xf32, #tpu.memory_space<vmem>>, vector<1x8x16xf32>,
    %357 = vector.extract_strided_slice %336 {offsets = [0, 80], sizes = [8, 16], strides = [1, 1]} : vector<8x192xf32> to vector<8x16xf32>
    %c1_159 = arith.constant 1 : index
    %c0_160 = arith.constant 0 : index
    %c0_161 = arith.constant 0 : index
    %358 = vector.load %arg21[%c1_159, %c0_160, %c0_161] : memref<4x8x16xf32, #tpu.memory_space<vmem>>, vector<1x8x16xf32>
    %359 = vector.shape_cast %358 : vector<1x8x16xf32> to vector<8x16xf32>
    %360 = vector.shape_cast %357 : vector<8x16xf32> to vector<1x8x16xf32>
    tpu.vector_store %arg21[%c1_159, %c0_160, %c0_161], %360 {strides = array<i32>} : memref<4x8x16xf32, #tpu.memory_space<vmem>>, vector<1x8x16xf32>,
    %361 = vector.extract_strided_slice %336 {offsets = [0, 144], sizes = [8, 16], strides = [1, 1]} : vector<8x192xf32> to vector<8x16xf32>
    %c1_162 = arith.constant 1 : index
    %c0_163 = arith.constant 0 : index
    %c0_164 = arith.constant 0 : index
    %362 = vector.load %arg22[%c1_162, %c0_163, %c0_164] : memref<4x8x16xf32, #tpu.memory_space<vmem>>, vector<1x8x16xf32>
    %363 = vector.shape_cast %362 : vector<1x8x16xf32> to vector<8x16xf32>
    %364 = vector.shape_cast %361 : vector<8x16xf32> to vector<1x8x16xf32>
    tpu.vector_store %arg22[%c1_162, %c0_163, %c0_164], %364 {strides = array<i32>} : memref<4x8x16xf32, #tpu.memory_space<vmem>>, vector<1x8x16xf32>,
    %365 = vector.extract_strided_slice %336 {offsets = [0, 32], sizes = [8, 16], strides = [1, 1]} : vector<8x192xf32> to vector<8x16xf32>
    %cst_165 = arith.constant 2.500000e-01 : f32
    %366 = vector.broadcast %cst_165 : f32 to vector<8x16xf32>
    %367 = arith.mulf %365, %366 : vector<8x16xf32>
    %c2_166 = arith.constant 2 : index
    %c0_167 = arith.constant 0 : index
    %c0_168 = arith.constant 0 : index
    %368 = vector.load %arg20[%c2_166, %c0_167, %c0_168] : memref<4x8x16xf32, #tpu.memory_space<vmem>>, vector<1x8x16xf32>
    %369 = vector.shape_cast %368 : vector<1x8x16xf32> to vector<8x16xf32>
    %370 = vector.shape_cast %367 : vector<8x16xf32> to vector<1x8x16xf32>
    tpu.vector_store %arg20[%c2_166, %c0_167, %c0_168], %370 {strides = array<i32>} : memref<4x8x16xf32, #tpu.memory_space<vmem>>, vector<1x8x16xf32>,
    %371 = vector.extract_strided_slice %336 {offsets = [0, 96], sizes = [8, 16], strides = [1, 1]} : vector<8x192xf32> to vector<8x16xf32>
    %c2_169 = arith.constant 2 : index
    %c0_170 = arith.constant 0 : index
    %c0_171 = arith.constant 0 : index
    %372 = vector.load %arg21[%c2_169, %c0_170, %c0_171] : memref<4x8x16xf32, #tpu.memory_space<vmem>>, vector<1x8x16xf32>
    %373 = vector.shape_cast %372 : vector<1x8x16xf32> to vector<8x16xf32>
    %374 = vector.shape_cast %371 : vector<8x16xf32> to vector<1x8x16xf32>
    tpu.vector_store %arg21[%c2_169, %c0_170, %c0_171], %374 {strides = array<i32>} : memref<4x8x16xf32, #tpu.memory_space<vmem>>, vector<1x8x16xf32>,
    %375 = vector.extract_strided_slice %336 {offsets = [0, 160], sizes = [8, 16], strides = [1, 1]} : vector<8x192xf32> to vector<8x16xf32>
    %c2_172 = arith.constant 2 : index
    %c0_173 = arith.constant 0 : index
    %c0_174 = arith.constant 0 : index
    %376 = vector.load %arg22[%c2_172, %c0_173, %c0_174] : memref<4x8x16xf32, #tpu.memory_space<vmem>>, vector<1x8x16xf32>
    %377 = vector.shape_cast %376 : vector<1x8x16xf32> to vector<8x16xf32>
    %378 = vector.shape_cast %375 : vector<8x16xf32> to vector<1x8x16xf32>
    tpu.vector_store %arg22[%c2_172, %c0_173, %c0_174], %378 {strides = array<i32>} : memref<4x8x16xf32, #tpu.memory_space<vmem>>, vector<1x8x16xf32>,
    %379 = vector.extract_strided_slice %336 {offsets = [0, 48], sizes = [8, 16], strides = [1, 1]} : vector<8x192xf32> to vector<8x16xf32>
    %cst_175 = arith.constant 2.500000e-01 : f32
    %380 = vector.broadcast %cst_175 : f32 to vector<8x16xf32>
    %381 = arith.mulf %379, %380 : vector<8x16xf32>
    %c3_176 = arith.constant 3 : index
    %c0_177 = arith.constant 0 : index
    %c0_178 = arith.constant 0 : index
    %382 = vector.load %arg20[%c3_176, %c0_177, %c0_178] : memref<4x8x16xf32, #tpu.memory_space<vmem>>, vector<1x8x16xf32>
    %383 = vector.shape_cast %382 : vector<1x8x16xf32> to vector<8x16xf32>
    %384 = vector.shape_cast %381 : vector<8x16xf32> to vector<1x8x16xf32>
    tpu.vector_store %arg20[%c3_176, %c0_177, %c0_178], %384 {strides = array<i32>} : memref<4x8x16xf32, #tpu.memory_space<vmem>>, vector<1x8x16xf32>,
    %385 = vector.extract_strided_slice %336 {offsets = [0, 112], sizes = [8, 16], strides = [1, 1]} : vector<8x192xf32> to vector<8x16xf32>
    %c3_179 = arith.constant 3 : index
    %c0_180 = arith.constant 0 : index
    %c0_181 = arith.constant 0 : index
    %386 = vector.load %arg21[%c3_179, %c0_180, %c0_181] : memref<4x8x16xf32, #tpu.memory_space<vmem>>, vector<1x8x16xf32>
    %387 = vector.shape_cast %386 : vector<1x8x16xf32> to vector<8x16xf32>
    %388 = vector.shape_cast %385 : vector<8x16xf32> to vector<1x8x16xf32>
    tpu.vector_store %arg21[%c3_179, %c0_180, %c0_181], %388 {strides = array<i32>} : memref<4x8x16xf32, #tpu.memory_space<vmem>>, vector<1x8x16xf32>,
    %389 = vector.extract_strided_slice %336 {offsets = [0, 176], sizes = [8, 16], strides = [1, 1]} : vector<8x192xf32> to vector<8x16xf32>
    %c3_182 = arith.constant 3 : index
    %c0_183 = arith.constant 0 : index
    %c0_184 = arith.constant 0 : index
    %390 = vector.load %arg22[%c3_182, %c0_183, %c0_184] : memref<4x8x16xf32, #tpu.memory_space<vmem>>, vector<1x8x16xf32>
    %391 = vector.shape_cast %390 : vector<1x8x16xf32> to vector<8x16xf32>
    %392 = vector.shape_cast %389 : vector<8x16xf32> to vector<1x8x16xf32>
    tpu.vector_store %arg22[%c3_182, %c0_183, %c0_184], %392 {strides = array<i32>} : memref<4x8x16xf32, #tpu.memory_space<vmem>>, vector<1x8x16xf32>,
    %c0_185 = arith.constant 0 : index
    %c0_186 = arith.constant 0 : index
    %c0_187 = arith.constant 0 : index
    %393 = vector.load %arg20[%c0_185, %c0_186, %c0_187] : memref<4x8x16xf32, #tpu.memory_space<vmem>>, vector<4x8x16xf32>
    %c0_188 = arith.constant 0 : index
    %c0_189 = arith.constant 0 : index
    %c0_190 = arith.constant 0 : index
    %394 = vector.load %arg21[%c0_188, %c0_189, %c0_190] : memref<4x8x16xf32, #tpu.memory_space<vmem>>, vector<4x8x16xf32>
    "tpu.trace_start"() <{level = 10 : i32, message = "htd,hsd->hts"}> : () -> ()
    %cst_191 = arith.constant dense<0.000000e+00> : vector<4x8x8xf32>
    %395 = tpu.matmul %393, %394, %cst_191 {dimension_numbers = #tpu.dot_dimension_numbers<[2], [2], [1], [1], [0, 0, 0, 1, 1, 1], [0], [0]>} : vector<4x8x16xf32>, vector<4x8x16xf32>, vector<4x8x8xf32> -> vector<4x8x8xf32>
    "tpu.trace_stop"() : () -> ()
    %cst_192 = arith.constant dense<0xFF800000> : vector<4x8xf32>
    %396 = vector.multi_reduction <maximumf>, %395, %cst_192 [2] : vector<4x8x8xf32> to vector<4x8xf32>
    %397 = vector.shape_cast %396 : vector<4x8xf32> to vector<4x8x1xf32>
    %398 = vector.broadcast %397 : vector<4x8x1xf32> to vector<4x8x8xf32>
    %399 = arith.subf %395, %398 : vector<4x8x8xf32>
    %400 = math.exp %399 : vector<4x8x8xf32>
    %cst_193 = arith.constant dense<0.000000e+00> : vector<4x8xf32>
    %401 = vector.multi_reduction <add>, %400, %cst_193 [2] : vector<4x8x8xf32> to vector<4x8xf32>
    %402 = vector.shape_cast %401 : vector<4x8xf32> to vector<4x8x1xf32>
    %403 = vector.broadcast %402 : vector<4x8x1xf32> to vector<4x8x8xf32>
    %404 = arith.divf %400, %403 : vector<4x8x8xf32>
    %c0_194 = arith.constant 0 : index
    %c0_195 = arith.constant 0 : index
    %c0_196 = arith.constant 0 : index
    %405 = vector.load %arg22[%c0_194, %c0_195, %c0_196] : memref<4x8x16xf32, #tpu.memory_space<vmem>>, vector<4x8x16xf32>
    "tpu.trace_start"() <{level = 10 : i32, message = "hts,hsd->htd"}> : () -> ()
    %cst_197 = arith.constant dense<0.000000e+00> : vector<4x8x16xf32>
    %406 = tpu.matmul %404, %405, %cst_197 {dimension_numbers = #tpu.dot_dimension_numbers<[2], [1], [1], [2], [0, 0, 0, 1, 1, 2], [0], [0]>} : vector<4x8x8xf32>, vector<4x8x16xf32>, vector<4x8x16xf32> -> vector<4x8x16xf32>
    "tpu.trace_stop"() : () -> ()
    %407 = vector.extract_strided_slice %406 {offsets = [0, 0, 0], sizes = [1, 8, 16], strides = [1, 1, 1]} : vector<4x8x16xf32> to vector<1x8x16xf32>
    %408 = vector.shape_cast %407 : vector<1x8x16xf32> to vector<8x16xf32>
    %c0_198 = arith.constant 0 : index
    %c0_199 = arith.constant 0 : index
    %409 = vector.load %arg23[%c0_198, %c0_199] : memref<8x64xf32, #tpu.memory_space<vmem>>, vector<8x16xf32>
    tpu.vector_store %arg23[%c0_198, %c0_199], %408 {strides = array<i32>} : memref<8x64xf32, #tpu.memory_space<vmem>>, vector<8x16xf32>,
    %410 = vector.extract_strided_slice %406 {offsets = [1, 0, 0], sizes = [1, 8, 16], strides = [1, 1, 1]} : vector<4x8x16xf32> to vector<1x8x16xf32>
    %411 = vector.shape_cast %410 : vector<1x8x16xf32> to vector<8x16xf32>
    %c0_200 = arith.constant 0 : index
    %c16 = arith.constant 16 : index
    %412 = vector.load %arg23[%c0_200, %c16] : memref<8x64xf32, #tpu.memory_space<vmem>>, vector<8x16xf32>
    tpu.vector_store %arg23[%c0_200, %c16], %411 {strides = array<i32>} : memref<8x64xf32, #tpu.memory_space<vmem>>, vector<8x16xf32>,
    %413 = vector.extract_strided_slice %406 {offsets = [2, 0, 0], sizes = [1, 8, 16], strides = [1, 1, 1]} : vector<4x8x16xf32> to vector<1x8x16xf32>
    %414 = vector.shape_cast %413 : vector<1x8x16xf32> to vector<8x16xf32>
    %c0_201 = arith.constant 0 : index
    %c32 = arith.constant 32 : index
    %415 = vector.load %arg23[%c0_201, %c32] : memref<8x64xf32, #tpu.memory_space<vmem>>, vector<8x16xf32>
    tpu.vector_store %arg23[%c0_201, %c32], %414 {strides = array<i32>} : memref<8x64xf32, #tpu.memory_space<vmem>>, vector<8x16xf32>,
    %416 = vector.extract_strided_slice %406 {offsets = [3, 0, 0], sizes = [1, 8, 16], strides = [1, 1, 1]} : vector<4x8x16xf32> to vector<1x8x16xf32>
    %417 = vector.shape_cast %416 : vector<1x8x16xf32> to vector<8x16xf32>
    %c0_202 = arith.constant 0 : index
    %c48 = arith.constant 48 : index
    %418 = vector.load %arg23[%c0_202, %c48] : memref<8x64xf32, #tpu.memory_space<vmem>>, vector<8x16xf32>
    tpu.vector_store %arg23[%c0_202, %c48], %417 {strides = array<i32>} : memref<8x64xf32, #tpu.memory_space<vmem>>, vector<8x16xf32>,
    %c0_203 = arith.constant 0 : index
    %c0_204 = arith.constant 0 : index
    %419 = vector.load %arg23[%c0_203, %c0_204] : memref<8x64xf32, #tpu.memory_space<vmem>>, vector<8x64xf32>
    %c0_205 = arith.constant 0 : index
    %c0_206 = arith.constant 0 : index
    %c0_207 = arith.constant 0 : index
    %420 = vector.load %arg9[%c0_205, %c0_206, %c0_207] : memref<2x64x64xf32, #tpu.memory_space<vmem>>, vector<1x64x64xf32>
    %421 = vector.shape_cast %420 : vector<1x64x64xf32> to vector<64x64xf32>
    %cst_208 = arith.constant dense<0.000000e+00> : vector<8x64xf32>
    %422 = tpu.matmul %419, %421, %cst_208 {dimension_numbers = #tpu.dot_dimension_numbers<[1], [0], [0], [1], [0, 0, 1, 1], [], []>} : vector<8x64xf32>, vector<64x64xf32>, vector<8x64xf32> -> vector<8x64xf32>
    %c0_209 = arith.constant 0 : index
    %c0_210 = arith.constant 0 : index
    %c0_211 = arith.constant 0 : index
    %423 = vector.load %arg10[%c0_209, %c0_210, %c0_211] : memref<2x1x64xf32, #tpu.memory_space<vmem>>, vector<1x1x64xf32>
    %424 = vector.shape_cast %423 : vector<1x1x64xf32> to vector<1x64xf32>
    %425 = vector.broadcast %424 : vector<1x64xf32> to vector<8x64xf32>
    %426 = arith.addf %422, %425 : vector<8x64xf32>
    %427 = arith.addf %329, %426 : vector<8x64xf32>
    %c0_212 = arith.constant 0 : index
    %c0_213 = arith.constant 0 : index
    %c0_214 = arith.constant 0 : index
    %428 = vector.load %arg11[%c0_212, %c0_213, %c0_214] : memref<2x1x64xf32, #tpu.memory_space<vmem>>, vector<1x1x64xf32>
    %429 = vector.shape_cast %428 : vector<1x1x64xf32> to vector<1x64xf32>
    %c0_215 = arith.constant 0 : index
    %c0_216 = arith.constant 0 : index
    %c0_217 = arith.constant 0 : index
    %430 = vector.load %arg12[%c0_215, %c0_216, %c0_217] : memref<2x1x64xf32, #tpu.memory_space<vmem>>, vector<1x1x64xf32>
    %431 = vector.shape_cast %430 : vector<1x1x64xf32> to vector<1x64xf32>
    %cst_218 = arith.constant dense<0.000000e+00> : vector<8xf32>
    %432 = vector.multi_reduction <add>, %427, %cst_218 [1] : vector<8x64xf32> to vector<8xf32>
    %433 = vector.shape_cast %432 : vector<8xf32> to vector<8x1xf32>
    %cst_219 = arith.constant 6.400000e+01 : f32
    %434 = vector.broadcast %cst_219 : f32 to vector<8x1xf32>
    %435 = arith.divf %433, %434 : vector<8x1xf32>
    %436 = vector.broadcast %435 : vector<8x1xf32> to vector<8x64xf32>
    %437 = arith.subf %427, %436 : vector<8x64xf32>
    %438 = arith.mulf %437, %437 : vector<8x64xf32>
    %cst_220 = arith.constant dense<0.000000e+00> : vector<8xf32>
    %439 = vector.multi_reduction <add>, %438, %cst_220 [1] : vector<8x64xf32> to vector<8xf32>
    %440 = vector.shape_cast %439 : vector<8xf32> to vector<8x1xf32>
    %cst_221 = arith.constant 6.400000e+01 : f32
    %441 = vector.broadcast %cst_221 : f32 to vector<8x1xf32>
    %442 = arith.divf %440, %441 : vector<8x1xf32>
    %443 = vector.broadcast %435 : vector<8x1xf32> to vector<8x64xf32>
    %444 = arith.subf %427, %443 : vector<8x64xf32>
    %cst_222 = arith.constant 9.99999974E-6 : f32
    %445 = vector.broadcast %cst_222 : f32 to vector<8x1xf32>
    %446 = arith.addf %442, %445 : vector<8x1xf32>
    %447 = math.rsqrt %446 : vector<8x1xf32>
    %448 = vector.broadcast %447 : vector<8x1xf32> to vector<8x64xf32>
    %449 = arith.mulf %444, %448 : vector<8x64xf32>
    %450 = vector.broadcast %429 : vector<1x64xf32> to vector<8x64xf32>
    %451 = arith.mulf %449, %450 : vector<8x64xf32>
    %452 = vector.broadcast %431 : vector<1x64xf32> to vector<8x64xf32>
    %453 = arith.addf %451, %452 : vector<8x64xf32>
    %c0_223 = arith.constant 0 : index
    %c0_224 = arith.constant 0 : index
    %c0_225 = arith.constant 0 : index
    %454 = vector.load %arg13[%c0_223, %c0_224, %c0_225] : memref<2x64x128xf32, #tpu.memory_space<vmem>>, vector<1x64x128xf32>
    %455 = vector.shape_cast %454 : vector<1x64x128xf32> to vector<64x128xf32>
    %cst_226 = arith.constant dense<0.000000e+00> : vector<8x128xf32>
    %456 = tpu.matmul %453, %455, %cst_226 {dimension_numbers = #tpu.dot_dimension_numbers<[1], [0], [0], [1], [0, 0, 1, 1], [], []>} : vector<8x64xf32>, vector<64x128xf32>, vector<8x128xf32> -> vector<8x128xf32>
    %c0_227 = arith.constant 0 : index
    %c0_228 = arith.constant 0 : index
    %c0_229 = arith.constant 0 : index
    %457 = vector.load %arg14[%c0_227, %c0_228, %c0_229] : memref<2x1x128xf32, #tpu.memory_space<vmem>>, vector<1x1x128xf32>
    %458 = vector.shape_cast %457 : vector<1x1x128xf32> to vector<1x128xf32>
    %459 = vector.broadcast %458 : vector<1x128xf32> to vector<8x128xf32>
    %460 = arith.addf %456, %459 : vector<8x128xf32>
    %461 = arith.mulf %460, %460 : vector<8x128xf32>
    %462 = arith.mulf %460, %461 : vector<8x128xf32>
    %cst_230 = arith.constant 4.471500e-02 : f32
    %463 = vector.broadcast %cst_230 : f32 to vector<8x128xf32>
    %464 = arith.mulf %463, %462 : vector<8x128xf32>
    %465 = arith.addf %460, %464 : vector<8x128xf32>
    %cst_231 = arith.constant 0.797884583 : f32
    %466 = vector.broadcast %cst_231 : f32 to vector<8x128xf32>
    %467 = arith.mulf %466, %465 : vector<8x128xf32>
    %468 = math.tanh %467 : vector<8x128xf32>
    %cst_232 = arith.constant 1.000000e+00 : f32
    %469 = vector.broadcast %cst_232 : f32 to vector<8x128xf32>
    %470 = arith.addf %469, %468 : vector<8x128xf32>
    %cst_233 = arith.constant 5.000000e-01 : f32
    %471 = vector.broadcast %cst_233 : f32 to vector<8x128xf32>
    %472 = arith.mulf %471, %470 : vector<8x128xf32>
    %473 = arith.mulf %460, %472 : vector<8x128xf32>
    %c0_234 = arith.constant 0 : index
    %c0_235 = arith.constant 0 : index
    %c0_236 = arith.constant 0 : index
    %474 = vector.load %arg15[%c0_234, %c0_235, %c0_236] : memref<2x128x64xf32, #tpu.memory_space<vmem>>, vector<1x128x64xf32>
    %475 = vector.shape_cast %474 : vector<1x128x64xf32> to vector<128x64xf32>
    %cst_237 = arith.constant dense<0.000000e+00> : vector<8x64xf32>
    %476 = tpu.matmul %473, %475, %cst_237 {dimension_numbers = #tpu.dot_dimension_numbers<[1], [0], [0], [1], [0, 0, 1, 1], [], []>} : vector<8x128xf32>, vector<128x64xf32>, vector<8x64xf32> -> vector<8x64xf32>
    %c0_238 = arith.constant 0 : index
    %c0_239 = arith.constant 0 : index
    %c0_240 = arith.constant 0 : index
    %477 = vector.load %arg16[%c0_238, %c0_239, %c0_240] : memref<2x1x64xf32, #tpu.memory_space<vmem>>, vector<1x1x64xf32>
    %478 = vector.shape_cast %477 : vector<1x1x64xf32> to vector<1x64xf32>
    %479 = vector.broadcast %478 : vector<1x64xf32> to vector<8x64xf32>
    %480 = arith.addf %476, %479 : vector<8x64xf32>
    %481 = arith.addf %453, %480 : vector<8x64xf32>
    %c0_241 = arith.constant 0 : index
    %c0_242 = arith.constant 0 : index
    %c0_243 = arith.constant 0 : index
    %482 = vector.load %arg17[%c0_241, %c0_242, %c0_243] : memref<2x1x64xf32, #tpu.memory_space<vmem>>, vector<1x1x64xf32>
    %483 = vector.shape_cast %482 : vector<1x1x64xf32> to vector<1x64xf32>
    %c0_244 = arith.constant 0 : index
    %c0_245 = arith.constant 0 : index
    %c0_246 = arith.constant 0 : index
    %484 = vector.load %arg18[%c0_244, %c0_245, %c0_246] : memref<2x1x64xf32, #tpu.memory_space<vmem>>, vector<1x1x64xf32>
    %485 = vector.shape_cast %484 : vector<1x1x64xf32> to vector<1x64xf32>
    %cst_247 = arith.constant dense<0.000000e+00> : vector<8xf32>
    %486 = vector.multi_reduction <add>, %481, %cst_247 [1] : vector<8x64xf32> to vector<8xf32>
    %487 = vector.shape_cast %486 : vector<8xf32> to vector<8x1xf32>
    %cst_248 = arith.constant 6.400000e+01 : f32
    %488 = vector.broadcast %cst_248 : f32 to vector<8x1xf32>
    %489 = arith.divf %487, %488 : vector<8x1xf32>
    %490 = vector.broadcast %489 : vector<8x1xf32> to vector<8x64xf32>
    %491 = arith.subf %481, %490 : vector<8x64xf32>
    %492 = arith.mulf %491, %491 : vector<8x64xf32>
    %cst_249 = arith.constant dense<0.000000e+00> : vector<8xf32>
    %493 = vector.multi_reduction <add>, %492, %cst_249 [1] : vector<8x64xf32> to vector<8xf32>
    %494 = vector.shape_cast %493 : vector<8xf32> to vector<8x1xf32>
    %cst_250 = arith.constant 6.400000e+01 : f32
    %495 = vector.broadcast %cst_250 : f32 to vector<8x1xf32>
    %496 = arith.divf %494, %495 : vector<8x1xf32>
    %497 = vector.broadcast %489 : vector<8x1xf32> to vector<8x64xf32>
    %498 = arith.subf %481, %497 : vector<8x64xf32>
    %cst_251 = arith.constant 9.99999974E-6 : f32
    %499 = vector.broadcast %cst_251 : f32 to vector<8x1xf32>
    %500 = arith.addf %496, %499 : vector<8x1xf32>
    %501 = math.rsqrt %500 : vector<8x1xf32>
    %502 = vector.broadcast %501 : vector<8x1xf32> to vector<8x64xf32>
    %503 = arith.mulf %498, %502 : vector<8x64xf32>
    %504 = vector.broadcast %483 : vector<1x64xf32> to vector<8x64xf32>
    %505 = arith.mulf %503, %504 : vector<8x64xf32>
    %506 = vector.broadcast %485 : vector<1x64xf32> to vector<8x64xf32>
    %507 = arith.addf %505, %506 : vector<8x64xf32>
    %c1_252 = arith.constant 1 : index
    %c0_253 = arith.constant 0 : index
    %c0_254 = arith.constant 0 : index
    %508 = vector.load %arg7[%c1_252, %c0_253, %c0_254] : memref<2x64x192xf32, #tpu.memory_space<vmem>>, vector<1x64x192xf32>
    %509 = vector.shape_cast %508 : vector<1x64x192xf32> to vector<64x192xf32>
    %cst_255 = arith.constant dense<0.000000e+00> : vector<8x192xf32>
    %510 = tpu.matmul %507, %509, %cst_255 {dimension_numbers = #tpu.dot_dimension_numbers<[1], [0], [0], [1], [0, 0, 1, 1], [], []>} : vector<8x64xf32>, vector<64x192xf32>, vector<8x192xf32> -> vector<8x192xf32>
    %c1_256 = arith.constant 1 : index
    %c0_257 = arith.constant 0 : index
    %c0_258 = arith.constant 0 : index
    %511 = vector.load %arg8[%c1_256, %c0_257, %c0_258] : memref<2x1x192xf32, #tpu.memory_space<vmem>>, vector<1x1x192xf32>
    %512 = vector.shape_cast %511 : vector<1x1x192xf32> to vector<1x192xf32>
    %513 = vector.broadcast %512 : vector<1x192xf32> to vector<8x192xf32>
    %514 = arith.addf %510, %513 : vector<8x192xf32>
    %515 = vector.extract_strided_slice %514 {offsets = [0, 0], sizes = [8, 16], strides = [1, 1]} : vector<8x192xf32> to vector<8x16xf32>
    %cst_259 = arith.constant 2.500000e-01 : f32
    %516 = vector.broadcast %cst_259 : f32 to vector<8x16xf32>
    %517 = arith.mulf %515, %516 : vector<8x16xf32>
    %c0_260 = arith.constant 0 : index
    %c0_261 = arith.constant 0 : index
    %c0_262 = arith.constant 0 : index
    %518 = vector.load %arg20[%c0_260, %c0_261, %c0_262] : memref<4x8x16xf32, #tpu.memory_space<vmem>>, vector<1x8x16xf32>
    %519 = vector.shape_cast %518 : vector<1x8x16xf32> to vector<8x16xf32>
    %520 = vector.shape_cast %517 : vector<8x16xf32> to vector<1x8x16xf32>
    tpu.vector_store %arg20[%c0_260, %c0_261, %c0_262], %520 {strides = array<i32>} : memref<4x8x16xf32, #tpu.memory_space<vmem>>, vector<1x8x16xf32>,
    %521 = vector.extract_strided_slice %514 {offsets = [0, 64], sizes = [8, 16], strides = [1, 1]} : vector<8x192xf32> to vector<8x16xf32>
    %c0_263 = arith.constant 0 : index
    %c0_264 = arith.constant 0 : index
    %c0_265 = arith.constant 0 : index
    %522 = vector.load %arg21[%c0_263, %c0_264, %c0_265] : memref<4x8x16xf32, #tpu.memory_space<vmem>>, vector<1x8x16xf32>
    %523 = vector.shape_cast %522 : vector<1x8x16xf32> to vector<8x16xf32>
    %524 = vector.shape_cast %521 : vector<8x16xf32> to vector<1x8x16xf32>
    tpu.vector_store %arg21[%c0_263, %c0_264, %c0_265], %524 {strides = array<i32>} : memref<4x8x16xf32, #tpu.memory_space<vmem>>, vector<1x8x16xf32>,
    %525 = vector.extract_strided_slice %514 {offsets = [0, 128], sizes = [8, 16], strides = [1, 1]} : vector<8x192xf32> to vector<8x16xf32>
    %c0_266 = arith.constant 0 : index
    %c0_267 = arith.constant 0 : index
    %c0_268 = arith.constant 0 : index
    %526 = vector.load %arg22[%c0_266, %c0_267, %c0_268] : memref<4x8x16xf32, #tpu.memory_space<vmem>>, vector<1x8x16xf32>
    %527 = vector.shape_cast %526 : vector<1x8x16xf32> to vector<8x16xf32>
    %528 = vector.shape_cast %525 : vector<8x16xf32> to vector<1x8x16xf32>
    tpu.vector_store %arg22[%c0_266, %c0_267, %c0_268], %528 {strides = array<i32>} : memref<4x8x16xf32, #tpu.memory_space<vmem>>, vector<1x8x16xf32>,
    %529 = vector.extract_strided_slice %514 {offsets = [0, 16], sizes = [8, 16], strides = [1, 1]} : vector<8x192xf32> to vector<8x16xf32>
    %cst_269 = arith.constant 2.500000e-01 : f32
    %530 = vector.broadcast %cst_269 : f32 to vector<8x16xf32>
    %531 = arith.mulf %529, %530 : vector<8x16xf32>
    %c1_270 = arith.constant 1 : index
    %c0_271 = arith.constant 0 : index
    %c0_272 = arith.constant 0 : index
    %532 = vector.load %arg20[%c1_270, %c0_271, %c0_272] : memref<4x8x16xf32, #tpu.memory_space<vmem>>, vector<1x8x16xf32>
    %533 = vector.shape_cast %532 : vector<1x8x16xf32> to vector<8x16xf32>
    %534 = vector.shape_cast %531 : vector<8x16xf32> to vector<1x8x16xf32>
    tpu.vector_store %arg20[%c1_270, %c0_271, %c0_272], %534 {strides = array<i32>} : memref<4x8x16xf32, #tpu.memory_space<vmem>>, vector<1x8x16xf32>,
    %535 = vector.extract_strided_slice %514 {offsets = [0, 80], sizes = [8, 16], strides = [1, 1]} : vector<8x192xf32> to vector<8x16xf32>
    %c1_273 = arith.constant 1 : index
    %c0_274 = arith.constant 0 : index
    %c0_275 = arith.constant 0 : index
    %536 = vector.load %arg21[%c1_273, %c0_274, %c0_275] : memref<4x8x16xf32, #tpu.memory_space<vmem>>, vector<1x8x16xf32>
    %537 = vector.shape_cast %536 : vector<1x8x16xf32> to vector<8x16xf32>
    %538 = vector.shape_cast %535 : vector<8x16xf32> to vector<1x8x16xf32>
    tpu.vector_store %arg21[%c1_273, %c0_274, %c0_275], %538 {strides = array<i32>} : memref<4x8x16xf32, #tpu.memory_space<vmem>>, vector<1x8x16xf32>,
    %539 = vector.extract_strided_slice %514 {offsets = [0, 144], sizes = [8, 16], strides = [1, 1]} : vector<8x192xf32> to vector<8x16xf32>
    %c1_276 = arith.constant 1 : index
    %c0_277 = arith.constant 0 : index
    %c0_278 = arith.constant 0 : index
    %540 = vector.load %arg22[%c1_276, %c0_277, %c0_278] : memref<4x8x16xf32, #tpu.memory_space<vmem>>, vector<1x8x16xf32>
    %541 = vector.shape_cast %540 : vector<1x8x16xf32> to vector<8x16xf32>
    %542 = vector.shape_cast %539 : vector<8x16xf32> to vector<1x8x16xf32>
    tpu.vector_store %arg22[%c1_276, %c0_277, %c0_278], %542 {strides = array<i32>} : memref<4x8x16xf32, #tpu.memory_space<vmem>>, vector<1x8x16xf32>,
    %543 = vector.extract_strided_slice %514 {offsets = [0, 32], sizes = [8, 16], strides = [1, 1]} : vector<8x192xf32> to vector<8x16xf32>
    %cst_279 = arith.constant 2.500000e-01 : f32
    %544 = vector.broadcast %cst_279 : f32 to vector<8x16xf32>
    %545 = arith.mulf %543, %544 : vector<8x16xf32>
    %c2_280 = arith.constant 2 : index
    %c0_281 = arith.constant 0 : index
    %c0_282 = arith.constant 0 : index
    %546 = vector.load %arg20[%c2_280, %c0_281, %c0_282] : memref<4x8x16xf32, #tpu.memory_space<vmem>>, vector<1x8x16xf32>
    %547 = vector.shape_cast %546 : vector<1x8x16xf32> to vector<8x16xf32>
    %548 = vector.shape_cast %545 : vector<8x16xf32> to vector<1x8x16xf32>
    tpu.vector_store %arg20[%c2_280, %c0_281, %c0_282], %548 {strides = array<i32>} : memref<4x8x16xf32, #tpu.memory_space<vmem>>, vector<1x8x16xf32>,
    %549 = vector.extract_strided_slice %514 {offsets = [0, 96], sizes = [8, 16], strides = [1, 1]} : vector<8x192xf32> to vector<8x16xf32>
    %c2_283 = arith.constant 2 : index
    %c0_284 = arith.constant 0 : index
    %c0_285 = arith.constant 0 : index
    %550 = vector.load %arg21[%c2_283, %c0_284, %c0_285] : memref<4x8x16xf32, #tpu.memory_space<vmem>>, vector<1x8x16xf32>
    %551 = vector.shape_cast %550 : vector<1x8x16xf32> to vector<8x16xf32>
    %552 = vector.shape_cast %549 : vector<8x16xf32> to vector<1x8x16xf32>
    tpu.vector_store %arg21[%c2_283, %c0_284, %c0_285], %552 {strides = array<i32>} : memref<4x8x16xf32, #tpu.memory_space<vmem>>, vector<1x8x16xf32>,
    %553 = vector.extract_strided_slice %514 {offsets = [0, 160], sizes = [8, 16], strides = [1, 1]} : vector<8x192xf32> to vector<8x16xf32>
    %c2_286 = arith.constant 2 : index
    %c0_287 = arith.constant 0 : index
    %c0_288 = arith.constant 0 : index
    %554 = vector.load %arg22[%c2_286, %c0_287, %c0_288] : memref<4x8x16xf32, #tpu.memory_space<vmem>>, vector<1x8x16xf32>
    %555 = vector.shape_cast %554 : vector<1x8x16xf32> to vector<8x16xf32>
    %556 = vector.shape_cast %553 : vector<8x16xf32> to vector<1x8x16xf32>
    tpu.vector_store %arg22[%c2_286, %c0_287, %c0_288], %556 {strides = array<i32>} : memref<4x8x16xf32, #tpu.memory_space<vmem>>, vector<1x8x16xf32>,
    %557 = vector.extract_strided_slice %514 {offsets = [0, 48], sizes = [8, 16], strides = [1, 1]} : vector<8x192xf32> to vector<8x16xf32>
    %cst_289 = arith.constant 2.500000e-01 : f32
    %558 = vector.broadcast %cst_289 : f32 to vector<8x16xf32>
    %559 = arith.mulf %557, %558 : vector<8x16xf32>
    %c3_290 = arith.constant 3 : index
    %c0_291 = arith.constant 0 : index
    %c0_292 = arith.constant 0 : index
    %560 = vector.load %arg20[%c3_290, %c0_291, %c0_292] : memref<4x8x16xf32, #tpu.memory_space<vmem>>, vector<1x8x16xf32>
    %561 = vector.shape_cast %560 : vector<1x8x16xf32> to vector<8x16xf32>
    %562 = vector.shape_cast %559 : vector<8x16xf32> to vector<1x8x16xf32>
    tpu.vector_store %arg20[%c3_290, %c0_291, %c0_292], %562 {strides = array<i32>} : memref<4x8x16xf32, #tpu.memory_space<vmem>>, vector<1x8x16xf32>,
    %563 = vector.extract_strided_slice %514 {offsets = [0, 112], sizes = [8, 16], strides = [1, 1]} : vector<8x192xf32> to vector<8x16xf32>
    %c3_293 = arith.constant 3 : index
    %c0_294 = arith.constant 0 : index
    %c0_295 = arith.constant 0 : index
    %564 = vector.load %arg21[%c3_293, %c0_294, %c0_295] : memref<4x8x16xf32, #tpu.memory_space<vmem>>, vector<1x8x16xf32>
    %565 = vector.shape_cast %564 : vector<1x8x16xf32> to vector<8x16xf32>
    %566 = vector.shape_cast %563 : vector<8x16xf32> to vector<1x8x16xf32>
    tpu.vector_store %arg21[%c3_293, %c0_294, %c0_295], %566 {strides = array<i32>} : memref<4x8x16xf32, #tpu.memory_space<vmem>>, vector<1x8x16xf32>,
    %567 = vector.extract_strided_slice %514 {offsets = [0, 176], sizes = [8, 16], strides = [1, 1]} : vector<8x192xf32> to vector<8x16xf32>
    %c3_296 = arith.constant 3 : index
    %c0_297 = arith.constant 0 : index
    %c0_298 = arith.constant 0 : index
    %568 = vector.load %arg22[%c3_296, %c0_297, %c0_298] : memref<4x8x16xf32, #tpu.memory_space<vmem>>, vector<1x8x16xf32>
    %569 = vector.shape_cast %568 : vector<1x8x16xf32> to vector<8x16xf32>
    %570 = vector.shape_cast %567 : vector<8x16xf32> to vector<1x8x16xf32>
    tpu.vector_store %arg22[%c3_296, %c0_297, %c0_298], %570 {strides = array<i32>} : memref<4x8x16xf32, #tpu.memory_space<vmem>>, vector<1x8x16xf32>,
    %c0_299 = arith.constant 0 : index
    %c0_300 = arith.constant 0 : index
    %c0_301 = arith.constant 0 : index
    %571 = vector.load %arg20[%c0_299, %c0_300, %c0_301] : memref<4x8x16xf32, #tpu.memory_space<vmem>>, vector<4x8x16xf32>
    %c0_302 = arith.constant 0 : index
    %c0_303 = arith.constant 0 : index
    %c0_304 = arith.constant 0 : index
    %572 = vector.load %arg21[%c0_302, %c0_303, %c0_304] : memref<4x8x16xf32, #tpu.memory_space<vmem>>, vector<4x8x16xf32>
    "tpu.trace_start"() <{level = 10 : i32, message = "htd,hsd->hts"}> : () -> ()
    %cst_305 = arith.constant dense<0.000000e+00> : vector<4x8x8xf32>
    %573 = tpu.matmul %571, %572, %cst_305 {dimension_numbers = #tpu.dot_dimension_numbers<[2], [2], [1], [1], [0, 0, 0, 1, 1, 1], [0], [0]>} : vector<4x8x16xf32>, vector<4x8x16xf32>, vector<4x8x8xf32> -> vector<4x8x8xf32>
    "tpu.trace_stop"() : () -> ()
    %cst_306 = arith.constant dense<0xFF800000> : vector<4x8xf32>
    %574 = vector.multi_reduction <maximumf>, %573, %cst_306 [2] : vector<4x8x8xf32> to vector<4x8xf32>
    %575 = vector.shape_cast %574 : vector<4x8xf32> to vector<4x8x1xf32>
    %576 = vector.broadcast %575 : vector<4x8x1xf32> to vector<4x8x8xf32>
    %577 = arith.subf %573, %576 : vector<4x8x8xf32>
    %578 = math.exp %577 : vector<4x8x8xf32>
    %cst_307 = arith.constant dense<0.000000e+00> : vector<4x8xf32>
    %579 = vector.multi_reduction <add>, %578, %cst_307 [2] : vector<4x8x8xf32> to vector<4x8xf32>
    %580 = vector.shape_cast %579 : vector<4x8xf32> to vector<4x8x1xf32>
    %581 = vector.broadcast %580 : vector<4x8x1xf32> to vector<4x8x8xf32>
    %582 = arith.divf %578, %581 : vector<4x8x8xf32>
    %c0_308 = arith.constant 0 : index
    %c0_309 = arith.constant 0 : index
    %c0_310 = arith.constant 0 : index
    %583 = vector.load %arg22[%c0_308, %c0_309, %c0_310] : memref<4x8x16xf32, #tpu.memory_space<vmem>>, vector<4x8x16xf32>
    "tpu.trace_start"() <{level = 10 : i32, message = "hts,hsd->htd"}> : () -> ()
    %cst_311 = arith.constant dense<0.000000e+00> : vector<4x8x16xf32>
    %584 = tpu.matmul %582, %583, %cst_311 {dimension_numbers = #tpu.dot_dimension_numbers<[2], [1], [1], [2], [0, 0, 0, 1, 1, 2], [0], [0]>} : vector<4x8x8xf32>, vector<4x8x16xf32>, vector<4x8x16xf32> -> vector<4x8x16xf32>
    "tpu.trace_stop"() : () -> ()
    %585 = vector.extract_strided_slice %584 {offsets = [0, 0, 0], sizes = [1, 8, 16], strides = [1, 1, 1]} : vector<4x8x16xf32> to vector<1x8x16xf32>
    %586 = vector.shape_cast %585 : vector<1x8x16xf32> to vector<8x16xf32>
    %c0_312 = arith.constant 0 : index
    %c0_313 = arith.constant 0 : index
    %587 = vector.load %arg23[%c0_312, %c0_313] : memref<8x64xf32, #tpu.memory_space<vmem>>, vector<8x16xf32>
    tpu.vector_store %arg23[%c0_312, %c0_313], %586 {strides = array<i32>} : memref<8x64xf32, #tpu.memory_space<vmem>>, vector<8x16xf32>,
    %588 = vector.extract_strided_slice %584 {offsets = [1, 0, 0], sizes = [1, 8, 16], strides = [1, 1, 1]} : vector<4x8x16xf32> to vector<1x8x16xf32>
    %589 = vector.shape_cast %588 : vector<1x8x16xf32> to vector<8x16xf32>
    %c0_314 = arith.constant 0 : index
    %c16_315 = arith.constant 16 : index
    %590 = vector.load %arg23[%c0_314, %c16_315] : memref<8x64xf32, #tpu.memory_space<vmem>>, vector<8x16xf32>
    tpu.vector_store %arg23[%c0_314, %c16_315], %589 {strides = array<i32>} : memref<8x64xf32, #tpu.memory_space<vmem>>, vector<8x16xf32>,
    %591 = vector.extract_strided_slice %584 {offsets = [2, 0, 0], sizes = [1, 8, 16], strides = [1, 1, 1]} : vector<4x8x16xf32> to vector<1x8x16xf32>
    %592 = vector.shape_cast %591 : vector<1x8x16xf32> to vector<8x16xf32>
    %c0_316 = arith.constant 0 : index
    %c32_317 = arith.constant 32 : index
    %593 = vector.load %arg23[%c0_316, %c32_317] : memref<8x64xf32, #tpu.memory_space<vmem>>, vector<8x16xf32>
    tpu.vector_store %arg23[%c0_316, %c32_317], %592 {strides = array<i32>} : memref<8x64xf32, #tpu.memory_space<vmem>>, vector<8x16xf32>,
    %594 = vector.extract_strided_slice %584 {offsets = [3, 0, 0], sizes = [1, 8, 16], strides = [1, 1, 1]} : vector<4x8x16xf32> to vector<1x8x16xf32>
    %595 = vector.shape_cast %594 : vector<1x8x16xf32> to vector<8x16xf32>
    %c0_318 = arith.constant 0 : index
    %c48_319 = arith.constant 48 : index
    %596 = vector.load %arg23[%c0_318, %c48_319] : memref<8x64xf32, #tpu.memory_space<vmem>>, vector<8x16xf32>
    tpu.vector_store %arg23[%c0_318, %c48_319], %595 {strides = array<i32>} : memref<8x64xf32, #tpu.memory_space<vmem>>, vector<8x16xf32>,
    %c0_320 = arith.constant 0 : index
    %c0_321 = arith.constant 0 : index
    %597 = vector.load %arg23[%c0_320, %c0_321] : memref<8x64xf32, #tpu.memory_space<vmem>>, vector<8x64xf32>
    %c1_322 = arith.constant 1 : index
    %c0_323 = arith.constant 0 : index
    %c0_324 = arith.constant 0 : index
    %598 = vector.load %arg9[%c1_322, %c0_323, %c0_324] : memref<2x64x64xf32, #tpu.memory_space<vmem>>, vector<1x64x64xf32>
    %599 = vector.shape_cast %598 : vector<1x64x64xf32> to vector<64x64xf32>
    %cst_325 = arith.constant dense<0.000000e+00> : vector<8x64xf32>
    %600 = tpu.matmul %597, %599, %cst_325 {dimension_numbers = #tpu.dot_dimension_numbers<[1], [0], [0], [1], [0, 0, 1, 1], [], []>} : vector<8x64xf32>, vector<64x64xf32>, vector<8x64xf32> -> vector<8x64xf32>
    %c1_326 = arith.constant 1 : index
    %c0_327 = arith.constant 0 : index
    %c0_328 = arith.constant 0 : index
    %601 = vector.load %arg10[%c1_326, %c0_327, %c0_328] : memref<2x1x64xf32, #tpu.memory_space<vmem>>, vector<1x1x64xf32>
    %602 = vector.shape_cast %601 : vector<1x1x64xf32> to vector<1x64xf32>
    %603 = vector.broadcast %602 : vector<1x64xf32> to vector<8x64xf32>
    %604 = arith.addf %600, %603 : vector<8x64xf32>
    %605 = arith.addf %507, %604 : vector<8x64xf32>
    %c1_329 = arith.constant 1 : index
    %c0_330 = arith.constant 0 : index
    %c0_331 = arith.constant 0 : index
    %606 = vector.load %arg11[%c1_329, %c0_330, %c0_331] : memref<2x1x64xf32, #tpu.memory_space<vmem>>, vector<1x1x64xf32>
    %607 = vector.shape_cast %606 : vector<1x1x64xf32> to vector<1x64xf32>
    %c1_332 = arith.constant 1 : index
    %c0_333 = arith.constant 0 : index
    %c0_334 = arith.constant 0 : index
    %608 = vector.load %arg12[%c1_332, %c0_333, %c0_334] : memref<2x1x64xf32, #tpu.memory_space<vmem>>, vector<1x1x64xf32>
    %609 = vector.shape_cast %608 : vector<1x1x64xf32> to vector<1x64xf32>
    %cst_335 = arith.constant dense<0.000000e+00> : vector<8xf32>
    %610 = vector.multi_reduction <add>, %605, %cst_335 [1] : vector<8x64xf32> to vector<8xf32>
    %611 = vector.shape_cast %610 : vector<8xf32> to vector<8x1xf32>
    %cst_336 = arith.constant 6.400000e+01 : f32
    %612 = vector.broadcast %cst_336 : f32 to vector<8x1xf32>
    %613 = arith.divf %611, %612 : vector<8x1xf32>
    %614 = vector.broadcast %613 : vector<8x1xf32> to vector<8x64xf32>
    %615 = arith.subf %605, %614 : vector<8x64xf32>
    %616 = arith.mulf %615, %615 : vector<8x64xf32>
    %cst_337 = arith.constant dense<0.000000e+00> : vector<8xf32>
    %617 = vector.multi_reduction <add>, %616, %cst_337 [1] : vector<8x64xf32> to vector<8xf32>
    %618 = vector.shape_cast %617 : vector<8xf32> to vector<8x1xf32>
    %cst_338 = arith.constant 6.400000e+01 : f32
    %619 = vector.broadcast %cst_338 : f32 to vector<8x1xf32>
    %620 = arith.divf %618, %619 : vector<8x1xf32>
    %621 = vector.broadcast %613 : vector<8x1xf32> to vector<8x64xf32>
    %622 = arith.subf %605, %621 : vector<8x64xf32>
    %cst_339 = arith.constant 9.99999974E-6 : f32
    %623 = vector.broadcast %cst_339 : f32 to vector<8x1xf32>
    %624 = arith.addf %620, %623 : vector<8x1xf32>
    %625 = math.rsqrt %624 : vector<8x1xf32>
    %626 = vector.broadcast %625 : vector<8x1xf32> to vector<8x64xf32>
    %627 = arith.mulf %622, %626 : vector<8x64xf32>
    %628 = vector.broadcast %607 : vector<1x64xf32> to vector<8x64xf32>
    %629 = arith.mulf %627, %628 : vector<8x64xf32>
    %630 = vector.broadcast %609 : vector<1x64xf32> to vector<8x64xf32>
    %631 = arith.addf %629, %630 : vector<8x64xf32>
    %c1_340 = arith.constant 1 : index
    %c0_341 = arith.constant 0 : index
    %c0_342 = arith.constant 0 : index
    %632 = vector.load %arg13[%c1_340, %c0_341, %c0_342] : memref<2x64x128xf32, #tpu.memory_space<vmem>>, vector<1x64x128xf32>
    %633 = vector.shape_cast %632 : vector<1x64x128xf32> to vector<64x128xf32>
    %cst_343 = arith.constant dense<0.000000e+00> : vector<8x128xf32>
    %634 = tpu.matmul %631, %633, %cst_343 {dimension_numbers = #tpu.dot_dimension_numbers<[1], [0], [0], [1], [0, 0, 1, 1], [], []>} : vector<8x64xf32>, vector<64x128xf32>, vector<8x128xf32> -> vector<8x128xf32>
    %c1_344 = arith.constant 1 : index
    %c0_345 = arith.constant 0 : index
    %c0_346 = arith.constant 0 : index
    %635 = vector.load %arg14[%c1_344, %c0_345, %c0_346] : memref<2x1x128xf32, #tpu.memory_space<vmem>>, vector<1x1x128xf32>
    %636 = vector.shape_cast %635 : vector<1x1x128xf32> to vector<1x128xf32>
    %637 = vector.broadcast %636 : vector<1x128xf32> to vector<8x128xf32>
    %638 = arith.addf %634, %637 : vector<8x128xf32>
    %639 = arith.mulf %638, %638 : vector<8x128xf32>
    %640 = arith.mulf %638, %639 : vector<8x128xf32>
    %cst_347 = arith.constant 4.471500e-02 : f32
    %641 = vector.broadcast %cst_347 : f32 to vector<8x128xf32>
    %642 = arith.mulf %641, %640 : vector<8x128xf32>
    %643 = arith.addf %638, %642 : vector<8x128xf32>
    %cst_348 = arith.constant 0.797884583 : f32
    %644 = vector.broadcast %cst_348 : f32 to vector<8x128xf32>
    %645 = arith.mulf %644, %643 : vector<8x128xf32>
    %646 = math.tanh %645 : vector<8x128xf32>
    %cst_349 = arith.constant 1.000000e+00 : f32
    %647 = vector.broadcast %cst_349 : f32 to vector<8x128xf32>
    %648 = arith.addf %647, %646 : vector<8x128xf32>
    %cst_350 = arith.constant 5.000000e-01 : f32
    %649 = vector.broadcast %cst_350 : f32 to vector<8x128xf32>
    %650 = arith.mulf %649, %648 : vector<8x128xf32>
    %651 = arith.mulf %638, %650 : vector<8x128xf32>
    %c1_351 = arith.constant 1 : index
    %c0_352 = arith.constant 0 : index
    %c0_353 = arith.constant 0 : index
    %652 = vector.load %arg15[%c1_351, %c0_352, %c0_353] : memref<2x128x64xf32, #tpu.memory_space<vmem>>, vector<1x128x64xf32>
    %653 = vector.shape_cast %652 : vector<1x128x64xf32> to vector<128x64xf32>
    %cst_354 = arith.constant dense<0.000000e+00> : vector<8x64xf32>
    %654 = tpu.matmul %651, %653, %cst_354 {dimension_numbers = #tpu.dot_dimension_numbers<[1], [0], [0], [1], [0, 0, 1, 1], [], []>} : vector<8x128xf32>, vector<128x64xf32>, vector<8x64xf32> -> vector<8x64xf32>
    %c1_355 = arith.constant 1 : index
    %c0_356 = arith.constant 0 : index
    %c0_357 = arith.constant 0 : index
    %655 = vector.load %arg16[%c1_355, %c0_356, %c0_357] : memref<2x1x64xf32, #tpu.memory_space<vmem>>, vector<1x1x64xf32>
    %656 = vector.shape_cast %655 : vector<1x1x64xf32> to vector<1x64xf32>
    %657 = vector.broadcast %656 : vector<1x64xf32> to vector<8x64xf32>
    %658 = arith.addf %654, %657 : vector<8x64xf32>
    %659 = arith.addf %631, %658 : vector<8x64xf32>
    %c1_358 = arith.constant 1 : index
    %c0_359 = arith.constant 0 : index
    %c0_360 = arith.constant 0 : index
    %660 = vector.load %arg17[%c1_358, %c0_359, %c0_360] : memref<2x1x64xf32, #tpu.memory_space<vmem>>, vector<1x1x64xf32>
    %661 = vector.shape_cast %660 : vector<1x1x64xf32> to vector<1x64xf32>
    %c1_361 = arith.constant 1 : index
    %c0_362 = arith.constant 0 : index
    %c0_363 = arith.constant 0 : index
    %662 = vector.load %arg18[%c1_361, %c0_362, %c0_363] : memref<2x1x64xf32, #tpu.memory_space<vmem>>, vector<1x1x64xf32>
    %663 = vector.shape_cast %662 : vector<1x1x64xf32> to vector<1x64xf32>
    %cst_364 = arith.constant dense<0.000000e+00> : vector<8xf32>
    %664 = vector.multi_reduction <add>, %659, %cst_364 [1] : vector<8x64xf32> to vector<8xf32>
    %665 = vector.shape_cast %664 : vector<8xf32> to vector<8x1xf32>
    %cst_365 = arith.constant 6.400000e+01 : f32
    %666 = vector.broadcast %cst_365 : f32 to vector<8x1xf32>
    %667 = arith.divf %665, %666 : vector<8x1xf32>
    %668 = vector.broadcast %667 : vector<8x1xf32> to vector<8x64xf32>
    %669 = arith.subf %659, %668 : vector<8x64xf32>
    %670 = arith.mulf %669, %669 : vector<8x64xf32>
    %cst_366 = arith.constant dense<0.000000e+00> : vector<8xf32>
    %671 = vector.multi_reduction <add>, %670, %cst_366 [1] : vector<8x64xf32> to vector<8xf32>
    %672 = vector.shape_cast %671 : vector<8xf32> to vector<8x1xf32>
    %cst_367 = arith.constant 6.400000e+01 : f32
    %673 = vector.broadcast %cst_367 : f32 to vector<8x1xf32>
    %674 = arith.divf %672, %673 : vector<8x1xf32>
    %675 = vector.broadcast %667 : vector<8x1xf32> to vector<8x64xf32>
    %676 = arith.subf %659, %675 : vector<8x64xf32>
    %cst_368 = arith.constant 9.99999974E-6 : f32
    %677 = vector.broadcast %cst_368 : f32 to vector<8x1xf32>
    %678 = arith.addf %674, %677 : vector<8x1xf32>
    %679 = math.rsqrt %678 : vector<8x1xf32>
    %680 = vector.broadcast %679 : vector<8x1xf32> to vector<8x64xf32>
    %681 = arith.mulf %676, %680 : vector<8x64xf32>
    %682 = vector.broadcast %661 : vector<1x64xf32> to vector<8x64xf32>
    %683 = arith.mulf %681, %682 : vector<8x64xf32>
    %684 = vector.broadcast %663 : vector<1x64xf32> to vector<8x64xf32>
    %685 = arith.addf %683, %684 : vector<8x64xf32>
    %c0_369 = arith.constant 0 : index
    %c0_370 = arith.constant 0 : index
    %c0_371 = arith.constant 0 : index
    %686 = vector.load %arg19[%c0_369, %c0_370, %c0_371] : memref<1x8x64xf32, #tpu.memory_space<vmem>>, vector<1x8x64xf32>
    %687 = vector.shape_cast %686 : vector<1x8x64xf32> to vector<8x64xf32>
    %688 = vector.shape_cast %685 : vector<8x64xf32> to vector<1x8x64xf32>
    tpu.vector_store %arg19[%c0_369, %c0_370, %c0_371], %688 {strides = array<i32>} : memref<1x8x64xf32, #tpu.memory_space<vmem>>, vector<1x8x64xf32>,
    return
  }
  func.func @transform_0(%arg0: i32) -> (i32, i32, i32) {
    %c0_i32 = arith.constant 0 : i32
    %c0_i32_0 = arith.constant 0 : i32
    %c0_i32_1 = arith.constant 0 : i32
    return %arg0, %c0_i32, %c0_i32_0 : i32, i32, i32
  }
  func.func @transform_1(%arg0: i32) -> (i32, i32, i32) {
    %c0_i32 = arith.constant 0 : i32
    %c0_i32_0 = arith.constant 0 : i32
    %c0_i32_1 = arith.constant 0 : i32
    %c0_i32_2 = arith.constant 0 : i32
    return %c0_i32, %c0_i32_0, %c0_i32_1 : i32, i32, i32
  }
  func.func @transform_2(%arg0: i32) -> (i32, i32, i32) {
    %c0_i32 = arith.constant 0 : i32
    %c0_i32_0 = arith.constant 0 : i32
    %c0_i32_1 = arith.constant 0 : i32
    %c0_i32_2 = arith.constant 0 : i32
    return %c0_i32, %c0_i32_0, %c0_i32_1 : i32, i32, i32
  }
  func.func @transform_3(%arg0: i32) -> (i32, i32, i32) {
    %c0_i32 = arith.constant 0 : i32
    %c0_i32_0 = arith.constant 0 : i32
    %c0_i32_1 = arith.constant 0 : i32
    %c0_i32_2 = arith.constant 0 : i32
    return %c0_i32, %c0_i32_0, %c0_i32_1 : i32, i32, i32
  }
  func.func @transform_4(%arg0: i32) -> (i32, i32) {
    %c0_i32 = arith.constant 0 : i32
    %c0_i32_0 = arith.constant 0 : i32
    %c0_i32_1 = arith.constant 0 : i32
    return %c0_i32, %c0_i32_0 : i32, i32
  }
  func.func @transform_5(%arg0: i32) -> (i32, i32) {
    %c0_i32 = arith.constant 0 : i32
    %c0_i32_0 = arith.constant 0 : i32
    %c0_i32_1 = arith.constant 0 : i32
    return %c0_i32, %c0_i32_0 : i32, i32
  }
  func.func @transform_6(%arg0: i32) -> (i32, i32, i32) {
    %c0_i32 = arith.constant 0 : i32
    %c0_i32_0 = arith.constant 0 : i32
    %c0_i32_1 = arith.constant 0 : i32
    %c0_i32_2 = arith.constant 0 : i32
    return %c0_i32, %c0_i32_0, %c0_i32_1 : i32, i32, i32
  }
  func.func @transform_7(%arg0: i32) -> (i32, i32, i32) {
    %c0_i32 = arith.constant 0 : i32
    %c0_i32_0 = arith.constant 0 : i32
    %c0_i32_1 = arith.constant 0 : i32
    %c0_i32_2 = arith.constant 0 : i32
    return %c0_i32, %c0_i32_0, %c0_i32_1 : i32, i32, i32
  }
  func.func @transform_8(%arg0: i32) -> (i32, i32, i32) {
    %c0_i32 = arith.constant 0 : i32
    %c0_i32_0 = arith.constant 0 : i32
    %c0_i32_1 = arith.constant 0 : i32
    %c0_i32_2 = arith.constant 0 : i32
    return %c0_i32, %c0_i32_0, %c0_i32_1 : i32, i32, i32
  }
  func.func @transform_9(%arg0: i32) -> (i32, i32, i32) {
    %c0_i32 = arith.constant 0 : i32
    %c0_i32_0 = arith.constant 0 : i32
    %c0_i32_1 = arith.constant 0 : i32
    %c0_i32_2 = arith.constant 0 : i32
    return %c0_i32, %c0_i32_0, %c0_i32_1 : i32, i32, i32
  }
  func.func @transform_10(%arg0: i32) -> (i32, i32, i32) {
    %c0_i32 = arith.constant 0 : i32
    %c0_i32_0 = arith.constant 0 : i32
    %c0_i32_1 = arith.constant 0 : i32
    %c0_i32_2 = arith.constant 0 : i32
    return %c0_i32, %c0_i32_0, %c0_i32_1 : i32, i32, i32
  }
  func.func @transform_11(%arg0: i32) -> (i32, i32, i32) {
    %c0_i32 = arith.constant 0 : i32
    %c0_i32_0 = arith.constant 0 : i32
    %c0_i32_1 = arith.constant 0 : i32
    %c0_i32_2 = arith.constant 0 : i32
    return %c0_i32, %c0_i32_0, %c0_i32_1 : i32, i32, i32
  }
  func.func @transform_12(%arg0: i32) -> (i32, i32, i32) {
    %c0_i32 = arith.constant 0 : i32
    %c0_i32_0 = arith.constant 0 : i32
    %c0_i32_1 = arith.constant 0 : i32
    %c0_i32_2 = arith.constant 0 : i32
    return %c0_i32, %c0_i32_0, %c0_i32_1 : i32, i32, i32
  }
  func.func @transform_13(%arg0: i32) -> (i32, i32, i32) {
    %c0_i32 = arith.constant 0 : i32
    %c0_i32_0 = arith.constant 0 : i32
    %c0_i32_1 = arith.constant 0 : i32
    %c0_i32_2 = arith.constant 0 : i32
    return %c0_i32, %c0_i32_0, %c0_i32_1 : i32, i32, i32
  }
  func.func @transform_14(%arg0: i32) -> (i32, i32, i32) {
    %c0_i32 = arith.constant 0 : i32
    %c0_i32_0 = arith.constant 0 : i32
    %c0_i32_1 = arith.constant 0 : i32
    %c0_i32_2 = arith.constant 0 : i32
    return %c0_i32, %c0_i32_0, %c0_i32_1 : i32, i32, i32
  }
  func.func @transform_15(%arg0: i32) -> (i32, i32, i32) {
    %c0_i32 = arith.constant 0 : i32
    %c0_i32_0 = arith.constant 0 : i32
    %c0_i32_1 = arith.constant 0 : i32
    %c0_i32_2 = arith.constant 0 : i32
    return %c0_i32, %c0_i32_0, %c0_i32_1 : i32, i32, i32
  }
  func.func @transform_16(%arg0: i32) -> (i32, i32, i32) {
    %c0_i32 = arith.constant 0 : i32
    %c0_i32_0 = arith.constant 0 : i32
    %c0_i32_1 = arith.constant 0 : i32
    %c0_i32_2 = arith.constant 0 : i32
    return %c0_i32, %c0_i32_0, %c0_i32_1 : i32, i32, i32
  }
  func.func @transform_17(%arg0: i32) -> (i32, i32, i32) {
    %c0_i32 = arith.constant 0 : i32
    %c0_i32_0 = arith.constant 0 : i32
    %c0_i32_1 = arith.constant 0 : i32
    %c0_i32_2 = arith.constant 0 : i32
    return %c0_i32, %c0_i32_0, %c0_i32_1 : i32, i32, i32
  }
  func.func @transform_18(%arg0: i32) -> (i32, i32, i32) {
    %c0_i32 = arith.constant 0 : i32
    %c0_i32_0 = arith.constant 0 : i32
    %c0_i32_1 = arith.constant 0 : i32
    return %arg0, %c0_i32, %c0_i32_0 : i32, i32, i32
  }
}

</mosaic_0001>

<llo_original>
// kernel: _lambda_.1
$region0: #{_lambda_.1}
  #allocation0 [shape = 'u32[]', space=smem, size = 0x4, offset = 0x4, fixed_abs, tag = 'smem constant byte address 0x4 - core index']
  #allocation1 [shape = 'u32[72,128]{1,0:T(1,128)}', space=vmem, size = 0x9000, scoped, tag = 'internal scratch']
  #allocation2 [shape = 'f32[4,8,16]{2,1,0:T(8,128)}', space=vmem, size = 0x4000, scoped, tag = 'scratch operand']
  #allocation3 [shape = 'f32[4,8,16]{2,1,0:T(8,128)}', space=vmem, size = 0x4000, scoped, tag = 'scratch operand']
  #allocation4 [shape = 'f32[4,8,16]{2,1,0:T(8,128)}', space=vmem, size = 0x4000, scoped, tag = 'scratch operand']
  #allocation5 [shape = 'f32[8,64]{1,0:T(8,128)}', space=vmem, size = 0x1000, scoped, tag = 'scratch operand']
  %s0 = inlined_call_operand.vmem [shape: f32[2,64,16], index: 0, kind: input, shape index: {}]
  %s1 = inlined_call_operand.vmem [shape: f32[5,16,64], index: 1, kind: input, shape index: {}]
  %s2 = inlined_call_operand.vmem [shape: f32[10,64,64], index: 2, kind: input, shape index: {}]
  %s3 = inlined_call_operand.vmem [shape: f32[3,3,64], index: 3, kind: input, shape index: {}]
  %s4 = inlined_call_operand.vmem [shape: f32[64,64], index: 4, kind: input, shape index: {}]
  %s5 = inlined_call_operand.vmem [shape: f32[1,64], index: 5, kind: input, shape index: {}]
  %s6 = inlined_call_operand.vmem [shape: f32[2,64,192], index: 6, kind: input, shape index: {}]
  %s7 = inlined_call_operand.vmem [shape: f32[2,1,192], index: 7, kind: input, shape index: {}]
  %s8 = inlined_call_operand.vmem [shape: f32[2,64,64], index: 8, kind: input, shape index: {}]
  %s9 = inlined_call_operand.vmem [shape: f32[2,1,64], index: 9, kind: input, shape index: {}]
  %s10 = inlined_call_operand.vmem [shape: f32[2,1,64], index: 10, kind: input, shape index: {}]
  %s11 = inlined_call_operand.vmem [shape: f32[2,1,64], index: 11, kind: input, shape index: {}]
  %s12 = inlined_call_operand.vmem [shape: f32[2,64,128], index: 12, kind: input, shape index: {}]
  %s13 = inlined_call_operand.vmem [shape: f32[2,1,128], index: 13, kind: input, shape index: {}]
  %s14 = inlined_call_operand.vmem [shape: f32[2,128,64], index: 14, kind: input, shape index: {}]
  %s15 = inlined_call_operand.vmem [shape: f32[2,1,64], index: 15, kind: input, shape index: {}]
  %s16 = inlined_call_operand.vmem [shape: f32[2,1,64], index: 16, kind: input, shape index: {}]
  %s17 = inlined_call_operand.vmem [shape: f32[2,1,64], index: 17, kind: input, shape index: {}]
  %s18 = inlined_call_operand.hbm [shape: f32[2,8,64], index: 18, kind: output, shape index: {}]
  %s19 = sld [smem:[#allocation0]]
  $region105: #{_lambda_.1} parent=0
    _
  %s21 = ssub.s32 1, %s19
  %s22 = scalar_select 0, %s21, %s19
  $region1: #{_lambda_.1} parent=0
    #allocation6 [shape = 'u8[8192]{0}', space=vmem, size = 0x2000, scoped, tag = 'output window, operand 0']
    #allocation7 [shape = 's32[2]{0}', space=sflag, size = 0x8, scoped, tag = 'scoped memory for _lambda_.1']
    %23 = vsyncpa [#allocation7], 0
    %s24 = scalar_lea.sflag [#allocation7], 1
    %25 = vsyncpa %s24, 0
    loop: start=0, step=1, limit=4
    $region2: #{_lambda_.1} parent=1 // loop_pre_header
      _
    $region3: #{_lambda_.1} parent=1 // loop_header
      %s27 = sphi 0, %s31
      %p28 = scmp.ge.s32.totalorder %s27, 4
      %s37 = sphi 0, %s39
      %s40 = sphi 0, %s37
      %s41 = sphi 0, %s40
      %s57 = sphi 0, %s41
      %s61 = sphi 0, %s61
      %s63 = sphi 0, %s61
      %s64 = sphi 0, %s63
      %s78 = sphi 0, %s64
      %s82 = sphi 0, %s82
      %s84 = sphi 0, %s82
      %s85 = sphi 0, %s84
      %s99 = sphi 0, %s85
      %s103 = sphi 0, %s103
      %s105 = sphi 0, %s103
      %s106 = sphi 0, %s105
      %s120 = sphi 0, %s106
      %s124 = sphi 0, %s124
      %s126 = sphi 0, %s124
      %s127 = sphi 0, %s126
      %s141 = sphi 0, %s127
      %s145 = sphi 0, %s145
      %s147 = sphi 0, %s145
      %s148 = sphi 0, %s147
      %s162 = sphi 0, %s148
      %s166 = sphi 0, %s166
      %s168 = sphi 0, %s166
      %s169 = sphi 0, %s168
      %s183 = sphi 0, %s169
      %s187 = sphi 0, %s187
      %s189 = sphi 0, %s187
      %s190 = sphi 0, %s189
      %s204 = sphi 0, %s190
      %s208 = sphi 0, %s208
      %s210 = sphi 0, %s208
      %s211 = sphi 0, %s210
      %s225 = sphi 0, %s211
      %s229 = sphi 0, %s229
      %s231 = sphi 0, %s229
      %s232 = sphi 0, %s231
      %s246 = sphi 0, %s232
      %s250 = sphi 0, %s250
      %s252 = sphi 0, %s250
      %s253 = sphi 0, %s252
      %s267 = sphi 0, %s253
      %s271 = sphi 0, %s271
      %s273 = sphi 0, %s271
      %s274 = sphi 0, %s273
      %s288 = sphi 0, %s274
      %s292 = sphi 0, %s292
      %s294 = sphi 0, %s292
      %s295 = sphi 0, %s294
      %s309 = sphi 0, %s295
      %s313 = sphi 0, %s313
      %s315 = sphi 0, %s313
      %s316 = sphi 0, %s315
      %s330 = sphi 0, %s316
      %s334 = sphi 0, %s334
      %s336 = sphi 0, %s334
      %s337 = sphi 0, %s336
      %s351 = sphi 0, %s337
      %s355 = sphi 0, %s355
      %s357 = sphi 0, %s355
      %s358 = sphi 0, %s357
      %s372 = sphi 0, %s358
      %s376 = sphi 0, %s376
      %s378 = sphi 0, %s376
      %s379 = sphi 0, %s378
      %s393 = sphi 0, %s379
      %s397 = sphi 0, %s397
      %s399 = sphi 0, %s397
      %s400 = sphi 0, %s399
      %s414 = sphi 0, %s400
      %s420 = sphi 0, %s422
      %s423 = sphi 0, %s420
      %s424 = sphi 0, %s423
      %s440 = sphi 0, %s424
    $region4: #{_lambda_.1} parent=1 // loop_header_branch
      %30 = sbr.rel (%p28) target = $region8
    $region5: #{_lambda_.1} parent=1 // loop_body
      %s32 = ssub.s32 %s27, 1
      %s33 = ssub.s32 %s27, 2
      %s34 = sadd.s32 %s27, 1
      %s35 = ssub.s32 %s27, %s34
      %p36 = scmp.eq.s32.totalorder %s35, 0
      %s38 = sadd.s32 %s37, 1
      %s39 = scalar_select %p36, %s37, %s38
      %p42 = pneg %p36
      %p43 = scmp.eq.s32.totalorder %s27, 1
      %p44 = por %p42, %p43
      %p45 = scmp.ne.s32.totalorder %s37, %s40
      %p46 = scmp.eq.s32.totalorder %s27, 0
      %p47 = por %p45, %p46
      %p48 = scmp.ne.s32.totalorder %s37, %s40
      %p49 = scmp.eq.s32.totalorder %s32, 1
      %p50 = por %p48, %p49
      %p51 = scmp.ne.s32.totalorder %s40, %s41
      %p52 = scmp.eq.s32.totalorder %s32, 0
      %p53 = por %p51, %p52
      %p54 = scmp.ne.s32.totalorder %s40, %s41
      %p55 = scmp.eq.s32.totalorder %s33, 1
      %p56 = por %p54, %p55
      %p58 = scmp.ne.s32.totalorder %s41, %s57
      %p59 = scmp.eq.s32.totalorder %s33, 0
      %p60 = por %p58, %p59
      %s62 = sadd.s32 %s61, 1
      %p65 = scmp.eq.s32.totalorder %s27, 1
      %p66 = scmp.ne.s32.totalorder %s61, %s63
      %p67 = scmp.eq.s32.totalorder %s27, 0
      %p68 = por %p66, %p67
      %p69 = scmp.ne.s32.totalorder %s61, %s63
      %p70 = scmp.eq.s32.totalorder %s32, 1
      %p71 = por %p69, %p70
      %p72 = scmp.ne.s32.totalorder %s63, %s64
      %p73 = scmp.eq.s32.totalorder %s32, 0
      %p74 = por %p72, %p73
      %p75 = scmp.ne.s32.totalorder %s63, %s64
      %p76 = scmp.eq.s32.totalorder %s33, 1
      %p77 = por %p75, %p76
      %p79 = scmp.ne.s32.totalorder %s64, %s78
      %p80 = scmp.eq.s32.totalorder %s33, 0
      %p81 = por %p79, %p80
      %s83 = sadd.s32 %s82, 1
      %p86 = scmp.eq.s32.totalorder %s27, 1
      %p87 = scmp.ne.s32.totalorder %s82, %s84
      %p88 = scmp.eq.s32.totalorder %s27, 0
      %p89 = por %p87, %p88
      %p90 = scmp.ne.s32.totalorder %s82, %s84
      %p91 = scmp.eq.s32.totalorder %s32, 1
      %p92 = por %p90, %p91
      %p93 = scmp.ne.s32.totalorder %s84, %s85
      %p94 = scmp.eq.s32.totalorder %s32, 0
      %p95 = por %p93, %p94
      %p96 = scmp.ne.s32.totalorder %s84, %s85
      %p97 = scmp.eq.s32.totalorder %s33, 1
      %p98 = por %p96, %p97
      %p100 = scmp.ne.s32.totalorder %s85, %s99
      %p101 = scmp.eq.s32.totalorder %s33, 0
      %p102 = por %p100, %p101
      %s104 = sadd.s32 %s103, 1
      %p107 = scmp.eq.s32.totalorder %s27, 1
      %p108 = scmp.ne.s32.totalorder %s103, %s105
      %p109 = scmp.eq.s32.totalorder %s27, 0
      %p110 = por %p108, %p109
      %p111 = scmp.ne.s32.totalorder %s103, %s105
      %p112 = scmp.eq.s32.totalorder %s32, 1
      %p113 = por %p111, %p112
      %p114 = scmp.ne.s32.totalorder %s105, %s106
      %p115 = scmp.eq.s32.totalorder %s32, 0
      %p116 = por %p114, %p115
      %p117 = scmp.ne.s32.totalorder %s105, %s106
      %p118 = scmp.eq.s32.totalorder %s33, 1
      %p119 = por %p117, %p118
      %p121 = scmp.ne.s32.totalorder %s106, %s120
      %p122 = scmp.eq.s32.totalorder %s33, 0
      %p123 = por %p121, %p122
      %s125 = sadd.s32 %s124, 1
      %p128 = scmp.eq.s32.totalorder %s27, 1
      %p129 = scmp.ne.s32.totalorder %s124, %s126
      %p130 = scmp.eq.s32.totalorder %s27, 0
      %p131 = por %p129, %p130
      %p132 = scmp.ne.s32.totalorder %s124, %s126
      %p133 = scmp.eq.s32.totalorder %s32, 1
      %p134 = por %p132, %p133
      %p135 = scmp.ne.s32.totalorder %s126, %s127
      %p136 = scmp.eq.s32.totalorder %s32, 0
      %p137 = por %p135, %p136
      %p138 = scmp.ne.s32.totalorder %s126, %s127
      %p139 = scmp.eq.s32.totalorder %s33, 1
      %p140 = por %p138, %p139
      %p142 = scmp.ne.s32.totalorder %s127, %s141
      %p143 = scmp.eq.s32.totalorder %s33, 0
      %p144 = por %p142, %p143
      %s146 = sadd.s32 %s145, 1
      %p149 = scmp.eq.s32.totalorder %s27, 1
      %p150 = scmp.ne.s32.totalorder %s145, %s147
      %p151 = scmp.eq.s32.totalorder %s27, 0
      %p152 = por %p150, %p151
      %p153 = scmp.ne.s32.totalorder %s145, %s147
      %p154 = scmp.eq.s32.totalorder %s32, 1
      %p155 = por %p153, %p154
      %p156 = scmp.ne.s32.totalorder %s147, %s148
      %p157 = scmp.eq.s32.totalorder %s32, 0
      %p158 = por %p156, %p157
      %p159 = scmp.ne.s32.totalorder %s147, %s148
      %p160 = scmp.eq.s32.totalorder %s33, 1
      %p161 = por %p159, %p160
      %p163 = scmp.ne.s32.totalorder %s148, %s162
      %p164 = scmp.eq.s32.totalorder %s33, 0
      %p165 = por %p163, %p164
      %s167 = sadd.s32 %s166, 1
      %p170 = scmp.eq.s32.totalorder %s27, 1
      %p171 = scmp.ne.s32.totalorder %s166, %s168
      %p172 = scmp.eq.s32.totalorder %s27, 0
      %p173 = por %p171, %p172
      %p174 = scmp.ne.s32.totalorder %s166, %s168
      %p175 = scmp.eq.s32.totalorder %s32, 1
      %p176 = por %p174, %p175
      %p177 = scmp.ne.s32.totalorder %s168, %s169
      %p178 = scmp.eq.s32.totalorder %s32, 0
      %p179 = por %p177, %p178
      %p180 = scmp.ne.s32.totalorder %s168, %s169
      %p181 = scmp.eq.s32.totalorder %s33, 1
      %p182 = por %p180, %p181
      %p184 = scmp.ne.s32.totalorder %s169, %s183
      %p185 = scmp.eq.s32.totalorder %s33, 0
      %p186 = por %p184, %p185
      %s188 = sadd.s32 %s187, 1
      %p191 = scmp.eq.s32.totalorder %s27, 1
      %p192 = scmp.ne.s32.totalorder %s187, %s189
      %p193 = scmp.eq.s32.totalorder %s27, 0
      %p194 = por %p192, %p193
      %p195 = scmp.ne.s32.totalorder %s187, %s189
      %p196 = scmp.eq.s32.totalorder %s32, 1
      %p197 = por %p195, %p196
      %p198 = scmp.ne.s32.totalorder %s189, %s190
      %p199 = scmp.eq.s32.totalorder %s32, 0
      %p200 = por %p198, %p199
      %p201 = scmp.ne.s32.totalorder %s189, %s190
      %p202 = scmp.eq.s32.totalorder %s33, 1
      %p203 = por %p201, %p202
      %p205 = scmp.ne.s32.totalorder %s190, %s204
      %p206 = scmp.eq.s32.totalorder %s33, 0
      %p207 = por %p205, %p206
      %s209 = sadd.s32 %s208, 1
      %p212 = scmp.eq.s32.totalorder %s27, 1
      %p213 = scmp.ne.s32.totalorder %s208, %s210
      %p214 = scmp.eq.s32.totalorder %s27, 0
      %p215 = por %p213, %p214
      %p216 = scmp.ne.s32.totalorder %s208, %s210
      %p217 = scmp.eq.s32.totalorder %s32, 1
      %p218 = por %p216, %p217
      %p219 = scmp.ne.s32.totalorder %s210, %s211
      %p220 = scmp.eq.s32.totalorder %s32, 0
      %p221 = por %p219, %p220
      %p222 = scmp.ne.s32.totalorder %s210, %s211
      %p223 = scmp.eq.s32.totalorder %s33, 1
      %p224 = por %p222, %p223
      %p226 = scmp.ne.s32.totalorder %s211, %s225
      %p227 = scmp.eq.s32.totalorder %s33, 0
      %p228 = por %p226, %p227
      %s230 = sadd.s32 %s229, 1
      %p233 = scmp.eq.s32.totalorder %s27, 1
      %p234 = scmp.ne.s32.totalorder %s229, %s231
      %p235 = scmp.eq.s32.totalorder %s27, 0
      %p236 = por %p234, %p235
      %p237 = scmp.ne.s32.totalorder %s229, %s231
      %p238 = scmp.eq.s32.totalorder %s32, 1
      %p239 = por %p237, %p238
      %p240 = scmp.ne.s32.totalorder %s231, %s232
      %p241 = scmp.eq.s32.totalorder %s32, 0
      %p242 = por %p240, %p241
      %p243 = scmp.ne.s32.totalorder %s231, %s232
      %p244 = scmp.eq.s32.totalorder %s33, 1
      %p245 = por %p243, %p244
      %p247 = scmp.ne.s32.totalorder %s232, %s246
      %p248 = scmp.eq.s32.totalorder %s33, 0
      %p249 = por %p247, %p248
      %s251 = sadd.s32 %s250, 1
      %p254 = scmp.eq.s32.totalorder %s27, 1
      %p255 = scmp.ne.s32.totalorder %s250, %s252
      %p256 = scmp.eq.s32.totalorder %s27, 0
      %p257 = por %p255, %p256
      %p258 = scmp.ne.s32.totalorder %s250, %s252
      %p259 = scmp.eq.s32.totalorder %s32, 1
      %p260 = por %p258, %p259
      %p261 = scmp.ne.s32.totalorder %s252, %s253
      %p262 = scmp.eq.s32.totalorder %s32, 0
      %p263 = por %p261, %p262
      %p264 = scmp.ne.s32.totalorder %s252, %s253
      %p265 = scmp.eq.s32.totalorder %s33, 1
      %p266 = por %p264, %p265
      %p268 = scmp.ne.s32.totalorder %s253, %s267
      %p269 = scmp.eq.s32.totalorder %s33, 0
      %p270 = por %p268, %p269
      %s272 = sadd.s32 %s271, 1
      %p275 = scmp.eq.s32.totalorder %s27, 1
      %p276 = scmp.ne.s32.totalorder %s271, %s273
      %p277 = scmp.eq.s32.totalorder %s27, 0
      %p278 = por %p276, %p277
      %p279 = scmp.ne.s32.totalorder %s271, %s273
      %p280 = scmp.eq.s32.totalorder %s32, 1
      %p281 = por %p279, %p280
      %p282 = scmp.ne.s32.totalorder %s273, %s274
      %p283 = scmp.eq.s32.totalorder %s32, 0
      %p284 = por %p282, %p283
      %p285 = scmp.ne.s32.totalorder %s273, %s274
      %p286 = scmp.eq.s32.totalorder %s33, 1
      %p287 = por %p285, %p286
      %p289 = scmp.ne.s32.totalorder %s274, %s288
      %p290 = scmp.eq.s32.totalorder %s33, 0
      %p291 = por %p289, %p290
      %s293 = sadd.s32 %s292, 1
      %p296 = scmp.eq.s32.totalorder %s27, 1
      %p297 = scmp.ne.s32.totalorder %s292, %s294
      %p298 = scmp.eq.s32.totalorder %s27, 0
      %p299 = por %p297, %p298
      %p300 = scmp.ne.s32.totalorder %s292, %s294
      %p301 = scmp.eq.s32.totalorder %s32, 1
      %p302 = por %p300, %p301
      %p303 = scmp.ne.s32.totalorder %s294, %s295
      %p304 = scmp.eq.s32.totalorder %s32, 0
      %p305 = por %p303, %p304
      %p306 = scmp.ne.s32.totalorder %s294, %s295
      %p307 = scmp.eq.s32.totalorder %s33, 1
      %p308 = por %p306, %p307
      %p310 = scmp.ne.s32.totalorder %s295, %s309
      %p311 = scmp.eq.s32.totalorder %s33, 0
      %p312 = por %p310, %p311
      %s314 = sadd.s32 %s313, 1
      %p317 = scmp.eq.s32.totalorder %s27, 1
      %p318 = scmp.ne.s32.totalorder %s313, %s315
      %p319 = scmp.eq.s32.totalorder %s27, 0
      %p320 = por %p318, %p319
      %p321 = scmp.ne.s32.totalorder %s313, %s315
      %p322 = scmp.eq.s32.totalorder %s32, 1
      %p323 = por %p321, %p322
      %p324 = scmp.ne.s32.totalorder %s315, %s316
      %p325 = scmp.eq.s32.totalorder %s32, 0
      %p326 = por %p324, %p325
      %p327 = scmp.ne.s32.totalorder %s315, %s316
      %p328 = scmp.eq.s32.totalorder %s33, 1
      %p329 = por %p327, %p328
      %p331 = scmp.ne.s32.totalorder %s316, %s330
      %p332 = scmp.eq.s32.totalorder %s33, 0
      %p333 = por %p331, %p332
      %s335 = sadd.s32 %s334, 1
      %p338 = scmp.eq.s32.totalorder %s27, 1
      %p339 = scmp.ne.s32.totalorder %s334, %s336
      %p340 = scmp.eq.s32.totalorder %s27, 0
      %p341 = por %p339, %p340
      %p342 = scmp.ne.s32.totalorder %s334, %s336
      %p343 = scmp.eq.s32.totalorder %s32, 1
      %p344 = por %p342, %p343
      %p345 = scmp.ne.s32.totalorder %s336, %s337
      %p346 = scmp.eq.s32.totalorder %s32, 0
      %p347 = por %p345, %p346
      %p348 = scmp.ne.s32.totalorder %s336, %s337
      %p349 = scmp.eq.s32.totalorder %s33, 1
      %p350 = por %p348, %p349
      %p352 = scmp.ne.s32.totalorder %s337, %s351
      %p353 = scmp.eq.s32.totalorder %s33, 0
      %p354 = por %p352, %p353
      %s356 = sadd.s32 %s355, 1
      %p359 = scmp.eq.s32.totalorder %s27, 1
      %p360 = scmp.ne.s32.totalorder %s355, %s357
      %p361 = scmp.eq.s32.totalorder %s27, 0
      %p362 = por %p360, %p361
      %p363 = scmp.ne.s32.totalorder %s355, %s357
      %p364 = scmp.eq.s32.totalorder %s32, 1
      %p365 = por %p363, %p364
      %p366 = scmp.ne.s32.totalorder %s357, %s358
      %p367 = scmp.eq.s32.totalorder %s32, 0
      %p368 = por %p366, %p367
      %p369 = scmp.ne.s32.totalorder %s357, %s358
      %p370 = scmp.eq.s32.totalorder %s33, 1
      %p371 = por %p369, %p370
      %p373 = scmp.ne.s32.totalorder %s358, %s372
      %p374 = scmp.eq.s32.totalorder %s33, 0
      %p375 = por %p373, %p374
      %s377 = sadd.s32 %s376, 1
      %p380 = scmp.eq.s32.totalorder %s27, 1
      %p381 = scmp.ne.s32.totalorder %s376, %s378
      %p382 = scmp.eq.s32.totalorder %s27, 0
      %p383 = por %p381, %p382
      %p384 = scmp.ne.s32.totalorder %s376, %s378
      %p385 = scmp.eq.s32.totalorder %s32, 1
      %p386 = por %p384, %p385
      %p387 = scmp.ne.s32.totalorder %s378, %s379
      %p388 = scmp.eq.s32.totalorder %s32, 0
      %p389 = por %p387, %p388
      %p390 = scmp.ne.s32.totalorder %s378, %s379
      %p391 = scmp.eq.s32.totalorder %s33, 1
      %p392 = por %p390, %p391
      %p394 = scmp.ne.s32.totalorder %s379, %s393
      %p395 = scmp.eq.s32.totalorder %s33, 0
      %p396 = por %p394, %p395
      %s398 = sadd.s32 %s397, 1
      %p401 = scmp.eq.s32.totalorder %s27, 1
      %p402 = scmp.ne.s32.totalorder %s397, %s399
      %p403 = scmp.eq.s32.totalorder %s27, 0
      %p404 = por %p402, %p403
      %p405 = scmp.ne.s32.totalorder %s397, %s399
      %p406 = scmp.eq.s32.totalorder %s32, 1
      %p407 = por %p405, %p406
      %p408 = scmp.ne.s32.totalorder %s399, %s400
      %p409 = scmp.eq.s32.totalorder %s32, 0
      %p410 = por %p408, %p409
      %p411 = scmp.ne.s32.totalorder %s399, %s400
      %p412 = scmp.eq.s32.totalorder %s33, 1
      %p413 = por %p411, %p412
      %p415 = scmp.ne.s32.totalorder %s400, %s414
      %p416 = scmp.eq.s32.totalorder %s33, 0
      %p417 = por %p415, %p416
      %s418 = ssub.s32 %s27, %s34
      %p419 = scmp.eq.s32.totalorder %s418, 0
      %s421 = sadd.s32 %s420, 1
      %s422 = scalar_select %p419, %s420, %s421
      %p425 = pneg %p419
      %p426 = scmp.eq.s32.totalorder %s27, 1
      %p427 = por %p425, %p426
      %p428 = scmp.ne.s32.totalorder %s420, %s423
      %p429 = scmp.eq.s32.totalorder %s27, 0
      %p430 = por %p428, %p429
      %p431 = scmp.ne.s32.totalorder %s420, %s423
      %p432 = scmp.eq.s32.totalorder %s32, 1
      %p433 = por %p431, %p432
      %p434 = scmp.ne.s32.totalorder %s423, %s424
      %p435 = scmp.eq.s32.totalorder %s32, 0
      %p436 = por %p434, %p435
      %p437 = scmp.ne.s32.totalorder %s423, %s424
      %p438 = scmp.eq.s32.totalorder %s33, 1
      %p439 = por %p437, %p438
      %p441 = scmp.ne.s32.totalorder %s424, %s440
      %p442 = scmp.eq.s32.totalorder %s33, 0
      %p443 = por %p441, %p442
      %p444 = scmp.le.s32.totalorder 1, %s27
      %p445 = scmp.lt.s32.totalorder %s27, 3
      %p446 = pnand %p444, %p445
      %p447 = pneg %p446
      // Predicated region
      $region9: #{_lambda_.1} parent=5 // pred_check
        _
      $region10: #{_lambda_.1} parent=5 // pred_check_branch
        %449 = sbr.rel (%p446) target = $region12
      $region11: #{_lambda_.1} parent=5 // pred_region
        %s450 = ssub.s32 %s27, 1
        // Predicated region
        $region13: #{_lambda_.1} parent=11 // pred_check
          %p451 = pneg %p74
        $region14: #{_lambda_.1} parent=11 // pred_check_branch
          %453 = sbr.rel (%p451) target = $region16
        $region15: #{_lambda_.1} parent=11 // pred_region
          _
        $region16: #{_lambda_.1} parent=11 // pred_fallthru
          _
        // Predicated region
        $region17: #{_lambda_.1} parent=11 // pred_check
          %p454 = pneg %p95
        $region18: #{_lambda_.1} parent=11 // pred_check_branch
          %456 = sbr.rel (%p454) target = $region20
        $region19: #{_lambda_.1} parent=11 // pred_region
          _
        $region20: #{_lambda_.1} parent=11 // pred_fallthru
          _
        // Predicated region
        $region21: #{_lambda_.1} parent=11 // pred_check
          %p457 = pneg %p116
        $region22: #{_lambda_.1} parent=11 // pred_check_branch
          %459 = sbr.rel (%p457) target = $region24
        $region23: #{_lambda_.1} parent=11 // pred_region
          _
        $region24: #{_lambda_.1} parent=11 // pred_fallthru
          _
        // Predicated region
        $region25: #{_lambda_.1} parent=11 // pred_check
          %p460 = pneg %p137
        $region26: #{_lambda_.1} parent=11 // pred_check_branch
          %462 = sbr.rel (%p460) target = $region28
        $region27: #{_lambda_.1} parent=11 // pred_region
          _
        $region28: #{_lambda_.1} parent=11 // pred_fallthru
          _
        // Predicated region
        $region29: #{_lambda_.1} parent=11 // pred_check
          %p463 = pneg %p158
        $region30: #{_lambda_.1} parent=11 // pred_check_branch
          %465 = sbr.rel (%p463) target = $region32
        $region31: #{_lambda_.1} parent=11 // pred_region
          _
        $region32: #{_lambda_.1} parent=11 // pred_fallthru
          _
        // Predicated region
        $region33: #{_lambda_.1} parent=11 // pred_check
          %p466 = pneg %p179
        $region34: #{_lambda_.1} parent=11 // pred_check_branch
          %468 = sbr.rel (%p466) target = $region36
        $region35: #{_lambda_.1} parent=11 // pred_region
          _
        $region36: #{_lambda_.1} parent=11 // pred_fallthru
          _
        // Predicated region
        $region37: #{_lambda_.1} parent=11 // pred_check
          %p469 = pneg %p200
        $region38: #{_lambda_.1} parent=11 // pred_check_branch
          %471 = sbr.rel (%p469) target = $region40
        $region39: #{_lambda_.1} parent=11 // pred_region
          _
        $region40: #{_lambda_.1} parent=11 // pred_fallthru
          _
        // Predicated region
        $region41: #{_lambda_.1} parent=11 // pred_check
          %p472 = pneg %p221
        $region42: #{_lambda_.1} parent=11 // pred_check_branch
          %474 = sbr.rel (%p472) target = $region44
        $region43: #{_lambda_.1} parent=11 // pred_region
          _
        $region44: #{_lambda_.1} parent=11 // pred_fallthru
          _
        // Predicated region
        $region45: #{_lambda_.1} parent=11 // pred_check
          %p475 = pneg %p242
        $region46: #{_lambda_.1} parent=11 // pred_check_branch
          %477 = sbr.rel (%p475) target = $region48
        $region47: #{_lambda_.1} parent=11 // pred_region
          _
        $region48: #{_lambda_.1} parent=11 // pred_fallthru
          _
        // Predicated region
        $region49: #{_lambda_.1} parent=11 // pred_check
          %p478 = pneg %p263
        $region50: #{_lambda_.1} parent=11 // pred_check_branch
          %480 = sbr.rel (%p478) target = $region52
        $region51: #{_lambda_.1} parent=11 // pred_region
          _
        $region52: #{_lambda_.1} parent=11 // pred_fallthru
          _
        // Predicated region
        $region53: #{_lambda_.1} parent=11 // pred_check
          %p481 = pneg %p284
        $region54: #{_lambda_.1} parent=11 // pred_check_branch
          %483 = sbr.rel (%p481) target = $region56
        $region55: #{_lambda_.1} parent=11 // pred_region
          _
        $region56: #{_lambda_.1} parent=11 // pred_fallthru
          _
        // Predicated region
        $region57: #{_lambda_.1} parent=11 // pred_check
          %p484 = pneg %p305
        $region58: #{_lambda_.1} parent=11 // pred_check_branch
          %486 = sbr.rel (%p484) target = $region60
        $region59: #{_lambda_.1} parent=11 // pred_region
          _
        $region60: #{_lambda_.1} parent=11 // pred_fallthru
          _
        // Predicated region
        $region61: #{_lambda_.1} parent=11 // pred_check
          %p487 = pneg %p326
        $region62: #{_lambda_.1} parent=11 // pred_check_branch
          %489 = sbr.rel (%p487) target = $region64
        $region63: #{_lambda_.1} parent=11 // pred_region
          _
        $region64: #{_lambda_.1} parent=11 // pred_fallthru
          _
        // Predicated region
        $region65: #{_lambda_.1} parent=11 // pred_check
          %p490 = pneg %p347
        $region66: #{_lambda_.1} parent=11 // pred_check_branch
          %492 = sbr.rel (%p490) target = $region68
        $region67: #{_lambda_.1} parent=11 // pred_region
          _
        $region68: #{_lambda_.1} parent=11 // pred_fallthru
          _
        // Predicated region
        $region69: #{_lambda_.1} parent=11 // pred_check
          %p493 = pneg %p368
        $region70: #{_lambda_.1} parent=11 // pred_check_branch
          %495 = sbr.rel (%p493) target = $region72
        $region71: #{_lambda_.1} parent=11 // pred_region
          _
        $region72: #{_lambda_.1} parent=11 // pred_fallthru
          _
        // Predicated region
        $region73: #{_lambda_.1} parent=11 // pred_check
          %p496 = pneg %p389
        $region74: #{_lambda_.1} parent=11 // pred_check_branch
          %498 = sbr.rel (%p496) target = $region76
        $region75: #{_lambda_.1} parent=11 // pred_region
          _
        $region76: #{_lambda_.1} parent=11 // pred_fallthru
          _
        // Predicated region
        $region77: #{_lambda_.1} parent=11 // pred_check
          %p499 = pneg %p410
        $region78: #{_lambda_.1} parent=11 // pred_check_branch
          %501 = sbr.rel (%p499) target = $region80
        $region79: #{_lambda_.1} parent=11 // pred_region
          _
        $region80: #{_lambda_.1} parent=11 // pred_fallthru
          _
      $region12: #{_lambda_.1} parent=5 // pred_fallthru
        _
      %p502 = scmp.lt.s32.totalorder %s27, 2
      // Predicated region
      $region81: #{_lambda_.1} parent=5 // pred_check
        %p503 = pneg %p502
      $region82: #{_lambda_.1} parent=5 // pred_check_branch
        %505 = sbr.rel (%p503) target = $region84
      $region83: #{_lambda_.1} parent=5 // pred_region
        // Predicated region
        $region85: #{_lambda_.1} parent=83 // pred_check
          %p506 = pneg %p47
        $region86: #{_lambda_.1} parent=83 // pred_check_branch
          %508 = sbr.rel (%p506) target = $region88
        $region87: #{_lambda_.1} parent=83 // pred_region
          %p509 = scmp.lt.s32.totalorder %s27, 1
          %s510 = scalar_select %p509, %s27, 1
          %s511 = smul.addr %s510, 8
          %s512 = smul.addr %s511, 8
          %s513 = scalar_lea.vmem %s0, %s512
        $region88: #{_lambda_.1} parent=83 // pred_fallthru
          _
      $region84: #{_lambda_.1} parent=5 // pred_fallthru
        _
      %p514 = scmp.le.s32.totalorder 1, %s27
      %p515 = scmp.lt.s32.totalorder %s27, 3
      %p516 = pnand %p514, %p515
      %p517 = pneg %p516
      // Predicated region
      $region89: #{_lambda_.1} parent=5 // pred_check
        _
      $region90: #{_lambda_.1} parent=5 // pred_check_branch
        %519 = sbr.rel (%p516) target = $region92
      $region91: #{_lambda_.1} parent=5 // pred_region
        %s520 = ssub.s32 %s27, 1
        %p521 = scmp.lt.s32.totalorder %s32, 1
        %s522 = scalar_select %p521, %s32, 1
        %s523 = smul.addr %s522, 8
        %s524 = smul.addr %s523, 8
        %s525 = scalar_lea.vmem %s0, %s524
        %p526 = pneg %p53
        %p527 = pneg %p50
        %p528 = pneg %p74
        %p529 = pneg %p71
        %p530 = pneg %p95
        %p531 = pneg %p92
        %p532 = pneg %p116
        %p533 = pneg %p113
        %p534 = pneg %p137
        %p535 = pneg %p134
        %p536 = pneg %p158
        %p537 = pneg %p155
        %p538 = pneg %p179
        %p539 = pneg %p176
        %p540 = pneg %p200
        %p541 = pneg %p197
        %p542 = pneg %p221
        %p543 = pneg %p218
        %p544 = pneg %p242
        %p545 = pneg %p239
        %p546 = pneg %p263
        %p547 = pneg %p260
        %p548 = pneg %p284
        %p549 = pneg %p281
        %p550 = pneg %p305
        %p551 = pneg %p302
        %p552 = pneg %p326
        %p553 = pneg %p323
        %p554 = pneg %p347
        %p555 = pneg %p344
        %p556 = pneg %p368
        %p557 = pneg %p365
        %p558 = pneg %p389
        %p559 = pneg %p386
        %p560 = pneg %p410
        %p561 = pneg %p407
        %p562 = pneg %p436
        %p563 = pneg %p433
        %s564 = sand.u32 %s423, 1
        %s565 = scalar_lea.sflag [#allocation7], %s564
        %s566 = sand.u32 %s423, 1
        %s567 = smul.addr %s566, 8
        %s568 = scalar_lea.vmem [#allocation6], %s567
        %p569 = scmp.lt.s32.totalorder %s32, 1
        %s570 = scalar_select %p569, %s32, 1
        %s571 = smul.addr %s570, 8
        %s572 = smul.addr %s571, 8
        %s573 = scalar_lea.vmem %s0, %s572
        %v574 = vld [vmem:[%s573] sm:$0xff]
        %v575 = vld [vmem:[%s573 + $0x8] sm:$0xff]
        %v576 = vld [vmem:[%s573 + $0x10] sm:$0xff]
        %v577 = vld [vmem:[%s573 + $0x18] sm:$0xff]
        %v578 = vld [vmem:[%s573 + $0x20] sm:$0xff]
        %v579 = vld [vmem:[%s573 + $0x28] sm:$0xff]
        %v580 = vld [vmem:[%s573 + $0x30] sm:$0xff]
        %v581 = vld [vmem:[%s573 + $0x38] sm:$0xff]
        %v582 = vld [vmem:[%s3] sm:$0x7]
        %v583 = vlaneseq
        %v584 = vshrl.u32 %v583, 7
        %v585 = vadd.s32 %v584, 8
        %v586 = vadd.s32 %v584, 16
        %v587 = vadd.s32 %v584, 24
        %v588 = vlaneseq
        %v589 = vand.u32 %v588, 127
        %v590 = vmul.u32 %v584, 2
        %v591 = vmul.u32 %v585, 2
        %v592 = vmul.u32 %v586, 2
        %v593 = vmul.u32 %v587, 2
        %v594 = vadd.s32 %v590, 4294967294
        %v595 = vadd.s32 %v591, 4294967294
        %v596 = vadd.s32 %v592, 4294967294
        %v597 = vadd.s32 %v593, 4294967294
        %vm598 = vcmp.gt.s32.totalorder %v594, 0
        %v599 = vsel %vm598, %v594, 0
        %vm600 = vcmp.gt.s32.totalorder %v595, 0
        %v601 = vsel %vm600, %v595, 0
        %vm602 = vcmp.gt.s32.totalorder %v596, 0
        %v603 = vsel %vm602, %v596, 0
        %vm604 = vcmp.gt.s32.totalorder %v597, 0
        %v605 = vsel %vm604, %v597, 0
        %vm606 = vcmp.lt.s32.totalorder %v599, 63
        %v607 = vsel %vm606, %v599, 63
        %vm608 = vcmp.lt.s32.totalorder %v601, 63
        %v609 = vsel %vm608, %v601, 63
        %vm610 = vcmp.lt.s32.totalorder %v603, 63
        %v611 = vsel %vm610, %v603, 63
        %vm612 = vcmp.lt.s32.totalorder %v605, 63
        %v613 = vsel %vm612, %v605, 63
        %vm614 = vcmp.eq.s32.totalorder %v589, %v607
        %vm615 = vcmp.eq.s32.totalorder %v589, %v609
        %vm616 = vcmp.eq.s32.totalorder %v589, %v611
        %vm617 = vcmp.eq.s32.totalorder %v589, %v613
        %v618 = vsel %vm614, 1, 0
        %v619 = vsel %vm615, 1, 0
        %v620 = vsel %vm616, 1, 0
        %v621 = vsel %vm617, 1, 0
        %v622 = vcvt.s32.f32 %v618
        %v623 = vcvt.s32.f32 %v619
        %v624 = vcvt.s32.f32 %v620
        %v625 = vcvt.s32.f32 %v621
        %vm626 = vcmask 523264
        %v628 = vsel %vm626, %v622, 0
        %v631 = vsel %vm626, %v623, 0
        %v634 = vsel %vm626, %v624, 0
        %v637 = vsel %vm626, %v625, 0
        %639 = vmatpush.msra.mxu0 0.0
        %640 = vmatpush.msra.mxu0 0.0
        %641 = vmatpush.msra.mxu0 0.0
        %642 = vmatpush.msra.mxu0 0.0
        %643 = vmatpush.msra.mxu0 0.0
        %644 = vmatpush.msra.mxu0 0.0
        %645 = vmatpush.msra.mxu0 0.0
        %646 = vmatpush.msra.mxu0 0.0
        %647 = vmatpush.msra.mxu0 %v581
        %648 = vmatpush.msra.mxu0 %v580
        %649 = vmatpush.msra.mxu0 %v579
        %650 = vmatpush.msra.mxu0 %v578
        %651 = vmatpush.msra.mxu0 %v577
        %652 = vmatpush.msra.mxu0 %v576
        %653 = vmatpush.msra.mxu0 %v575
        %654 = vmatpush.msra.mxu0 %v574
        %655 = vmatmul.f32.gmra.mxu0 %v628
        %v656 = vpop.f32.mrf.mxu0
        %v657 = vadd.f32 0.0, %v656
        %658 = vmatmul.f32.gmra.mxu0 %v631
        %v659 = vpop.f32.mrf.mxu0
        %v660 = vadd.f32 0.0, %v659
        %661 = vmatmul.f32.gmra.mxu0 %v634
        %v662 = vpop.f32.mrf.mxu0
        %v663 = vadd.f32 0.0, %v662
        %664 = vmatmul.f32.gmra.mxu0 %v637
        %v665 = vpop.f32.mrf.mxu0
        %v666 = vadd.f32 0.0, %v665
        %667 = vdwg.mxu0
        %v668 = vld [vmem:[%s1] sm:$0xff]
        %v669 = vld [vmem:[%s1 + $0x8] sm:$0xff]
        %v670 = vadd.s32 %v590, 4294967295
        %v671 = vadd.s32 %v591, 4294967295
        %v672 = vadd.s32 %v592, 4294967295
        %v673 = vadd.s32 %v593, 4294967295
        %vm674 = vcmp.gt.s32.totalorder %v670, 0
        %v675 = vsel %vm674, %v670, 0
        %vm676 = vcmp.gt.s32.totalorder %v671, 0
        %v677 = vsel %vm676, %v671, 0
        %vm678 = vcmp.gt.s32.totalorder %v672, 0
        %v679 = vsel %vm678, %v672, 0
        %vm680 = vcmp.gt.s32.totalorder %v673, 0
        %v681 = vsel %vm680, %v673, 0
        %vm682 = vcmp.lt.s32.totalorder %v675, 63
        %v683 = vsel %vm682, %v675, 63
        %vm684 = vcmp.lt.s32.totalorder %v677, 63
        %v685 = vsel %vm684, %v677, 63
        %vm686 = vcmp.lt.s32.totalorder %v679, 63
        %v687 = vsel %vm686, %v679, 63
        %vm688 = vcmp.lt.s32.totalorder %v681, 63
        %v689 = vsel %vm688, %v681, 63
        %vm690 = vcmp.eq.s32.totalorder %v589, %v683
        %vm691 = vcmp.eq.s32.totalorder %v589, %v685
        %vm692 = vcmp.eq.s32.totalorder %v589, %v687
        %vm693 = vcmp.eq.s32.totalorder %v589, %v689
        %v694 = vsel %vm690, 1, 0
        %v695 = vsel %vm691, 1, 0
        %v696 = vsel %vm692, 1, 0
        %v697 = vsel %vm693, 1, 0
        %v698 = vcvt.s32.f32 %v694
        %v699 = vcvt.s32.f32 %v695
        %v700 = vcvt.s32.f32 %v696
        %v701 = vcvt.s32.f32 %v697
        %v703 = vsel %vm626, %v698, 0
        %v706 = vsel %vm626, %v699, 0
        %v709 = vsel %vm626, %v700, 0
        %v712 = vsel %vm626, %v701, 0
        %714 = vmatpush.msra.mxu0 0.0
        %715 = vmatpush.msra.mxu0 0.0
        %716 = vmatpush.msra.mxu0 0.0
        %717 = vmatpush.msra.mxu0 0.0
        %718 = vmatpush.msra.mxu0 0.0
        %719 = vmatpush.msra.mxu0 0.0
        %720 = vmatpush.msra.mxu0 0.0
        %721 = vmatpush.msra.mxu0 0.0
        %722 = vmatpush.msra.mxu0 %v581
        %723 = vmatpush.msra.mxu0 %v580
        %724 = vmatpush.msra.mxu0 %v579
        %725 = vmatpush.msra.mxu0 %v578
        %726 = vmatpush.msra.mxu0 %v577
        %727 = vmatpush.msra.mxu0 %v576
        %728 = vmatpush.msra.mxu0 %v575
        %729 = vmatpush.msra.mxu0 %v574
        %730 = vmatmul.f32.gmra.mxu0 %v703
        %v731 = vpop.f32.mrf.mxu0
        %v732 = vadd.f32 0.0, %v731
        %733 = vmatmul.f32.gmra.mxu0 %v706
        %v734 = vpop.f32.mrf.mxu0
        %v735 = vadd.f32 0.0, %v734
        %736 = vmatmul.f32.gmra.mxu0 %v709
        %v737 = vpop.f32.mrf.mxu0
        %v738 = vadd.f32 0.0, %v737
        %739 = vmatmul.f32.gmra.mxu0 %v712
        %v740 = vpop.f32.mrf.mxu0
        %v741 = vadd.f32 0.0, %v740
        %742 = vdwg.mxu0
        %s743 = scalar_lea.vmem %s1, 16
        %v744 = vld [vmem:[%s743] sm:$0xff]
        %v745 = vld [vmem:[%s743 + $0x8] sm:$0xff]
        %vm746 = vcmask 130048
        %v748 = vsel %vm746, %v732, 0
        %v751 = vsel %vm746, %v735, 0
        %v754 = vsel %vm746, %v738, 0
        %v757 = vsel %vm746, %v741, 0
        %759 = vmatpush.msra.mxu0 0.0
        %760 = vmatpush.msra.mxu0 0.0
        %761 = vmatpush.msra.mxu0 0.0
        %762 = vmatpush.msra.mxu0 0.0
        %763 = vmatpush.msra.mxu0 0.0
        %764 = vmatpush.msra.mxu0 0.0
        %765 = vmatpush.msra.mxu0 0.0
        %766 = vmatpush.msra.mxu0 0.0
        %767 = vmatpush.msra.mxu0 0.0
        %768 = vmatpush.msra.mxu0 0.0
        %769 = vmatpush.msra.mxu0 0.0
        %770 = vmatpush.msra.mxu0 0.0
        %771 = vmatpush.msra.mxu0 0.0
        %772 = vmatpush.msra.mxu0 0.0
        %773 = vmatpush.msra.mxu0 %v745
        %774 = vmatpush.msra.mxu0 %v744
        %775 = vmatmul.f32.gmra.mxu0 %v748
        %v776 = vpop.f32.mrf.mxu0
        %v777 = vadd.f32 0.0, %v776
        %778 = vmatmul.f32.gmra.mxu0 %v751
        %v779 = vpop.f32.mrf.mxu0
        %v780 = vadd.f32 0.0, %v779
        %781 = vmatmul.f32.gmra.mxu0 %v754
        %v782 = vpop.f32.mrf.mxu0
        %v783 = vadd.f32 0.0, %v782
        %784 = vmatmul.f32.gmra.mxu0 %v757
        %v785 = vpop.f32.mrf.mxu0
        %v786 = vadd.f32 0.0, %v785
        %787 = vdwg.mxu0
        %v789 = vsel %vm746, %v657, 0
        %v792 = vsel %vm746, %v660, 0
        %v795 = vsel %vm746, %v663, 0
        %v798 = vsel %vm746, %v666, 0
        %800 = vmatpush.msra.mxu0 0.0
        %801 = vmatpush.msra.mxu0 0.0
        %802 = vmatpush.msra.mxu0 0.0
        %803 = vmatpush.msra.mxu0 0.0
        %804 = vmatpush.msra.mxu0 0.0
        %805 = vmatpush.msra.mxu0 0.0
        %806 = vmatpush.msra.mxu0 0.0
        %807 = vmatpush.msra.mxu0 0.0
        %808 = vmatpush.msra.mxu0 0.0
        %809 = vmatpush.msra.mxu0 0.0
        %810 = vmatpush.msra.mxu0 0.0
        %811 = vmatpush.msra.mxu0 0.0
        %812 = vmatpush.msra.mxu0 0.0
        %813 = vmatpush.msra.mxu0 0.0
        %814 = vmatpush.msra.mxu0 %v669
        %815 = vmatpush.msra.mxu0 %v668
        %816 = vmatmul.f32.gmra.mxu0 %v789
        %v817 = vpop.f32.mrf.mxu0
        %v818 = vadd.f32 %v777, %v817
        %819 = vmatmul.f32.gmra.mxu0 %v792
        %v820 = vpop.f32.mrf.mxu0
        %v821 = vadd.f32 %v780, %v820
        %822 = vmatmul.f32.gmra.mxu0 %v795
        %v823 = vpop.f32.mrf.mxu0
        %v824 = vadd.f32 %v783, %v823
        %825 = vmatmul.f32.gmra.mxu0 %v798
        %v826 = vpop.f32.mrf.mxu0
        %v827 = vadd.f32 %v786, %v826
        %828 = vdwg.mxu0
        %vm829 = vcmp.gt.s32.totalorder %v590, 0
        %v830 = vsel %vm829, %v590, 0
        %vm831 = vcmp.gt.s32.totalorder %v591, 0
        %v832 = vsel %vm831, %v591, 0
        %vm833 = vcmp.gt.s32.totalorder %v592, 0
        %v834 = vsel %vm833, %v592, 0
        %vm835 = vcmp.gt.s32.totalorder %v593, 0
        %v836 = vsel %vm835, %v593, 0
        %vm837 = vcmp.lt.s32.totalorder %v830, 63
        %v838 = vsel %vm837, %v830, 63
        %vm839 = vcmp.lt.s32.totalorder %v832, 63
        %v840 = vsel %vm839, %v832, 63
        %vm841 = vcmp.lt.s32.totalorder %v834, 63
        %v842 = vsel %vm841, %v834, 63
        %vm843 = vcmp.lt.s32.totalorder %v836, 63
        %v844 = vsel %vm843, %v836, 63
        %vm845 = vcmp.eq.s32.totalorder %v589, %v838
        %vm846 = vcmp.eq.s32.totalorder %v589, %v840
        %vm847 = vcmp.eq.s32.totalorder %v589, %v842
        %vm848 = vcmp.eq.s32.totalorder %v589, %v844
        %v849 = vsel %vm845, 1, 0
        %v850 = vsel %vm846, 1, 0
        %v851 = vsel %vm847, 1, 0
        %v852 = vsel %vm848, 1, 0
        %v853 = vcvt.s32.f32 %v849
        %v854 = vcvt.s32.f32 %v850
        %v855 = vcvt.s32.f32 %v851
        %v856 = vcvt.s32.f32 %v852
        %v858 = vsel %vm626, %v853, 0
        %v861 = vsel %vm626, %v854, 0
        %v864 = vsel %vm626, %v855, 0
        %v867 = vsel %vm626, %v856, 0
        %869 = vmatpush.msra.mxu0 0.0
        %870 = vmatpush.msra.mxu0 0.0
        %871 = vmatpush.msra.mxu0 0.0
        %872 = vmatpush.msra.mxu0 0.0
        %873 = vmatpush.msra.mxu0 0.0
        %874 = vmatpush.msra.mxu0 0.0
        %875 = vmatpush.msra.mxu0 0.0
        %876 = vmatpush.msra.mxu0 0.0
        %877 = vmatpush.msra.mxu0 %v581
        %878 = vmatpush.msra.mxu0 %v580
        %879 = vmatpush.msra.mxu0 %v579
        %880 = vmatpush.msra.mxu0 %v578
        %881 = vmatpush.msra.mxu0 %v577
        %882 = vmatpush.msra.mxu0 %v576
        %883 = vmatpush.msra.mxu0 %v575
        %884 = vmatpush.msra.mxu0 %v574
        %885 = vmatmul.f32.gmra.mxu0 %v858
        %v886 = vpop.f32.mrf.mxu0
        %v887 = vadd.f32 0.0, %v886
        %888 = vmatmul.f32.gmra.mxu0 %v861
        %v889 = vpop.f32.mrf.mxu0
        %v890 = vadd.f32 0.0, %v889
        %891 = vmatmul.f32.gmra.mxu0 %v864
        %v892 = vpop.f32.mrf.mxu0
        %v893 = vadd.f32 0.0, %v892
        %894 = vmatmul.f32.gmra.mxu0 %v867
        %v895 = vpop.f32.mrf.mxu0
        %v896 = vadd.f32 0.0, %v895
        %897 = vdwg.mxu0
        %s898 = scalar_lea.vmem %s1, 32
        %v899 = vld [vmem:[%s898] sm:$0xff]
        %v900 = vld [vmem:[%s898 + $0x8] sm:$0xff]
        %v902 = vsel %vm746, %v887, 0
        %v905 = vsel %vm746, %v890, 0
        %v908 = vsel %vm746, %v893, 0
        %v911 = vsel %vm746, %v896, 0
        %913 = vmatpush.msra.mxu0 0.0
        %914 = vmatpush.msra.mxu0 0.0
        %915 = vmatpush.msra.mxu0 0.0
        %916 = vmatpush.msra.mxu0 0.0
        %917 = vmatpush.msra.mxu0 0.0
        %918 = vmatpush.msra.mxu0 0.0
        %919 = vmatpush.msra.mxu0 0.0
        %920 = vmatpush.msra.mxu0 0.0
        %921 = vmatpush.msra.mxu0 0.0
        %922 = vmatpush.msra.mxu0 0.0
        %923 = vmatpush.msra.mxu0 0.0
        %924 = vmatpush.msra.mxu0 0.0
        %925 = vmatpush.msra.mxu0 0.0
        %926 = vmatpush.msra.mxu0 0.0
        %927 = vmatpush.msra.mxu0 %v900
        %928 = vmatpush.msra.mxu0 %v899
        %929 = vmatmul.f32.gmra.mxu0 %v902
        %v930 = vpop.f32.mrf.mxu0
        %v931 = vadd.f32 0.0, %v930
        %932 = vmatmul.f32.gmra.mxu0 %v905
        %v933 = vpop.f32.mrf.mxu0
        %v934 = vadd.f32 0.0, %v933
        %935 = vmatmul.f32.gmra.mxu0 %v908
        %v936 = vpop.f32.mrf.mxu0
        %v937 = vadd.f32 0.0, %v936
        %938 = vmatmul.f32.gmra.mxu0 %v911
        %v939 = vpop.f32.mrf.mxu0
        %v940 = vadd.f32 0.0, %v939
        %941 = vdwg.mxu0
        %v942 = vadd.f32 %v818, %v931
        %v943 = vadd.f32 %v821, %v934
        %v944 = vadd.f32 %v824, %v937
        %v945 = vadd.f32 %v827, %v940
        %v946 = vadd.s32 %v590, 1
        %v947 = vadd.s32 %v591, 1
        %v948 = vadd.s32 %v592, 1
        %v949 = vadd.s32 %v593, 1
        %vm950 = vcmp.gt.s32.totalorder %v946, 0
        %v951 = vsel %vm950, %v946, 0
        %vm952 = vcmp.gt.s32.totalorder %v947, 0
        %v953 = vsel %vm952, %v947, 0
        %vm954 = vcmp.gt.s32.totalorder %v948, 0
        %v955 = vsel %vm954, %v948, 0
        %vm956 = vcmp.gt.s32.totalorder %v949, 0
        %v957 = vsel %vm956, %v949, 0
        %vm958 = vcmp.lt.s32.totalorder %v951, 63
        %v959 = vsel %vm958, %v951, 63
        %vm960 = vcmp.lt.s32.totalorder %v953, 63
        %v961 = vsel %vm960, %v953, 63
        %vm962 = vcmp.lt.s32.totalorder %v955, 63
        %v963 = vsel %vm962, %v955, 63
        %vm964 = vcmp.lt.s32.totalorder %v957, 63
        %v965 = vsel %vm964, %v957, 63
        %vm966 = vcmp.eq.s32.totalorder %v589, %v959
        %vm967 = vcmp.eq.s32.totalorder %v589, %v961
        %vm968 = vcmp.eq.s32.totalorder %v589, %v963
        %vm969 = vcmp.eq.s32.totalorder %v589, %v965
        %v970 = vsel %vm966, 1, 0
        %v971 = vsel %vm967, 1, 0
        %v972 = vsel %vm968, 1, 0
        %v973 = vsel %vm969, 1, 0
        %v974 = vcvt.s32.f32 %v970
        %v975 = vcvt.s32.f32 %v971
        %v976 = vcvt.s32.f32 %v972
        %v977 = vcvt.s32.f32 %v973
        %v979 = vsel %vm626, %v974, 0
        %v982 = vsel %vm626, %v975, 0
        %v985 = vsel %vm626, %v976, 0
        %v988 = vsel %vm626, %v977, 0
        %990 = vmatpush.msra.mxu0 0.0
        %991 = vmatpush.msra.mxu0 0.0
        %992 = vmatpush.msra.mxu0 0.0
        %993 = vmatpush.msra.mxu0 0.0
        %994 = vmatpush.msra.mxu0 0.0
        %995 = vmatpush.msra.mxu0 0.0
        %996 = vmatpush.msra.mxu0 0.0
        %997 = vmatpush.msra.mxu0 0.0
        %998 = vmatpush.msra.mxu0 %v581
        %999 = vmatpush.msra.mxu0 %v580
        %1000 = vmatpush.msra.mxu0 %v579
        %1001 = vmatpush.msra.mxu0 %v578
        %1002 = vmatpush.msra.mxu0 %v577
        %1003 = vmatpush.msra.mxu0 %v576
        %1004 = vmatpush.msra.mxu0 %v575
        %1005 = vmatpush.msra.mxu0 %v574
        %1006 = vmatmul.f32.gmra.mxu0 %v979
        %v1007 = vpop.f32.mrf.mxu0
        %v1008 = vadd.f32 0.0, %v1007
        %1009 = vmatmul.f32.gmra.mxu0 %v982
        %v1010 = vpop.f32.mrf.mxu0
        %v1011 = vadd.f32 0.0, %v1010
        %1012 = vmatmul.f32.gmra.mxu0 %v985
        %v1013 = vpop.f32.mrf.mxu0
        %v1014 = vadd.f32 0.0, %v1013
        %1015 = vmatmul.f32.gmra.mxu0 %v988
        %v1016 = vpop.f32.mrf.mxu0
        %v1017 = vadd.f32 0.0, %v1016
        %1018 = vdwg.mxu0
        %s1019 = scalar_lea.vmem %s1, 48
        %v1020 = vld [vmem:[%s1019] sm:$0xff]
        %v1021 = vld [vmem:[%s1019 + $0x8] sm:$0xff]
        %v1023 = vsel %vm746, %v1008, 0
        %v1026 = vsel %vm746, %v1011, 0
        %v1029 = vsel %vm746, %v1014, 0
        %v1032 = vsel %vm746, %v1017, 0
        %1034 = vmatpush.msra.mxu0 0.0
        %1035 = vmatpush.msra.mxu0 0.0
        %1036 = vmatpush.msra.mxu0 0.0
        %1037 = vmatpush.msra.mxu0 0.0
        %1038 = vmatpush.msra.mxu0 0.0
        %1039 = vmatpush.msra.mxu0 0.0
        %1040 = vmatpush.msra.mxu0 0.0
        %1041 = vmatpush.msra.mxu0 0.0
        %1042 = vmatpush.msra.mxu0 0.0
        %1043 = vmatpush.msra.mxu0 0.0
        %1044 = vmatpush.msra.mxu0 0.0
        %1045 = vmatpush.msra.mxu0 0.0
        %1046 = vmatpush.msra.mxu0 0.0
        %1047 = vmatpush.msra.mxu0 0.0
        %1048 = vmatpush.msra.mxu0 %v1021
        %1049 = vmatpush.msra.mxu0 %v1020
        %1050 = vmatmul.f32.gmra.mxu0 %v1023
        %v1051 = vpop.f32.mrf.mxu0
        %v1052 = vadd.f32 0.0, %v1051
        %1053 = vmatmul.f32.gmra.mxu0 %v1026
        %v1054 = vpop.f32.mrf.mxu0
        %v1055 = vadd.f32 0.0, %v1054
        %1056 = vmatmul.f32.gmra.mxu0 %v1029
        %v1057 = vpop.f32.mrf.mxu0
        %v1058 = vadd.f32 0.0, %v1057
        %1059 = vmatmul.f32.gmra.mxu0 %v1032
        %v1060 = vpop.f32.mrf.mxu0
        %v1061 = vadd.f32 0.0, %v1060
        %1062 = vdwg.mxu0
        %v1063 = vadd.f32 %v942, %v1052
        %v1064 = vadd.f32 %v943, %v1055
        %v1065 = vadd.f32 %v944, %v1058
        %v1066 = vadd.f32 %v945, %v1061
        %v1067 = vadd.s32 %v590, 2
        %v1068 = vadd.s32 %v591, 2
        %v1069 = vadd.s32 %v592, 2
        %v1070 = vadd.s32 %v593, 2
        %vm1071 = vcmp.gt.s32.totalorder %v1067, 0
        %v1072 = vsel %vm1071, %v1067, 0
        %vm1073 = vcmp.gt.s32.totalorder %v1068, 0
        %v1074 = vsel %vm1073, %v1068, 0
        %vm1075 = vcmp.gt.s32.totalorder %v1069, 0
        %v1076 = vsel %vm1075, %v1069, 0
        %vm1077 = vcmp.gt.s32.totalorder %v1070, 0
        %v1078 = vsel %vm1077, %v1070, 0
        %vm1079 = vcmp.lt.s32.totalorder %v1072, 63
        %v1080 = vsel %vm1079, %v1072, 63
        %vm1081 = vcmp.lt.s32.totalorder %v1074, 63
        %v1082 = vsel %vm1081, %v1074, 63
        %vm1083 = vcmp.lt.s32.totalorder %v1076, 63
        %v1084 = vsel %vm1083, %v1076, 63
        %vm1085 = vcmp.lt.s32.totalorder %v1078, 63
        %v1086 = vsel %vm1085, %v1078, 63
        %vm1087 = vcmp.eq.s32.totalorder %v589, %v1080
        %vm1088 = vcmp.eq.s32.totalorder %v589, %v1082
        %vm1089 = vcmp.eq.s32.totalorder %v589, %v1084
        %vm1090 = vcmp.eq.s32.totalorder %v589, %v1086
        %v1091 = vsel %vm1087, 1, 0
        %v1092 = vsel %vm1088, 1, 0
        %v1093 = vsel %vm1089, 1, 0
        %v1094 = vsel %vm1090, 1, 0
        %v1095 = vcvt.s32.f32 %v1091
        %v1096 = vcvt.s32.f32 %v1092
        %v1097 = vcvt.s32.f32 %v1093
        %v1098 = vcvt.s32.f32 %v1094
        %v1100 = vsel %vm626, %v1095, 0
        %v1103 = vsel %vm626, %v1096, 0
        %v1106 = vsel %vm626, %v1097, 0
        %v1109 = vsel %vm626, %v1098, 0
        %1111 = vmatpush.msra.mxu0 0.0
        %1112 = vmatpush.msra.mxu0 0.0
        %1113 = vmatpush.msra.mxu0 0.0
        %1114 = vmatpush.msra.mxu0 0.0
        %1115 = vmatpush.msra.mxu0 0.0
        %1116 = vmatpush.msra.mxu0 0.0
        %1117 = vmatpush.msra.mxu0 0.0
        %1118 = vmatpush.msra.mxu0 0.0
        %1119 = vmatpush.msra.mxu0 %v581
        %1120 = vmatpush.msra.mxu0 %v580
        %1121 = vmatpush.msra.mxu0 %v579
        %1122 = vmatpush.msra.mxu0 %v578
        %1123 = vmatpush.msra.mxu0 %v577
        %1124 = vmatpush.msra.mxu0 %v576
        %1125 = vmatpush.msra.mxu0 %v575
        %1126 = vmatpush.msra.mxu0 %v574
        %1127 = vmatmul.f32.gmra.mxu0 %v1100
        %v1128 = vpop.f32.mrf.mxu0
        %v1129 = vadd.f32 0.0, %v1128
        %1130 = vmatmul.f32.gmra.mxu0 %v1103
        %v1131 = vpop.f32.mrf.mxu0
        %v1132 = vadd.f32 0.0, %v1131
        %1133 = vmatmul.f32.gmra.mxu0 %v1106
        %v1134 = vpop.f32.mrf.mxu0
        %v1135 = vadd.f32 0.0, %v1134
        %1136 = vmatmul.f32.gmra.mxu0 %v1109
        %v1137 = vpop.f32.mrf.mxu0
        %v1138 = vadd.f32 0.0, %v1137
        %1139 = vdwg.mxu0
        %s1140 = scalar_lea.vmem %s1, 64
        %v1141 = vld [vmem:[%s1140] sm:$0xff]
        %v1142 = vld [vmem:[%s1140 + $0x8] sm:$0xff]
        %v1144 = vsel %vm746, %v1129, 0
        %v1147 = vsel %vm746, %v1132, 0
        %v1150 = vsel %vm746, %v1135, 0
        %v1153 = vsel %vm746, %v1138, 0
        %1155 = vmatpush.msra.mxu0 0.0
        %1156 = vmatpush.msra.mxu0 0.0
        %1157 = vmatpush.msra.mxu0 0.0
        %1158 = vmatpush.msra.mxu0 0.0
        %1159 = vmatpush.msra.mxu0 0.0
        %1160 = vmatpush.msra.mxu0 0.0
        %1161 = vmatpush.msra.mxu0 0.0
        %1162 = vmatpush.msra.mxu0 0.0
        %1163 = vmatpush.msra.mxu0 0.0
        %1164 = vmatpush.msra.mxu0 0.0
        %1165 = vmatpush.msra.mxu0 0.0
        %1166 = vmatpush.msra.mxu0 0.0
        %1167 = vmatpush.msra.mxu0 0.0
        %1168 = vmatpush.msra.mxu0 0.0
        %1169 = vmatpush.msra.mxu0 %v1142
        %1170 = vmatpush.msra.mxu0 %v1141
        %1171 = vmatmul.f32.gmra.mxu0 %v1144
        %v1172 = vpop.f32.mrf.mxu0
        %v1173 = vadd.f32 0.0, %v1172
        %1174 = vmatmul.f32.gmra.mxu0 %v1147
        %v1175 = vpop.f32.mrf.mxu0
        %v1176 = vadd.f32 0.0, %v1175
        %1177 = vmatmul.f32.gmra.mxu0 %v1150
        %v1178 = vpop.f32.mrf.mxu0
        %v1179 = vadd.f32 0.0, %v1178
        %1180 = vmatmul.f32.gmra.mxu0 %v1153
        %v1181 = vpop.f32.mrf.mxu0
        %v1182 = vadd.f32 0.0, %v1181
        %1183 = vdwg.mxu0
        %v1184 = vadd.f32 %v1063, %v1173
        %v1185 = vadd.f32 %v1064, %v1176
        %v1186 = vadd.f32 %v1065, %v1179
        %v1187 = vadd.f32 %v1066, %v1182
        %v1188 = vperm.slane %v582, 0
        %v1189 = vadd.f32 %v1184, %v1188
        %v1190 = vadd.f32 %v1185, %v1188
        %v1191 = vadd.f32 %v1186, %v1188
        %v1192 = vadd.f32 %v1187, %v1188
        %v1193 = vmul.f32 %v1189, 0.2
        %v1194 = vmul.f32 %v1190, 0.2
        %v1195 = vmul.f32 %v1191, 0.2
        %v1196 = vmul.f32 %v1192, 0.2
        %v1197 = vmax.f32 %v1189, %v1193
        %v1198 = vmax.f32 %v1190, %v1194
        %v1199 = vmax.f32 %v1191, %v1195
        %v1200 = vmax.f32 %v1192, %v1196
        %v1201 = vperm.slane %v582, 1
        %v1202 = vmul.f32 %v1197, %v1201
        %v1203 = vmul.f32 %v1198, %v1201
        %v1204 = vmul.f32 %v1199, %v1201
        %v1205 = vmul.f32 %v1200, %v1201
        %v1206 = vperm.slane %v582, 2
        %v1207 = vadd.f32 %v1202, %v1206
        %v1208 = vadd.f32 %v1203, %v1206
        %v1209 = vadd.f32 %v1204, %v1206
        %v1210 = vadd.f32 %v1205, %v1206
        %s1211 = scalar_lea.vmem %s3, 4
        %v1212 = vld [vmem:[%s1211] sm:$0x7]
        %v1213 = vadd.s32 %v584, 4294967294
        %v1214 = vadd.s32 %v585, 4294967294
        %v1215 = vadd.s32 %v586, 4294967294
        %v1216 = vadd.s32 %v587, 4294967294
        %vm1217 = vcmp.gt.s32.totalorder %v1213, 0
        %v1218 = vsel %vm1217, %v1213, 0
        %vm1219 = vcmp.gt.s32.totalorder %v1214, 0
        %v1220 = vsel %vm1219, %v1214, 0
        %vm1221 = vcmp.gt.s32.totalorder %v1215, 0
        %v1222 = vsel %vm1221, %v1215, 0
        %vm1223 = vcmp.gt.s32.totalorder %v1216, 0
        %v1224 = vsel %vm1223, %v1216, 0
        %vm1225 = vcmp.lt.s32.totalorder %v1218, 31
        %v1226 = vsel %vm1225, %v1218, 31
        %vm1227 = vcmp.lt.s32.totalorder %v1220, 31
        %v1228 = vsel %vm1227, %v1220, 31
        %vm1229 = vcmp.lt.s32.totalorder %v1222, 31
        %v1230 = vsel %vm1229, %v1222, 31
        %vm1231 = vcmp.lt.s32.totalorder %v1224, 31
        %v1232 = vsel %vm1231, %v1224, 31
        %vm1233 = vcmp.eq.s32.totalorder %v589, %v1226
        %vm1234 = vcmp.eq.s32.totalorder %v589, %v1228
        %vm1235 = vcmp.eq.s32.totalorder %v589, %v1230
        %vm1236 = vcmp.eq.s32.totalorder %v589, %v1232
        %v1237 = vsel %vm1233, 1, 0
        %v1238 = vsel %vm1234, 1, 0
        %v1239 = vsel %vm1235, 1, 0
        %v1240 = vsel %vm1236, 1, 0
        %v1241 = vcvt.s32.f32 %v1237
        %v1242 = vcvt.s32.f32 %v1238
        %v1243 = vcvt.s32.f32 %v1239
        %v1244 = vcvt.s32.f32 %v1240
        %vm1245 = vcmask 261120
        %v1247 = vsel %vm1245, %v1241, 0
        %v1250 = vsel %vm1245, %v1242, 0
        %v1253 = vsel %vm1245, %v1243, 0
        %v1256 = vsel %vm1245, %v1244, 0
        %1258 = vmatpush.msra.mxu0 0.0
        %1259 = vmatpush.msra.mxu0 0.0
        %1260 = vmatpush.msra.mxu0 0.0
        %1261 = vmatpush.msra.mxu0 0.0
        %1262 = vmatpush.msra.mxu0 0.0
        %1263 = vmatpush.msra.mxu0 0.0
        %1264 = vmatpush.msra.mxu0 0.0
        %1265 = vmatpush.msra.mxu0 0.0
        %1266 = vmatpush.msra.mxu0 0.0
        %1267 = vmatpush.msra.mxu0 0.0
        %1268 = vmatpush.msra.mxu0 0.0
        %1269 = vmatpush.msra.mxu0 0.0
        %1270 = vmatpush.msra.mxu0 %v1210
        %1271 = vmatpush.msra.mxu0 %v1209
        %1272 = vmatpush.msra.mxu0 %v1208
        %1273 = vmatpush.msra.mxu0 %v1207
        %1274 = vmatmul.f32.gmra.mxu0 %v1247
        %v1275 = vpop.f32.mrf.mxu0
        %v1276 = vadd.f32 0.0, %v1275
        %1277 = vmatmul.f32.gmra.mxu0 %v1250
        %v1278 = vpop.f32.mrf.mxu0
        %v1279 = vadd.f32 0.0, %v1278
        %1280 = vmatmul.f32.gmra.mxu0 %v1253
        %v1281 = vpop.f32.mrf.mxu0
        %v1282 = vadd.f32 0.0, %v1281
        %1283 = vmatmul.f32.gmra.mxu0 %v1256
        %v1284 = vpop.f32.mrf.mxu0
        %v1285 = vadd.f32 0.0, %v1284
        %1286 = vdwg.mxu0
        %v1287 = vld [vmem:[%s2] sm:$0xff]
        %v1288 = vld [vmem:[%s2 + $0x8] sm:$0xff]
        %v1289 = vld [vmem:[%s2 + $0x10] sm:$0xff]
        %v1290 = vld [vmem:[%s2 + $0x18] sm:$0xff]
        %v1291 = vld [vmem:[%s2 + $0x20] sm:$0xff]
        %v1292 = vld [vmem:[%s2 + $0x28] sm:$0xff]
        %v1293 = vld [vmem:[%s2 + $0x30] sm:$0xff]
        %v1294 = vld [vmem:[%s2 + $0x38] sm:$0xff]
        %v1295 = vadd.s32 %v584, 4294967295
        %v1296 = vadd.s32 %v585, 4294967295
        %v1297 = vadd.s32 %v586, 4294967295
        %v1298 = vadd.s32 %v587, 4294967295
        %vm1299 = vcmp.gt.s32.totalorder %v1295, 0
        %v1300 = vsel %vm1299, %v1295, 0
        %vm1301 = vcmp.gt.s32.totalorder %v1296, 0
        %v1302 = vsel %vm1301, %v1296, 0
        %vm1303 = vcmp.gt.s32.totalorder %v1297, 0
        %v1304 = vsel %vm1303, %v1297, 0
        %vm1305 = vcmp.gt.s32.totalorder %v1298, 0
        %v1306 = vsel %vm1305, %v1298, 0
        %vm1307 = vcmp.lt.s32.totalorder %v1300, 31
        %v1308 = vsel %vm1307, %v1300, 31
        %vm1309 = vcmp.lt.s32.totalorder %v1302, 31
        %v1310 = vsel %vm1309, %v1302, 31
        %vm1311 = vcmp.lt.s32.totalorder %v1304, 31
        %v1312 = vsel %vm1311, %v1304, 31
        %vm1313 = vcmp.lt.s32.totalorder %v1306, 31
        %v1314 = vsel %vm1313, %v1306, 31
        %vm1315 = vcmp.eq.s32.totalorder %v589, %v1308
        %vm1316 = vcmp.eq.s32.totalorder %v589, %v1310
        %vm1317 = vcmp.eq.s32.totalorder %v589, %v1312
        %vm1318 = vcmp.eq.s32.totalorder %v589, %v1314
        %v1319 = vsel %vm1315, 1, 0
        %v1320 = vsel %vm1316, 1, 0
        %v1321 = vsel %vm1317, 1, 0
        %v1322 = vsel %vm1318, 1, 0
        %v1323 = vcvt.s32.f32 %v1319
        %v1324 = vcvt.s32.f32 %v1320
        %v1325 = vcvt.s32.f32 %v1321
        %v1326 = vcvt.s32.f32 %v1322
        %v1328 = vsel %vm1245, %v1323, 0
        %v1331 = vsel %vm1245, %v1324, 0
        %v1334 = vsel %vm1245, %v1325, 0
        %v1337 = vsel %vm1245, %v1326, 0
        %1339 = vmatpush.msra.mxu0 0.0
        %1340 = vmatpush.msra.mxu0 0.0
        %1341 = vmatpush.msra.mxu0 0.0
        %1342 = vmatpush.msra.mxu0 0.0
        %1343 = vmatpush.msra.mxu0 0.0
        %1344 = vmatpush.msra.mxu0 0.0
        %1345 = vmatpush.msra.mxu0 0.0
        %1346 = vmatpush.msra.mxu0 0.0
        %1347 = vmatpush.msra.mxu0 0.0
        %1348 = vmatpush.msra.mxu0 0.0
        %1349 = vmatpush.msra.mxu0 0.0
        %1350 = vmatpush.msra.mxu0 0.0
        %1351 = vmatpush.msra.mxu0 %v1210
        %1352 = vmatpush.msra.mxu0 %v1209
        %1353 = vmatpush.msra.mxu0 %v1208
        %1354 = vmatpush.msra.mxu0 %v1207
        %1355 = vmatmul.f32.gmra.mxu0 %v1328
        %v1356 = vpop.f32.mrf.mxu0
        %v1357 = vadd.f32 0.0, %v1356
        %1358 = vmatmul.f32.gmra.mxu0 %v1331
        %v1359 = vpop.f32.mrf.mxu0
        %v1360 = vadd.f32 0.0, %v1359
        %1361 = vmatmul.f32.gmra.mxu0 %v1334
        %v1362 = vpop.f32.mrf.mxu0
        %v1363 = vadd.f32 0.0, %v1362
        %1364 = vmatmul.f32.gmra.mxu0 %v1337
        %v1365 = vpop.f32.mrf.mxu0
        %v1366 = vadd.f32 0.0, %v1365
        %1367 = vdwg.mxu0
        %s1368 = scalar_lea.vmem %s2, 64
        %v1369 = vld [vmem:[%s1368] sm:$0xff]
        %v1370 = vld [vmem:[%s1368 + $0x8] sm:$0xff]
        %v1371 = vld [vmem:[%s1368 + $0x10] sm:$0xff]
        %v1372 = vld [vmem:[%s1368 + $0x18] sm:$0xff]
        %v1373 = vld [vmem:[%s1368 + $0x20] sm:$0xff]
        %v1374 = vld [vmem:[%s1368 + $0x28] sm:$0xff]
        %v1375 = vld [vmem:[%s1368 + $0x30] sm:$0xff]
        %v1376 = vld [vmem:[%s1368 + $0x38] sm:$0xff]
        %v1378 = vsel %vm626, %v1357, 0
        %v1381 = vsel %vm626, %v1360, 0
        %v1384 = vsel %vm626, %v1363, 0
        %v1387 = vsel %vm626, %v1366, 0
        %1389 = vmatpush.msra.mxu0 0.0
        %1390 = vmatpush.msra.mxu0 0.0
        %1391 = vmatpush.msra.mxu0 0.0
        %1392 = vmatpush.msra.mxu0 0.0
        %1393 = vmatpush.msra.mxu0 0.0
        %1394 = vmatpush.msra.mxu0 0.0
        %1395 = vmatpush.msra.mxu0 0.0
        %1396 = vmatpush.msra.mxu0 0.0
        %1397 = vmatpush.msra.mxu0 %v1376
        %1398 = vmatpush.msra.mxu0 %v1375
        %1399 = vmatpush.msra.mxu0 %v1374
        %1400 = vmatpush.msra.mxu0 %v1373
        %1401 = vmatpush.msra.mxu0 %v1372
        %1402 = vmatpush.msra.mxu0 %v1371
        %1403 = vmatpush.msra.mxu0 %v1370
        %1404 = vmatpush.msra.mxu0 %v1369
        %1405 = vmatmul.f32.gmra.mxu0 %v1378
        %v1406 = vpop.f32.mrf.mxu0
        %v1407 = vadd.f32 0.0, %v1406
        %1408 = vmatmul.f32.gmra.mxu0 %v1381
        %v1409 = vpop.f32.mrf.mxu0
        %v1410 = vadd.f32 0.0, %v1409
        %1411 = vmatmul.f32.gmra.mxu0 %v1384
        %v1412 = vpop.f32.mrf.mxu0
        %v1413 = vadd.f32 0.0, %v1412
        %1414 = vmatmul.f32.gmra.mxu0 %v1387
        %v1415 = vpop.f32.mrf.mxu0
        %v1416 = vadd.f32 0.0, %v1415
        %1417 = vdwg.mxu0
        %v1419 = vsel %vm626, %v1276, 0
        %v1422 = vsel %vm626, %v1279, 0
        %v1425 = vsel %vm626, %v1282, 0
        %v1428 = vsel %vm626, %v1285, 0
        %1430 = vmatpush.msra.mxu0 0.0
        %1431 = vmatpush.msra.mxu0 0.0
        %1432 = vmatpush.msra.mxu0 0.0
        %1433 = vmatpush.msra.mxu0 0.0
        %1434 = vmatpush.msra.mxu0 0.0
        %1435 = vmatpush.msra.mxu0 0.0
        %1436 = vmatpush.msra.mxu0 0.0
        %1437 = vmatpush.msra.mxu0 0.0
        %1438 = vmatpush.msra.mxu0 %v1294
        %1439 = vmatpush.msra.mxu0 %v1293
        %1440 = vmatpush.msra.mxu0 %v1292
        %1441 = vmatpush.msra.mxu0 %v1291
        %1442 = vmatpush.msra.mxu0 %v1290
        %1443 = vmatpush.msra.mxu0 %v1289
        %1444 = vmatpush.msra.mxu0 %v1288
        %1445 = vmatpush.msra.mxu0 %v1287
        %1446 = vmatmul.f32.gmra.mxu0 %v1419
        %v1447 = vpop.f32.mrf.mxu0
        %v1448 = vadd.f32 %v1407, %v1447
        %1449 = vmatmul.f32.gmra.mxu0 %v1422
        %v1450 = vpop.f32.mrf.mxu0
        %v1451 = vadd.f32 %v1410, %v1450
        %1452 = vmatmul.f32.gmra.mxu0 %v1425
        %v1453 = vpop.f32.mrf.mxu0
        %v1454 = vadd.f32 %v1413, %v1453
        %1455 = vmatmul.f32.gmra.mxu0 %v1428
        %v1456 = vpop.f32.mrf.mxu0
        %v1457 = vadd.f32 %v1416, %v1456
        %1458 = vdwg.mxu0
        %s1459 = scalar_lea.vmem %s2, 128
        %v1460 = vld [vmem:[%s1459] sm:$0xff]
        %v1461 = vld [vmem:[%s1459 + $0x8] sm:$0xff]
        %v1462 = vld [vmem:[%s1459 + $0x10] sm:$0xff]
        %v1463 = vld [vmem:[%s1459 + $0x18] sm:$0xff]
        %v1464 = vld [vmem:[%s1459 + $0x20] sm:$0xff]
        %v1465 = vld [vmem:[%s1459 + $0x28] sm:$0xff]
        %v1466 = vld [vmem:[%s1459 + $0x30] sm:$0xff]
        %v1467 = vld [vmem:[%s1459 + $0x38] sm:$0xff]
        %v1469 = vsel %vm626, %v1207, 0
        %v1472 = vsel %vm626, %v1208, 0
        %v1475 = vsel %vm626, %v1209, 0
        %v1478 = vsel %vm626, %v1210, 0
        %1480 = vmatpush.msra.mxu0 0.0
        %1481 = vmatpush.msra.mxu0 0.0
        %1482 = vmatpush.msra.mxu0 0.0
        %1483 = vmatpush.msra.mxu0 0.0
        %1484 = vmatpush.msra.mxu0 0.0
        %1485 = vmatpush.msra.mxu0 0.0
        %1486 = vmatpush.msra.mxu0 0.0
        %1487 = vmatpush.msra.mxu0 0.0
        %1488 = vmatpush.msra.mxu0 %v1467
        %1489 = vmatpush.msra.mxu0 %v1466
        %1490 = vmatpush.msra.mxu0 %v1465
        %1491 = vmatpush.msra.mxu0 %v1464
        %1492 = vmatpush.msra.mxu0 %v1463
        %1493 = vmatpush.msra.mxu0 %v1462
        %1494 = vmatpush.msra.mxu0 %v1461
        %1495 = vmatpush.msra.mxu0 %v1460
        %1496 = vmatmul.f32.gmra.mxu0 %v1469
        %v1497 = vpop.f32.mrf.mxu0
        %v1498 = vadd.f32 0.0, %v1497
        %1499 = vmatmul.f32.gmra.mxu0 %v1472
        %v1500 = vpop.f32.mrf.mxu0
        %v1501 = vadd.f32 0.0, %v1500
        %1502 = vmatmul.f32.gmra.mxu0 %v1475
        %v1503 = vpop.f32.mrf.mxu0
        %v1504 = vadd.f32 0.0, %v1503
        %1505 = vmatmul.f32.gmra.mxu0 %v1478
        %v1506 = vpop.f32.mrf.mxu0
        %v1507 = vadd.f32 0.0, %v1506
        %1508 = vdwg.mxu0
        %v1509 = vadd.f32 %v1448, %v1498
        %v1510 = vadd.f32 %v1451, %v1501
        %v1511 = vadd.f32 %v1454, %v1504
        %v1512 = vadd.f32 %v1457, %v1507
        %v1513 = vadd.s32 %v584, 1
        %v1514 = vadd.s32 %v585, 1
        %v1515 = vadd.s32 %v586, 1
        %v1516 = vadd.s32 %v587, 1
        %vm1517 = vcmp.gt.s32.totalorder %v1513, 0
        %v1518 = vsel %vm1517, %v1513, 0
        %vm1519 = vcmp.gt.s32.totalorder %v1514, 0
        %v1520 = vsel %vm1519, %v1514, 0
        %vm1521 = vcmp.gt.s32.totalorder %v1515, 0
        %v1522 = vsel %vm1521, %v1515, 0
        %vm1523 = vcmp.gt.s32.totalorder %v1516, 0
        %v1524 = vsel %vm1523, %v1516, 0
        %vm1525 = vcmp.lt.s32.totalorder %v1518, 31
        %v1526 = vsel %vm1525, %v1518, 31
        %vm1527 = vcmp.lt.s32.totalorder %v1520, 31
        %v1528 = vsel %vm1527, %v1520, 31
        %vm1529 = vcmp.lt.s32.totalorder %v1522, 31
        %v1530 = vsel %vm1529, %v1522, 31
        %vm1531 = vcmp.lt.s32.totalorder %v1524, 31
        %v1532 = vsel %vm1531, %v1524, 31
        %vm1533 = vcmp.eq.s32.totalorder %v589, %v1526
        %vm1534 = vcmp.eq.s32.totalorder %v589, %v1528
        %vm1535 = vcmp.eq.s32.totalorder %v589, %v1530
        %vm1536 = vcmp.eq.s32.totalorder %v589, %v1532
        %v1537 = vsel %vm1533, 1, 0
        %v1538 = vsel %vm1534, 1, 0
        %v1539 = vsel %vm1535, 1, 0
        %v1540 = vsel %vm1536, 1, 0
        %v1541 = vcvt.s32.f32 %v1537
        %v1542 = vcvt.s32.f32 %v1538
        %v1543 = vcvt.s32.f32 %v1539
        %v1544 = vcvt.s32.f32 %v1540
        %v1546 = vsel %vm1245, %v1541, 0
        %v1549 = vsel %vm1245, %v1542, 0
        %v1552 = vsel %vm1245, %v1543, 0
        %v1555 = vsel %vm1245, %v1544, 0
        %1557 = vmatpush.msra.mxu0 0.0
        %1558 = vmatpush.msra.mxu0 0.0
        %1559 = vmatpush.msra.mxu0 0.0
        %1560 = vmatpush.msra.mxu0 0.0
        %1561 = vmatpush.msra.mxu0 0.0
        %1562 = vmatpush.msra.mxu0 0.0
        %1563 = vmatpush.msra.mxu0 0.0
        %1564 = vmatpush.msra.mxu0 0.0
        %1565 = vmatpush.msra.mxu0 0.0
        %1566 = vmatpush.msra.mxu0 0.0
        %1567 = vmatpush.msra.mxu0 0.0
        %1568 = vmatpush.msra.mxu0 0.0
        %1569 = vmatpush.msra.mxu0 %v1210
        %1570 = vmatpush.msra.mxu0 %v1209
        %1571 = vmatpush.msra.mxu0 %v1208
        %1572 = vmatpush.msra.mxu0 %v1207
        %1573 = vmatmul.f32.gmra.mxu0 %v1546
        %v1574 = vpop.f32.mrf.mxu0
        %v1575 = vadd.f32 0.0, %v1574
        %1576 = vmatmul.f32.gmra.mxu0 %v1549
        %v1577 = vpop.f32.mrf.mxu0
        %v1578 = vadd.f32 0.0, %v1577
        %1579 = vmatmul.f32.gmra.mxu0 %v1552
        %v1580 = vpop.f32.mrf.mxu0
        %v1581 = vadd.f32 0.0, %v1580
        %1582 = vmatmul.f32.gmra.mxu0 %v1555
        %v1583 = vpop.f32.mrf.mxu0
        %v1584 = vadd.f32 0.0, %v1583
        %1585 = vdwg.mxu0
        %s1586 = scalar_lea.vmem %s2, 192
        %v1587 = vld [vmem:[%s1586] sm:$0xff]
        %v1588 = vld [vmem:[%s1586 + $0x8] sm:$0xff]
        %v1589 = vld [vmem:[%s1586 + $0x10] sm:$0xff]
        %v1590 = vld [vmem:[%s1586 + $0x18] sm:$0xff]
        %v1591 = vld [vmem:[%s1586 + $0x20] sm:$0xff]
        %v1592 = vld [vmem:[%s1586 + $0x28] sm:$0xff]
        %v1593 = vld [vmem:[%s1586 + $0x30] sm:$0xff]
        %v1594 = vld [vmem:[%s1586 + $0x38] sm:$0xff]
        %v1596 = vsel %vm626, %v1575, 0
        %v1599 = vsel %vm626, %v1578, 0
        %v1602 = vsel %vm626, %v1581, 0
        %v1605 = vsel %vm626, %v1584, 0
        %1607 = vmatpush.msra.mxu0 0.0
        %1608 = vmatpush.msra.mxu0 0.0
        %1609 = vmatpush.msra.mxu0 0.0
        %1610 = vmatpush.msra.mxu0 0.0
        %1611 = vmatpush.msra.mxu0 0.0
        %1612 = vmatpush.msra.mxu0 0.0
        %1613 = vmatpush.msra.mxu0 0.0
        %1614 = vmatpush.msra.mxu0 0.0
        %1615 = vmatpush.msra.mxu0 %v1594
        %1616 = vmatpush.msra.mxu0 %v1593
        %1617 = vmatpush.msra.mxu0 %v1592
        %1618 = vmatpush.msra.mxu0 %v1591
        %1619 = vmatpush.msra.mxu0 %v1590
        %1620 = vmatpush.msra.mxu0 %v1589
        %1621 = vmatpush.msra.mxu0 %v1588
        %1622 = vmatpush.msra.mxu0 %v1587
        %1623 = vmatmul.f32.gmra.mxu0 %v1596
        %v1624 = vpop.f32.mrf.mxu0
        %v1625 = vadd.f32 0.0, %v1624
        %1626 = vmatmul.f32.gmra.mxu0 %v1599
        %v1627 = vpop.f32.mrf.mxu0
        %v1628 = vadd.f32 0.0, %v1627
        %1629 = vmatmul.f32.gmra.mxu0 %v1602
        %v1630 = vpop.f32.mrf.mxu0
        %v1631 = vadd.f32 0.0, %v1630
        %1632 = vmatmul.f32.gmra.mxu0 %v1605
        %v1633 = vpop.f32.mrf.mxu0
        %v1634 = vadd.f32 0.0, %v1633
        %1635 = vdwg.mxu0
        %v1636 = vadd.f32 %v1509, %v1625
        %v1637 = vadd.f32 %v1510, %v1628
        %v1638 = vadd.f32 %v1511, %v1631
        %v1639 = vadd.f32 %v1512, %v1634
        %v1640 = vadd.s32 %v584, 2
        %v1641 = vadd.s32 %v585, 2
        %v1642 = vadd.s32 %v586, 2
        %v1643 = vadd.s32 %v587, 2
        %vm1644 = vcmp.gt.s32.totalorder %v1640, 0
        %v1645 = vsel %vm1644, %v1640, 0
        %vm1646 = vcmp.gt.s32.totalorder %v1641, 0
        %v1647 = vsel %vm1646, %v1641, 0
        %vm1648 = vcmp.gt.s32.totalorder %v1642, 0
        %v1649 = vsel %vm1648, %v1642, 0
        %vm1650 = vcmp.gt.s32.totalorder %v1643, 0
        %v1651 = vsel %vm1650, %v1643, 0
        %vm1652 = vcmp.lt.s32.totalorder %v1645, 31
        %v1653 = vsel %vm1652, %v1645, 31
        %vm1654 = vcmp.lt.s32.totalorder %v1647, 31
        %v1655 = vsel %vm1654, %v1647, 31
        %vm1656 = vcmp.lt.s32.totalorder %v1649, 31
        %v1657 = vsel %vm1656, %v1649, 31
        %vm1658 = vcmp.lt.s32.totalorder %v1651, 31
        %v1659 = vsel %vm1658, %v1651, 31
        %vm1660 = vcmp.eq.s32.totalorder %v589, %v1653
        %vm1661 = vcmp.eq.s32.totalorder %v589, %v1655
        %vm1662 = vcmp.eq.s32.totalorder %v589, %v1657
        %vm1663 = vcmp.eq.s32.totalorder %v589, %v1659
        %v1664 = vsel %vm1660, 1, 0
        %v1665 = vsel %vm1661, 1, 0
        %v1666 = vsel %vm1662, 1, 0
        %v1667 = vsel %vm1663, 1, 0
        %v1668 = vcvt.s32.f32 %v1664
        %v1669 = vcvt.s32.f32 %v1665
        %v1670 = vcvt.s32.f32 %v1666
        %v1671 = vcvt.s32.f32 %v1667
        %v1673 = vsel %vm1245, %v1668, 0
        %v1676 = vsel %vm1245, %v1669, 0
        %v1679 = vsel %vm1245, %v1670, 0
        %v1682 = vsel %vm1245, %v1671, 0
        %1684 = vmatpush.msra.mxu0 0.0
        %1685 = vmatpush.msra.mxu0 0.0
        %1686 = vmatpush.msra.mxu0 0.0
        %1687 = vmatpush.msra.mxu0 0.0
        %1688 = vmatpush.msra.mxu0 0.0
        %1689 = vmatpush.msra.mxu0 0.0
        %1690 = vmatpush.msra.mxu0 0.0
        %1691 = vmatpush.msra.mxu0 0.0
        %1692 = vmatpush.msra.mxu0 0.0
        %1693 = vmatpush.msra.mxu0 0.0
        %1694 = vmatpush.msra.mxu0 0.0
        %1695 = vmatpush.msra.mxu0 0.0
        %1696 = vmatpush.msra.mxu0 %v1210
        %1697 = vmatpush.msra.mxu0 %v1209
        %1698 = vmatpush.msra.mxu0 %v1208
        %1699 = vmatpush.msra.mxu0 %v1207
        %1700 = vmatmul.f32.gmra.mxu0 %v1673
        %v1701 = vpop.f32.mrf.mxu0
        %v1702 = vadd.f32 0.0, %v1701
        %1703 = vmatmul.f32.gmra.mxu0 %v1676
        %v1704 = vpop.f32.mrf.mxu0
        %v1705 = vadd.f32 0.0, %v1704
        %1706 = vmatmul.f32.gmra.mxu0 %v1679
        %v1707 = vpop.f32.mrf.mxu0
        %v1708 = vadd.f32 0.0, %v1707
        %1709 = vmatmul.f32.gmra.mxu0 %v1682
        %v1710 = vpop.f32.mrf.mxu0
        %v1711 = vadd.f32 0.0, %v1710
        %1712 = vdwg.mxu0
        %s1713 = scalar_lea.vmem %s2, 256
        %v1714 = vld [vmem:[%s1713] sm:$0xff]
        %v1715 = vld [vmem:[%s1713 + $0x8] sm:$0xff]
        %v1716 = vld [vmem:[%s1713 + $0x10] sm:$0xff]
        %v1717 = vld [vmem:[%s1713 + $0x18] sm:$0xff]
        %v1718 = vld [vmem:[%s1713 + $0x20] sm:$0xff]
        %v1719 = vld [vmem:[%s1713 + $0x28] sm:$0xff]
        %v1720 = vld [vmem:[%s1713 + $0x30] sm:$0xff]
        %v1721 = vld [vmem:[%s1713 + $0x38] sm:$0xff]
        %v1723 = vsel %vm626, %v1702, 0
        %v1726 = vsel %vm626, %v1705, 0
        %v1729 = vsel %vm626, %v1708, 0
        %v1732 = vsel %vm626, %v1711, 0
        %1734 = vmatpush.msra.mxu0 0.0
        %1735 = vmatpush.msra.mxu0 0.0
        %1736 = vmatpush.msra.mxu0 0.0
        %1737 = vmatpush.msra.mxu0 0.0
        %1738 = vmatpush.msra.mxu0 0.0
        %1739 = vmatpush.msra.mxu0 0.0
        %1740 = vmatpush.msra.mxu0 0.0
        %1741 = vmatpush.msra.mxu0 0.0
        %1742 = vmatpush.msra.mxu0 %v1721
        %1743 = vmatpush.msra.mxu0 %v1720
        %1744 = vmatpush.msra.mxu0 %v1719
        %1745 = vmatpush.msra.mxu0 %v1718
        %1746 = vmatpush.msra.mxu0 %v1717
        %1747 = vmatpush.msra.mxu0 %v1716
        %1748 = vmatpush.msra.mxu0 %v1715
        %1749 = vmatpush.msra.mxu0 %v1714
        %1750 = vmatmul.f32.gmra.mxu0 %v1723
        %v1751 = vpop.f32.mrf.mxu0
        %v1752 = vadd.f32 0.0, %v1751
        %1753 = vmatmul.f32.gmra.mxu0 %v1726
        %v1754 = vpop.f32.mrf.mxu0
        %v1755 = vadd.f32 0.0, %v1754
        %1756 = vmatmul.f32.gmra.mxu0 %v1729
        %v1757 = vpop.f32.mrf.mxu0
        %v1758 = vadd.f32 0.0, %v1757
        %1759 = vmatmul.f32.gmra.mxu0 %v1732
        %v1760 = vpop.f32.mrf.mxu0
        %v1761 = vadd.f32 0.0, %v1760
        %1762 = vdwg.mxu0
        %v1763 = vadd.f32 %v1636, %v1752
        %v1764 = vadd.f32 %v1637, %v1755
        %v1765 = vadd.f32 %v1638, %v1758
        %v1766 = vadd.f32 %v1639, %v1761
        %v1767 = vperm.slane %v1212, 0
        %v1768 = vadd.f32 %v1763, %v1767
        %v1769 = vadd.f32 %v1764, %v1767
        %v1770 = vadd.f32 %v1765, %v1767
        %v1771 = vadd.f32 %v1766, %v1767
        %v1772 = vmul.f32 %v1768, 0.2
        %v1773 = vmul.f32 %v1769, 0.2
        %v1774 = vmul.f32 %v1770, 0.2
        %v1775 = vmul.f32 %v1771, 0.2
        %v1776 = vmax.f32 %v1768, %v1772
        %v1777 = vmax.f32 %v1769, %v1773
        %v1778 = vmax.f32 %v1770, %v1774
        %v1779 = vmax.f32 %v1771, %v1775
        %v1780 = vperm.slane %v1212, 1
        %v1781 = vmul.f32 %v1776, %v1780
        %v1782 = vmul.f32 %v1777, %v1780
        %v1783 = vmul.f32 %v1778, %v1780
        %v1784 = vmul.f32 %v1779, %v1780
        %v1785 = vperm.slane %v1212, 2
        %v1786 = vadd.f32 %v1781, %v1785
        %v1787 = vadd.f32 %v1782, %v1785
        %v1788 = vadd.f32 %v1783, %v1785
        %v1789 = vadd.f32 %v1784, %v1785
        %vm1790 = vcmp.eq.s32.totalorder %v589, %v590
        %vm1791 = vcmp.eq.s32.totalorder %v589, %v591
        %v1792 = vsel %vm1790, 1, 0
        %v1793 = vsel %vm1791, 1, 0
        %v1794 = vcvt.s32.f32 %v1792
        %v1795 = vcvt.s32.f32 %v1793
        %v1797 = vsel %vm1245, %v1794, 0
        %v1800 = vsel %vm1245, %v1795, 0
        %1802 = vmatpush.msra.mxu0 0.0
        %1803 = vmatpush.msra.mxu0 0.0
        %1804 = vmatpush.msra.mxu0 0.0
        %1805 = vmatpush.msra.mxu0 0.0
        %1806 = vmatpush.msra.mxu0 0.0
        %1807 = vmatpush.msra.mxu0 0.0
        %1808 = vmatpush.msra.mxu0 0.0
        %1809 = vmatpush.msra.mxu0 0.0
        %1810 = vmatpush.msra.mxu0 0.0
        %1811 = vmatpush.msra.mxu0 0.0
        %1812 = vmatpush.msra.mxu0 0.0
        %1813 = vmatpush.msra.mxu0 0.0
        %1814 = vmatpush.msra.mxu0 %v1789
        %1815 = vmatpush.msra.mxu0 %v1788
        %1816 = vmatpush.msra.mxu0 %v1787
        %1817 = vmatpush.msra.mxu0 %v1786
        %1818 = vmatmul.f32.gmra.mxu0 %v1797
        %v1819 = vpop.f32.mrf.mxu0
        %v1820 = vadd.f32 0.0, %v1819
        %1821 = vmatmul.f32.gmra.mxu0 %v1800
        %v1822 = vpop.f32.mrf.mxu0
        %v1823 = vadd.f32 0.0, %v1822
        %1824 = vdwg.mxu0
        %vm1825 = vcmp.eq.s32.totalorder %v589, %v946
        %vm1826 = vcmp.eq.s32.totalorder %v589, %v947
        %v1827 = vsel %vm1825, 1, 0
        %v1828 = vsel %vm1826, 1, 0
        %v1829 = vcvt.s32.f32 %v1827
        %v1830 = vcvt.s32.f32 %v1828
        %v1832 = vsel %vm1245, %v1829, 0
        %v1835 = vsel %vm1245, %v1830, 0
        %1837 = vmatpush.msra.mxu0 0.0
        %1838 = vmatpush.msra.mxu0 0.0
        %1839 = vmatpush.msra.mxu0 0.0
        %1840 = vmatpush.msra.mxu0 0.0
        %1841 = vmatpush.msra.mxu0 0.0
        %1842 = vmatpush.msra.mxu0 0.0
        %1843 = vmatpush.msra.mxu0 0.0
        %1844 = vmatpush.msra.mxu0 0.0
        %1845 = vmatpush.msra.mxu0 0.0
        %1846 = vmatpush.msra.mxu0 0.0
        %1847 = vmatpush.msra.mxu0 0.0
        %1848 = vmatpush.msra.mxu0 0.0
        %1849 = vmatpush.msra.mxu0 %v1789
        %1850 = vmatpush.msra.mxu0 %v1788
        %1851 = vmatpush.msra.mxu0 %v1787
        %1852 = vmatpush.msra.mxu0 %v1786
        %1853 = vmatmul.f32.gmra.mxu0 %v1832
        %v1854 = vpop.f32.mrf.mxu0
        %v1855 = vadd.f32 0.0, %v1854
        %1856 = vmatmul.f32.gmra.mxu0 %v1835
        %v1857 = vpop.f32.mrf.mxu0
        %v1858 = vadd.f32 0.0, %v1857
        %1859 = vdwg.mxu0
        %v1860 = vmax.f32 %v1820, %v1855
        %v1861 = vmax.f32 %v1823, %v1858
        %s1862 = scalar_lea.vmem %s3, 8
        %v1863 = vld [vmem:[%s1862] sm:$0x7]
        %vm1864 = vcmp.lt.s32.totalorder %v1218, 15
        %v1865 = vsel %vm1864, %v1218, 15
        %vm1866 = vcmp.lt.s32.totalorder %v1220, 15
        %v1867 = vsel %vm1866, %v1220, 15
        %vm1868 = vcmp.eq.s32.totalorder %v589, %v1865
        %vm1869 = vcmp.eq.s32.totalorder %v589, %v1867
        %v1870 = vsel %vm1868, 1, 0
        %v1871 = vsel %vm1869, 1, 0
        %v1872 = vcvt.s32.f32 %v1870
        %v1873 = vcvt.s32.f32 %v1871
        %v1875 = vsel %vm746, %v1872, 0
        %v1878 = vsel %vm746, %v1873, 0
        %1880 = vmatpush.msra.mxu0 0.0
        %1881 = vmatpush.msra.mxu0 0.0
        %1882 = vmatpush.msra.mxu0 0.0
        %1883 = vmatpush.msra.mxu0 0.0
        %1884 = vmatpush.msra.mxu0 0.0
        %1885 = vmatpush.msra.mxu0 0.0
        %1886 = vmatpush.msra.mxu0 0.0
        %1887 = vmatpush.msra.mxu0 0.0
        %1888 = vmatpush.msra.mxu0 0.0
        %1889 = vmatpush.msra.mxu0 0.0
        %1890 = vmatpush.msra.mxu0 0.0
        %1891 = vmatpush.msra.mxu0 0.0
        %1892 = vmatpush.msra.mxu0 0.0
        %1893 = vmatpush.msra.mxu0 0.0
        %1894 = vmatpush.msra.mxu0 %v1861
        %1895 = vmatpush.msra.mxu0 %v1860
        %1896 = vmatmul.f32.gmra.mxu0 %v1875
        %v1897 = vpop.f32.mrf.mxu0
        %v1898 = vadd.f32 0.0, %v1897
        %1899 = vmatmul.f32.gmra.mxu0 %v1878
        %v1900 = vpop.f32.mrf.mxu0
        %v1901 = vadd.f32 0.0, %v1900
        %1902 = vdwg.mxu0
        %s1903 = scalar_lea.vmem %s2, 320
        %v1904 = vld [vmem:[%s1903] sm:$0xff]
        %v1905 = vld [vmem:[%s1903 + $0x8] sm:$0xff]
        %v1906 = vld [vmem:[%s1903 + $0x10] sm:$0xff]
        %v1907 = vld [vmem:[%s1903 + $0x18] sm:$0xff]
        %v1908 = vld [vmem:[%s1903 + $0x20] sm:$0xff]
        %v1909 = vld [vmem:[%s1903 + $0x28] sm:$0xff]
        %v1910 = vld [vmem:[%s1903 + $0x30] sm:$0xff]
        %v1911 = vld [vmem:[%s1903 + $0x38] sm:$0xff]
        %vm1912 = vcmp.lt.s32.totalorder %v1300, 15
        %v1913 = vsel %vm1912, %v1300, 15
        %vm1914 = vcmp.lt.s32.totalorder %v1302, 15
        %v1915 = vsel %vm1914, %v1302, 15
        %vm1916 = vcmp.eq.s32.totalorder %v589, %v1913
        %vm1917 = vcmp.eq.s32.totalorder %v589, %v1915
        %v1918 = vsel %vm1916, 1, 0
        %v1919 = vsel %vm1917, 1, 0
        %v1920 = vcvt.s32.f32 %v1918
        %v1921 = vcvt.s32.f32 %v1919
        %v1923 = vsel %vm746, %v1920, 0
        %v1926 = vsel %vm746, %v1921, 0
        %1928 = vmatpush.msra.mxu0 0.0
        %1929 = vmatpush.msra.mxu0 0.0
        %1930 = vmatpush.msra.mxu0 0.0
        %1931 = vmatpush.msra.mxu0 0.0
        %1932 = vmatpush.msra.mxu0 0.0
        %1933 = vmatpush.msra.mxu0 0.0
        %1934 = vmatpush.msra.mxu0 0.0
        %1935 = vmatpush.msra.mxu0 0.0
        %1936 = vmatpush.msra.mxu0 0.0
        %1937 = vmatpush.msra.mxu0 0.0
        %1938 = vmatpush.msra.mxu0 0.0
        %1939 = vmatpush.msra.mxu0 0.0
        %1940 = vmatpush.msra.mxu0 0.0
        %1941 = vmatpush.msra.mxu0 0.0
        %1942 = vmatpush.msra.mxu0 %v1861
        %1943 = vmatpush.msra.mxu0 %v1860
        %1944 = vmatmul.f32.gmra.mxu0 %v1923
        %v1945 = vpop.f32.mrf.mxu0
        %v1946 = vadd.f32 0.0, %v1945
        %1947 = vmatmul.f32.gmra.mxu0 %v1926
        %v1948 = vpop.f32.mrf.mxu0
        %v1949 = vadd.f32 0.0, %v1948
        %1950 = vdwg.mxu0
        %s1951 = scalar_lea.vmem %s2, 384
        %v1952 = vld [vmem:[%s1951] sm:$0xff]
        %v1953 = vld [vmem:[%s1951 + $0x8] sm:$0xff]
        %v1954 = vld [vmem:[%s1951 + $0x10] sm:$0xff]
        %v1955 = vld [vmem:[%s1951 + $0x18] sm:$0xff]
        %v1956 = vld [vmem:[%s1951 + $0x20] sm:$0xff]
        %v1957 = vld [vmem:[%s1951 + $0x28] sm:$0xff]
        %v1958 = vld [vmem:[%s1951 + $0x30] sm:$0xff]
        %v1959 = vld [vmem:[%s1951 + $0x38] sm:$0xff]
        %v1961 = vsel %vm626, %v1946, 0
        %v1964 = vsel %vm626, %v1949, 0
        %1966 = vmatpush.msra.mxu0 0.0
        %1967 = vmatpush.msra.mxu0 0.0
        %1968 = vmatpush.msra.mxu0 0.0
        %1969 = vmatpush.msra.mxu0 0.0
        %1970 = vmatpush.msra.mxu0 0.0
        %1971 = vmatpush.msra.mxu0 0.0
        %1972 = vmatpush.msra.mxu0 0.0
        %1973 = vmatpush.msra.mxu0 0.0
        %1974 = vmatpush.msra.mxu0 %v1959
        %1975 = vmatpush.msra.mxu0 %v1958
        %1976 = vmatpush.msra.mxu0 %v1957
        %1977 = vmatpush.msra.mxu0 %v1956
        %1978 = vmatpush.msra.mxu0 %v1955
        %1979 = vmatpush.msra.mxu0 %v1954
        %1980 = vmatpush.msra.mxu0 %v1953
        %1981 = vmatpush.msra.mxu0 %v1952
        %1982 = vmatmul.f32.gmra.mxu0 %v1961
        %v1983 = vpop.f32.mrf.mxu0
        %v1984 = vadd.f32 0.0, %v1983
        %1985 = vmatmul.f32.gmra.mxu0 %v1964
        %v1986 = vpop.f32.mrf.mxu0
        %v1987 = vadd.f32 0.0, %v1986
        %1988 = vdwg.mxu0
        %v1990 = vsel %vm626, %v1898, 0
        %v1993 = vsel %vm626, %v1901, 0
        %1995 = vmatpush.msra.mxu0 0.0
        %1996 = vmatpush.msra.mxu0 0.0
        %1997 = vmatpush.msra.mxu0 0.0
        %1998 = vmatpush.msra.mxu0 0.0
        %1999 = vmatpush.msra.mxu0 0.0
        %2000 = vmatpush.msra.mxu0 0.0
        %2001 = vmatpush.msra.mxu0 0.0
        %2002 = vmatpush.msra.mxu0 0.0
        %2003 = vmatpush.msra.mxu0 %v1911
        %2004 = vmatpush.msra.mxu0 %v1910
        %2005 = vmatpush.msra.mxu0 %v1909
        %2006 = vmatpush.msra.mxu0 %v1908
        %2007 = vmatpush.msra.mxu0 %v1907
        %2008 = vmatpush.msra.mxu0 %v1906
        %2009 = vmatpush.msra.mxu0 %v1905
        %2010 = vmatpush.msra.mxu0 %v1904
        %2011 = vmatmul.f32.gmra.mxu0 %v1990
        %v2012 = vpop.f32.mrf.mxu0
        %v2013 = vadd.f32 %v1984, %v2012
        %2014 = vmatmul.f32.gmra.mxu0 %v1993
        %v2015 = vpop.f32.mrf.mxu0
        %v2016 = vadd.f32 %v1987, %v2015
        %2017 = vdwg.mxu0
        %s2018 = scalar_lea.vmem %s2, 448
        %v2019 = vld [vmem:[%s2018] sm:$0xff]
        %v2020 = vld [vmem:[%s2018 + $0x8] sm:$0xff]
        %v2021 = vld [vmem:[%s2018 + $0x10] sm:$0xff]
        %v2022 = vld [vmem:[%s2018 + $0x18] sm:$0xff]
        %v2023 = vld [vmem:[%s2018 + $0x20] sm:$0xff]
        %v2024 = vld [vmem:[%s2018 + $0x28] sm:$0xff]
        %v2025 = vld [vmem:[%s2018 + $0x30] sm:$0xff]
        %v2026 = vld [vmem:[%s2018 + $0x38] sm:$0xff]
        %v2028 = vsel %vm626, %v1860, 0
        %v2031 = vsel %vm626, %v1861, 0
        %2033 = vmatpush.msra.mxu0 0.0
        %2034 = vmatpush.msra.mxu0 0.0
        %2035 = vmatpush.msra.mxu0 0.0
        %2036 = vmatpush.msra.mxu0 0.0
        %2037 = vmatpush.msra.mxu0 0.0
        %2038 = vmatpush.msra.mxu0 0.0
        %2039 = vmatpush.msra.mxu0 0.0
        %2040 = vmatpush.msra.mxu0 0.0
        %2041 = vmatpush.msra.mxu0 %v2026
        %2042 = vmatpush.msra.mxu0 %v2025
        %2043 = vmatpush.msra.mxu0 %v2024
        %2044 = vmatpush.msra.mxu0 %v2023
        %2045 = vmatpush.msra.mxu0 %v2022
        %2046 = vmatpush.msra.mxu0 %v2021
        %2047 = vmatpush.msra.mxu0 %v2020
        %2048 = vmatpush.msra.mxu0 %v2019
        %2049 = vmatmul.f32.gmra.mxu0 %v2028
        %v2050 = vpop.f32.mrf.mxu0
        %v2051 = vadd.f32 0.0, %v2050
        %2052 = vmatmul.f32.gmra.mxu0 %v2031
        %v2053 = vpop.f32.mrf.mxu0
        %v2054 = vadd.f32 0.0, %v2053
        %2055 = vdwg.mxu0
        %v2056 = vadd.f32 %v2013, %v2051
        %v2057 = vadd.f32 %v2016, %v2054
        %vm2058 = vcmp.lt.s32.totalorder %v1518, 15
        %v2059 = vsel %vm2058, %v1518, 15
        %vm2060 = vcmp.lt.s32.totalorder %v1520, 15
        %v2061 = vsel %vm2060, %v1520, 15
        %vm2062 = vcmp.eq.s32.totalorder %v589, %v2059
        %vm2063 = vcmp.eq.s32.totalorder %v589, %v2061
        %v2064 = vsel %vm2062, 1, 0
        %v2065 = vsel %vm2063, 1, 0
        %v2066 = vcvt.s32.f32 %v2064
        %v2067 = vcvt.s32.f32 %v2065
        %v2069 = vsel %vm746, %v2066, 0
        %v2072 = vsel %vm746, %v2067, 0
        %2074 = vmatpush.msra.mxu0 0.0
        %2075 = vmatpush.msra.mxu0 0.0
        %2076 = vmatpush.msra.mxu0 0.0
        %2077 = vmatpush.msra.mxu0 0.0
        %2078 = vmatpush.msra.mxu0 0.0
        %2079 = vmatpush.msra.mxu0 0.0
        %2080 = vmatpush.msra.mxu0 0.0
        %2081 = vmatpush.msra.mxu0 0.0
        %2082 = vmatpush.msra.mxu0 0.0
        %2083 = vmatpush.msra.mxu0 0.0
        %2084 = vmatpush.msra.mxu0 0.0
        %2085 = vmatpush.msra.mxu0 0.0
        %2086 = vmatpush.msra.mxu0 0.0
        %2087 = vmatpush.msra.mxu0 0.0
        %2088 = vmatpush.msra.mxu0 %v1861
        %2089 = vmatpush.msra.mxu0 %v1860
        %2090 = vmatmul.f32.gmra.mxu0 %v2069
        %v2091 = vpop.f32.mrf.mxu0
        %v2092 = vadd.f32 0.0, %v2091
        %2093 = vmatmul.f32.gmra.mxu0 %v2072
        %v2094 = vpop.f32.mrf.mxu0
        %v2095 = vadd.f32 0.0, %v2094
        %2096 = vdwg.mxu0
        %s2097 = scalar_lea.vmem %s2, 512
        %v2098 = vld [vmem:[%s2097] sm:$0xff]
        %v2099 = vld [vmem:[%s2097 + $0x8] sm:$0xff]
        %v2100 = vld [vmem:[%s2097 + $0x10] sm:$0xff]
        %v2101 = vld [vmem:[%s2097 + $0x18] sm:$0xff]
        %v2102 = vld [vmem:[%s2097 + $0x20] sm:$0xff]
        %v2103 = vld [vmem:[%s2097 + $0x28] sm:$0xff]
        %v2104 = vld [vmem:[%s2097 + $0x30] sm:$0xff]
        %v2105 = vld [vmem:[%s2097 + $0x38] sm:$0xff]
        %v2107 = vsel %vm626, %v2092, 0
        %v2110 = vsel %vm626, %v2095, 0
        %2112 = vmatpush.msra.mxu0 0.0
        %2113 = vmatpush.msra.mxu0 0.0
        %2114 = vmatpush.msra.mxu0 0.0
        %2115 = vmatpush.msra.mxu0 0.0
        %2116 = vmatpush.msra.mxu0 0.0
        %2117 = vmatpush.msra.mxu0 0.0
        %2118 = vmatpush.msra.mxu0 0.0
        %2119 = vmatpush.msra.mxu0 0.0
        %2120 = vmatpush.msra.mxu0 %v2105
        %2121 = vmatpush.msra.mxu0 %v2104
        %2122 = vmatpush.msra.mxu0 %v2103
        %2123 = vmatpush.msra.mxu0 %v2102
        %2124 = vmatpush.msra.mxu0 %v2101
        %2125 = vmatpush.msra.mxu0 %v2100
        %2126 = vmatpush.msra.mxu0 %v2099
        %2127 = vmatpush.msra.mxu0 %v2098
        %2128 = vmatmul.f32.gmra.mxu0 %v2107
        %v2129 = vpop.f32.mrf.mxu0
        %v2130 = vadd.f32 0.0, %v2129
        %2131 = vmatmul.f32.gmra.mxu0 %v2110
        %v2132 = vpop.f32.mrf.mxu0
        %v2133 = vadd.f32 0.0, %v2132
        %2134 = vdwg.mxu0
        %v2135 = vadd.f32 %v2056, %v2130
        %v2136 = vadd.f32 %v2057, %v2133
        %vm2137 = vcmp.lt.s32.totalorder %v1645, 15
        %v2138 = vsel %vm2137, %v1645, 15
        %vm2139 = vcmp.lt.s32.totalorder %v1647, 15
        %v2140 = vsel %vm2139, %v1647, 15
        %vm2141 = vcmp.eq.s32.totalorder %v589, %v2138
        %vm2142 = vcmp.eq.s32.totalorder %v589, %v2140
        %v2143 = vsel %vm2141, 1, 0
        %v2144 = vsel %vm2142, 1, 0
        %v2145 = vcvt.s32.f32 %v2143
        %v2146 = vcvt.s32.f32 %v2144
        %v2148 = vsel %vm746, %v2145, 0
        %v2151 = vsel %vm746, %v2146, 0
        %2153 = vmatpush.msra.mxu0 0.0
        %2154 = vmatpush.msra.mxu0 0.0
        %2155 = vmatpush.msra.mxu0 0.0
        %2156 = vmatpush.msra.mxu0 0.0
        %2157 = vmatpush.msra.mxu0 0.0
        %2158 = vmatpush.msra.mxu0 0.0
        %2159 = vmatpush.msra.mxu0 0.0
        %2160 = vmatpush.msra.mxu0 0.0
        %2161 = vmatpush.msra.mxu0 0.0
        %2162 = vmatpush.msra.mxu0 0.0
        %2163 = vmatpush.msra.mxu0 0.0
        %2164 = vmatpush.msra.mxu0 0.0
        %2165 = vmatpush.msra.mxu0 0.0
        %2166 = vmatpush.msra.mxu0 0.0
        %2167 = vmatpush.msra.mxu0 %v1861
        %2168 = vmatpush.msra.mxu0 %v1860
        %2169 = vmatmul.f32.gmra.mxu0 %v2148
        %v2170 = vpop.f32.mrf.mxu0
        %v2171 = vadd.f32 0.0, %v2170
        %2172 = vmatmul.f32.gmra.mxu0 %v2151
        %v2173 = vpop.f32.mrf.mxu0
        %v2174 = vadd.f32 0.0, %v2173
        %2175 = vdwg.mxu0
        %s2176 = scalar_lea.vmem %s2, 576
        %v2177 = vld [vmem:[%s2176] sm:$0xff]
        %v2178 = vld [vmem:[%s2176 + $0x8] sm:$0xff]
        %v2179 = vld [vmem:[%s2176 + $0x10] sm:$0xff]
        %v2180 = vld [vmem:[%s2176 + $0x18] sm:$0xff]
        %v2181 = vld [vmem:[%s2176 + $0x20] sm:$0xff]
        %v2182 = vld [vmem:[%s2176 + $0x28] sm:$0xff]
        %v2183 = vld [vmem:[%s2176 + $0x30] sm:$0xff]
        %v2184 = vld [vmem:[%s2176 + $0x38] sm:$0xff]
        %v2186 = vsel %vm626, %v2171, 0
        %v2189 = vsel %vm626, %v2174, 0
        %2191 = vmatpush.msra.mxu0 0.0
        %2192 = vmatpush.msra.mxu0 0.0
        %2193 = vmatpush.msra.mxu0 0.0
        %2194 = vmatpush.msra.mxu0 0.0
        %2195 = vmatpush.msra.mxu0 0.0
        %2196 = vmatpush.msra.mxu0 0.0
        %2197 = vmatpush.msra.mxu0 0.0
        %2198 = vmatpush.msra.mxu0 0.0
        %2199 = vmatpush.msra.mxu0 %v2184
        %2200 = vmatpush.msra.mxu0 %v2183
        %2201 = vmatpush.msra.mxu0 %v2182
        %2202 = vmatpush.msra.mxu0 %v2181
        %2203 = vmatpush.msra.mxu0 %v2180
        %2204 = vmatpush.msra.mxu0 %v2179
        %2205 = vmatpush.msra.mxu0 %v2178
        %2206 = vmatpush.msra.mxu0 %v2177
        %2207 = vmatmul.f32.gmra.mxu0 %v2186
        %v2208 = vpop.f32.mrf.mxu0
        %v2209 = vadd.f32 0.0, %v2208
        %2210 = vmatmul.f32.gmra.mxu0 %v2189
        %v2211 = vpop.f32.mrf.mxu0
        %v2212 = vadd.f32 0.0, %v2211
        %2213 = vdwg.mxu0
        %v2214 = vadd.f32 %v2135, %v2209
        %v2215 = vadd.f32 %v2136, %v2212
        %v2216 = vperm.slane %v1863, 0
        %v2217 = vadd.f32 %v2214, %v2216
        %v2218 = vadd.f32 %v2215, %v2216
        %v2219 = vmul.f32 %v2217, 0.2
        %v2220 = vmul.f32 %v2218, 0.2
        %v2221 = vmax.f32 %v2217, %v2219
        %v2222 = vmax.f32 %v2218, %v2220
        %v2223 = vperm.slane %v1863, 1
        %v2224 = vmul.f32 %v2221, %v2223
        %v2225 = vmul.f32 %v2222, %v2223
        %v2226 = vperm.slane %v1863, 2
        %v2227 = vadd.f32 %v2224, %v2226
        %v2228 = vadd.f32 %v2225, %v2226
        %v2229 = vsel %vm746, %v1794, 0
        %2231 = vmatpush.msra.mxu0 0.0
        %2232 = vmatpush.msra.mxu0 0.0
        %2233 = vmatpush.msra.mxu0 0.0
        %2234 = vmatpush.msra.mxu0 0.0
        %2235 = vmatpush.msra.mxu0 0.0
        %2236 = vmatpush.msra.mxu0 0.0
        %2237 = vmatpush.msra.mxu0 0.0
        %2238 = vmatpush.msra.mxu0 0.0
        %2239 = vmatpush.msra.mxu0 0.0
        %2240 = vmatpush.msra.mxu0 0.0
        %2241 = vmatpush.msra.mxu0 0.0
        %2242 = vmatpush.msra.mxu0 0.0
        %2243 = vmatpush.msra.mxu0 0.0
        %2244 = vmatpush.msra.mxu0 0.0
        %2245 = vmatpush.msra.mxu0 %v2228
        %2246 = vmatpush.msra.mxu0 %v2227
        %2247 = vmatmul.f32.gmra.mxu0 %v2229
        %v2248 = vpop.f32.mrf.mxu0
        %v2249 = vadd.f32 0.0, %v2248
        %2250 = vdwg.mxu0
        %v2251 = vsel %vm746, %v1829, 0
        %2253 = vmatpush.msra.mxu0 0.0
        %2254 = vmatpush.msra.mxu0 0.0
        %2255 = vmatpush.msra.mxu0 0.0
        %2256 = vmatpush.msra.mxu0 0.0
        %2257 = vmatpush.msra.mxu0 0.0
        %2258 = vmatpush.msra.mxu0 0.0
        %2259 = vmatpush.msra.mxu0 0.0
        %2260 = vmatpush.msra.mxu0 0.0
        %2261 = vmatpush.msra.mxu0 0.0
        %2262 = vmatpush.msra.mxu0 0.0
        %2263 = vmatpush.msra.mxu0 0.0
        %2264 = vmatpush.msra.mxu0 0.0
        %2265 = vmatpush.msra.mxu0 0.0
        %2266 = vmatpush.msra.mxu0 0.0
        %2267 = vmatpush.msra.mxu0 %v2228
        %2268 = vmatpush.msra.mxu0 %v2227
        %2269 = vmatmul.f32.gmra.mxu0 %v2251
        %v2270 = vpop.f32.mrf.mxu0
        %v2271 = vadd.f32 0.0, %v2270
        %2272 = vdwg.mxu0
        %v2273 = vmax.f32 %v2249, %v2271
        %v2274 = vld [vmem:[%s4] sm:$0xff]
        %v2275 = vld [vmem:[%s4 + $0x8] sm:$0xff]
        %v2276 = vld [vmem:[%s4 + $0x10] sm:$0xff]
        %v2277 = vld [vmem:[%s4 + $0x18] sm:$0xff]
        %v2278 = vld [vmem:[%s4 + $0x20] sm:$0xff]
        %v2279 = vld [vmem:[%s4 + $0x28] sm:$0xff]
        %v2280 = vld [vmem:[%s4 + $0x30] sm:$0xff]
        %v2281 = vld [vmem:[%s4 + $0x38] sm:$0xff]
        %v2282 = vld [vmem:[%s5] sm:$0x1]
        %v2284 = vperm.slane %v2282, 0
        %v2287 = vsel %vm626, %v2273, 0
        %2289 = vmatpush.msra.mxu0 0.0
        %2290 = vmatpush.msra.mxu0 0.0
        %2291 = vmatpush.msra.mxu0 0.0
        %2292 = vmatpush.msra.mxu0 0.0
        %2293 = vmatpush.msra.mxu0 0.0
        %2294 = vmatpush.msra.mxu0 0.0
        %2295 = vmatpush.msra.mxu0 0.0
        %2296 = vmatpush.msra.mxu0 0.0
        %2297 = vmatpush.msra.mxu0 %v2281
        %2298 = vmatpush.msra.mxu0 %v2280
        %2299 = vmatpush.msra.mxu0 %v2279
        %2300 = vmatpush.msra.mxu0 %v2278
        %2301 = vmatpush.msra.mxu0 %v2277
        %2302 = vmatpush.msra.mxu0 %v2276
        %2303 = vmatpush.msra.mxu0 %v2275
        %2304 = vmatpush.msra.mxu0 %v2274
        %2305 = vmatmul.f32.gmra.mxu0 %v2287
        %v2306 = vpop.f32.mrf.mxu0
        %v2307 = vadd.f32 %v2284, %v2306
        %2308 = vdwg.mxu0
        %v2309 = vld [vmem:[%s6] sm:$0xff]
        %v2310 = vld [vmem:[%s6 + $0x8] sm:$0xff]
        %v2311 = vld [vmem:[%s6 + $0x10] sm:$0xff]
        %v2312 = vld [vmem:[%s6 + $0x18] sm:$0xff]
        %v2313 = vld [vmem:[%s6 + $0x20] sm:$0xff]
        %v2314 = vld [vmem:[%s6 + $0x28] sm:$0xff]
        %v2315 = vld [vmem:[%s6 + $0x30] sm:$0xff]
        %v2316 = vld [vmem:[%s6 + $0x38] sm:$0xff]
        %v2317 = vld [vmem:[%s6 + $0x40] sm:$0xff]
        %v2318 = vld [vmem:[%s6 + $0x48] sm:$0xff]
        %v2319 = vld [vmem:[%s6 + $0x50] sm:$0xff]
        %v2320 = vld [vmem:[%s6 + $0x58] sm:$0xff]
        %v2321 = vld [vmem:[%s6 + $0x60] sm:$0xff]
        %v2322 = vld [vmem:[%s6 + $0x68] sm:$0xff]
        %v2323 = vld [vmem:[%s6 + $0x70] sm:$0xff]
        %v2324 = vld [vmem:[%s6 + $0x78] sm:$0xff]
        %v2325 = vld [vmem:[%s7] sm:$0x3]
        %v2327 = vperm.slane %v2325, 0
        %v2328 = vperm.slane %v2325, 1
        %v2332 = vsel %vm626, %v2307, 0
        %2334 = vmatpush.msra.mxu0 0.0
        %2335 = vmatpush.msra.mxu0 0.0
        %2336 = vmatpush.msra.mxu0 0.0
        %2337 = vmatpush.msra.mxu0 0.0
        %2338 = vmatpush.msra.mxu0 0.0
        %2339 = vmatpush.msra.mxu0 0.0
        %2340 = vmatpush.msra.mxu0 0.0
        %2341 = vmatpush.msra.mxu0 0.0
        %2342 = vmatpush.msra.mxu0 %v2323
        %2343 = vmatpush.msra.mxu0 %v2321
        %2344 = vmatpush.msra.mxu0 %v2319
        %2345 = vmatpush.msra.mxu0 %v2317
        %2346 = vmatpush.msra.mxu0 %v2315
        %2347 = vmatpush.msra.mxu0 %v2313
        %2348 = vmatpush.msra.mxu0 %v2311
        %2349 = vmatpush.msra.mxu0 %v2309
        %2350 = vmatmul.f32.gmra.mxu0 %v2332
        %v2351 = vpop.f32.mrf.mxu0
        %v2352 = vadd.f32 %v2327, %v2351
        %2353 = vdwg.mxu0
        %2354 = vmatpush.msra.mxu0 0.0
        %2355 = vmatpush.msra.mxu0 0.0
        %2356 = vmatpush.msra.mxu0 0.0
        %2357 = vmatpush.msra.mxu0 0.0
        %2358 = vmatpush.msra.mxu0 0.0
        %2359 = vmatpush.msra.mxu0 0.0
        %2360 = vmatpush.msra.mxu0 0.0
        %2361 = vmatpush.msra.mxu0 0.0
        %2362 = vmatpush.msra.mxu0 %v2324
        %2363 = vmatpush.msra.mxu0 %v2322
        %2364 = vmatpush.msra.mxu0 %v2320
        %2365 = vmatpush.msra.mxu0 %v2318
        %2366 = vmatpush.msra.mxu0 %v2316
        %2367 = vmatpush.msra.mxu0 %v2314
        %2368 = vmatpush.msra.mxu0 %v2312
        %2369 = vmatpush.msra.mxu0 %v2310
        %2370 = vmatmul.f32.gmra.mxu0 %v2332
        %v2371 = vpop.f32.mrf.mxu0
        %v2372 = vadd.f32 %v2328, %v2371
        %2373 = vdwg.mxu0
        %v2374 = vmul.f32 %v2352, 0.25
        %2375 = vst.msk [vmem:[#allocation2] sm:$0xff] %vm746, %v2374
        %2377 = vrot.lane.b32.xlu0 %v2352, 64
        %v2378 = vpop.permute.xlu0 %2377
        %2380 = vst.msk [vmem:[#allocation3] sm:$0xff] %vm746, %v2378
        %2381 = vst.msk [vmem:[#allocation4] sm:$0xff] %vm746, %v2372
        %2383 = vrot.lane.b32.xlu0 %v2374, 112
        %v2384 = vpop.permute.xlu0 %2383
        %s2386 = scalar_lea.vmem [#allocation2], 8
        %2387 = vst.msk [vmem:[%s2386] sm:$0xff] %vm746, %v2384
        %2388 = vrot.lane.b32.xlu0 %v2352, 48
        %v2389 = vpop.permute.xlu0 %2388
        %s2391 = scalar_lea.vmem [#allocation3], 8
        %2392 = vst.msk [vmem:[%s2391] sm:$0xff] %vm746, %v2389
        %2394 = vrot.lane.b32.xlu0 %v2372, 112
        %v2395 = vpop.permute.xlu0 %2394
        %s2397 = scalar_lea.vmem [#allocation4], 8
        %2398 = vst.msk [vmem:[%s2397] sm:$0xff] %vm746, %v2395
        %2399 = vrot.lane.b32.xlu0 %v2374, 96
        %v2400 = vpop.permute.xlu0 %2399
        %s2402 = scalar_lea.vmem [#allocation2], 16
        %2403 = vst.msk [vmem:[%s2402] sm:$0xff] %vm746, %v2400
        %2404 = vrot.lane.b32.xlu0 %v2352, 32
        %v2405 = vpop.permute.xlu0 %2404
        %s2407 = scalar_lea.vmem [#allocation3], 16
        %2408 = vst.msk [vmem:[%s2407] sm:$0xff] %vm746, %v2405
        %2409 = vrot.lane.b32.xlu0 %v2372, 96
        %v2410 = vpop.permute.xlu0 %2409
        %s2412 = scalar_lea.vmem [#allocation4], 16
        %2413 = vst.msk [vmem:[%s2412] sm:$0xff] %vm746, %v2410
        %2414 = vrot.lane.b32.xlu0 %v2374, 80
        %v2415 = vpop.permute.xlu0 %2414
        %s2417 = scalar_lea.vmem [#allocation2], 24
        %2418 = vst.msk [vmem:[%s2417] sm:$0xff] %vm746, %v2415
        %2419 = vrot.lane.b32.xlu0 %v2352, 16
        %v2420 = vpop.permute.xlu0 %2419
        %s2422 = scalar_lea.vmem [#allocation3], 24
        %2423 = vst.msk [vmem:[%s2422] sm:$0xff] %vm746, %v2420
        %2424 = vrot.lane.b32.xlu0 %v2372, 80
        %v2425 = vpop.permute.xlu0 %2424
        %s2427 = scalar_lea.vmem [#allocation4], 24
        %2428 = vst.msk [vmem:[%s2427] sm:$0xff] %vm746, %v2425
        %v2429 = vld [vmem:[#allocation2] sm:$0xff]
        %v2430 = vld [vmem:[#allocation2 + $0x8] sm:$0xff]
        %v2431 = vld [vmem:[#allocation2 + $0x10] sm:$0xff]
        %v2432 = vld [vmem:[#allocation2 + $0x18] sm:$0xff]
        %v2433 = vld [vmem:[#allocation3] sm:$0xff]
        %v2434 = vld [vmem:[#allocation3 + $0x8] sm:$0xff]
        %v2435 = vld [vmem:[#allocation3 + $0x10] sm:$0xff]
        %v2436 = vld [vmem:[#allocation3 + $0x18] sm:$0xff]
        %v2438 = vsel %vm746, %v2429, 0
        %v2441 = vsel %vm746, %v2433, 0
        %2443 = vmatpush.xpose.msra.mxu0 0.0
        %2444 = vmatpush.xpose.msra.mxu0 0.0
        %2445 = vmatpush.xpose.msra.mxu0 0.0
        %2446 = vmatpush.xpose.msra.mxu0 0.0
        %2447 = vmatpush.xpose.msra.mxu0 0.0
        %2448 = vmatpush.xpose.msra.mxu0 0.0
        %2449 = vmatpush.xpose.msra.mxu0 0.0
        %2450 = vmatpush.xpose.msra.mxu0 0.0
        %2451 = vmatpush.xpose.msra.mxu0 0.0
        %2452 = vmatpush.xpose.msra.mxu0 0.0
        %2453 = vmatpush.xpose.msra.mxu0 0.0
        %2454 = vmatpush.xpose.msra.mxu0 0.0
        %2455 = vmatpush.xpose.msra.mxu0 0.0
        %2456 = vmatpush.xpose.msra.mxu0 0.0
        %2457 = vmatpush.xpose.msra.mxu0 0.0
        %2458 = vmatpush.xpose.msra.mxu0 %v2441
        %2459 = vmatmul.f32.gmra.mxu0 %v2438
        %v2460 = vpop.f32.mrf.mxu0
        %v2461 = vadd.f32 0.0, %v2460
        %2462 = vdwg.mxu0
        %v2464 = vsel %vm746, %v2430, 0
        %v2467 = vsel %vm746, %v2434, 0
        %2469 = vmatpush.xpose.msra.mxu0 0.0
        %2470 = vmatpush.xpose.msra.mxu0 0.0
        %2471 = vmatpush.xpose.msra.mxu0 0.0
        %2472 = vmatpush.xpose.msra.mxu0 0.0
        %2473 = vmatpush.xpose.msra.mxu0 0.0
        %2474 = vmatpush.xpose.msra.mxu0 0.0
        %2475 = vmatpush.xpose.msra.mxu0 0.0
        %2476 = vmatpush.xpose.msra.mxu0 0.0
        %2477 = vmatpush.xpose.msra.mxu0 0.0
        %2478 = vmatpush.xpose.msra.mxu0 0.0
        %2479 = vmatpush.xpose.msra.mxu0 0.0
        %2480 = vmatpush.xpose.msra.mxu0 0.0
        %2481 = vmatpush.xpose.msra.mxu0 0.0
        %2482 = vmatpush.xpose.msra.mxu0 0.0
        %2483 = vmatpush.xpose.msra.mxu0 0.0
        %2484 = vmatpush.xpose.msra.mxu0 %v2467
        %2485 = vmatmul.f32.gmra.mxu0 %v2464
        %v2486 = vpop.f32.mrf.mxu0
        %v2487 = vadd.f32 0.0, %v2486
        %2488 = vdwg.mxu0
        %v2490 = vsel %vm746, %v2431, 0
        %v2493 = vsel %vm746, %v2435, 0
        %2495 = vmatpush.xpose.msra.mxu0 0.0
        %2496 = vmatpush.xpose.msra.mxu0 0.0
        %2497 = vmatpush.xpose.msra.mxu0 0.0
        %2498 = vmatpush.xpose.msra.mxu0 0.0
        %2499 = vmatpush.xpose.msra.mxu0 0.0
        %2500 = vmatpush.xpose.msra.mxu0 0.0
        %2501 = vmatpush.xpose.msra.mxu0 0.0
        %2502 = vmatpush.xpose.msra.mxu0 0.0
        %2503 = vmatpush.xpose.msra.mxu0 0.0
        %2504 = vmatpush.xpose.msra.mxu0 0.0
        %2505 = vmatpush.xpose.msra.mxu0 0.0
        %2506 = vmatpush.xpose.msra.mxu0 0.0
        %2507 = vmatpush.xpose.msra.mxu0 0.0
        %2508 = vmatpush.xpose.msra.mxu0 0.0
        %2509 = vmatpush.xpose.msra.mxu0 0.0
        %2510 = vmatpush.xpose.msra.mxu0 %v2493
        %2511 = vmatmul.f32.gmra.mxu0 %v2490
        %v2512 = vpop.f32.mrf.mxu0
        %v2513 = vadd.f32 0.0, %v2512
        %2514 = vdwg.mxu0
        %v2516 = vsel %vm746, %v2432, 0
        %v2519 = vsel %vm746, %v2436, 0
        %2521 = vmatpush.xpose.msra.mxu0 0.0
        %2522 = vmatpush.xpose.msra.mxu0 0.0
        %2523 = vmatpush.xpose.msra.mxu0 0.0
        %2524 = vmatpush.xpose.msra.mxu0 0.0
        %2525 = vmatpush.xpose.msra.mxu0 0.0
        %2526 = vmatpush.xpose.msra.mxu0 0.0
        %2527 = vmatpush.xpose.msra.mxu0 0.0
        %2528 = vmatpush.xpose.msra.mxu0 0.0
        %2529 = vmatpush.xpose.msra.mxu0 0.0
        %2530 = vmatpush.xpose.msra.mxu0 0.0
        %2531 = vmatpush.xpose.msra.mxu0 0.0
        %2532 = vmatpush.xpose.msra.mxu0 0.0
        %2533 = vmatpush.xpose.msra.mxu0 0.0
        %2534 = vmatpush.xpose.msra.mxu0 0.0
        %2535 = vmatpush.xpose.msra.mxu0 0.0
        %2536 = vmatpush.xpose.msra.mxu0 %v2519
        %2537 = vmatmul.f32.gmra.mxu0 %v2516
        %v2538 = vpop.f32.mrf.mxu0
        %v2539 = vadd.f32 0.0, %v2538
        %2540 = vdwg.mxu0
        %vm2541 = vcmask 64512
        %v2542 = vsel %vm2541, %v2461, -inf
        %2543 = vmax.xlane.f32.xlu0 %v2542
        %v2544 = vpop.xlane.xlu0 %2543
        %v2545 = vsel %vm2541, %v2487, -inf
        %2546 = vmax.xlane.f32.xlu0 %v2545
        %v2547 = vpop.xlane.xlu0 %2546
        %v2548 = vsel %vm2541, %v2513, -inf
        %2549 = vmax.xlane.f32.xlu0 %v2548
        %v2550 = vpop.xlane.xlu0 %2549
        %v2551 = vsel %vm2541, %v2539, -inf
        %2552 = vmax.xlane.f32.xlu0 %v2551
        %v2553 = vpop.xlane.xlu0 %2552
        %v2554 = vsub.f32 %v2461, %v2544
        %v2555 = vsub.f32 %v2487, %v2547
        %v2556 = vsub.f32 %v2513, %v2550
        %v2557 = vsub.f32 %v2539, %v2553
        %v2558 = vmul.f32 %v2554, 1.442695
        %v2559 = vpow.pop %v2558
        %v2560 = vmul.f32 %v2555, 1.442695
        %v2561 = vpow.pop %v2560
        %v2562 = vmul.f32 %v2556, 1.442695
        %v2563 = vpow.pop %v2562
        %v2564 = vmul.f32 %v2557, 1.442695
        %v2565 = vpow.pop %v2564
        %v2566 = vsel %vm2541, %v2559, 0.0
        %2567 = vadd.xlane.f32.xlu0 %v2566
        %v2568 = vpop.xlane.xlu0 %2567
        %v2569 = vsel %vm2541, %v2561, 0.0
        %2570 = vadd.xlane.f32.xlu0 %v2569
        %v2571 = vpop.xlane.xlu0 %2570
        %v2572 = vsel %vm2541, %v2563, 0.0
        %2573 = vadd.xlane.f32.xlu0 %v2572
        %v2574 = vpop.xlane.xlu0 %2573
        %v2575 = vsel %vm2541, %v2565, 0.0
        %2576 = vadd.xlane.f32.xlu0 %v2575
        %v2577 = vpop.xlane.xlu0 %2576
        %v2578 = vrcp.pop %v2568
        %v2579 = vmul.f32 %v2568, %v2578
        %v2580 = vsub.f32 1.0, %v2579
        %v2581 = vmul.f32 %v2578, %v2580
        %v2582 = vadd.f32 %v2578, %v2581
        %vm2583 = vweird.f32 %v2568
        %vm2584 = vweird.f32 %v2578
        %vm2585 = vmor %vm2583, %vm2584
        %v2586 = vsel %vm2585, %v2578, %v2582
        %v2587 = vand.u32 2147483647, %v2568
        %vm2588 = vcmp.eq.f32.partialorder %v2587, 8.507059e+37
        %v2589 = vand.u32 %v2568, 2147483648
        %v2590 = vor.u32 1.1754944e-38, %v2589
        %v2591 = vsel %vm2588, %v2590, %v2586
        %v2592 = vmul.f32 %v2559, %v2591
        %v2593 = vrcp.pop %v2571
        %v2594 = vmul.f32 %v2571, %v2593
        %v2595 = vsub.f32 1.0, %v2594
        %v2596 = vmul.f32 %v2593, %v2595
        %v2597 = vadd.f32 %v2593, %v2596
        %vm2598 = vweird.f32 %v2571
        %vm2599 = vweird.f32 %v2593
        %vm2600 = vmor %vm2598, %vm2599
        %v2601 = vsel %vm2600, %v2593, %v2597
        %v2602 = vand.u32 2147483647, %v2571
        %vm2603 = vcmp.eq.f32.partialorder %v2602, 8.507059e+37
        %v2604 = vand.u32 %v2571, 2147483648
        %v2605 = vor.u32 1.1754944e-38, %v2604
        %v2606 = vsel %vm2603, %v2605, %v2601
        %v2607 = vmul.f32 %v2561, %v2606
        %v2608 = vrcp.pop %v2574
        %v2609 = vmul.f32 %v2574, %v2608
        %v2610 = vsub.f32 1.0, %v2609
        %v2611 = vmul.f32 %v2608, %v2610
        %v2612 = vadd.f32 %v2608, %v2611
        %vm2613 = vweird.f32 %v2574
        %vm2614 = vweird.f32 %v2608
        %vm2615 = vmor %vm2613, %vm2614
        %v2616 = vsel %vm2615, %v2608, %v2612
        %v2617 = vand.u32 2147483647, %v2574
        %vm2618 = vcmp.eq.f32.partialorder %v2617, 8.507059e+37
        %v2619 = vand.u32 %v2574, 2147483648
        %v2620 = vor.u32 1.1754944e-38, %v2619
        %v2621 = vsel %vm2618, %v2620, %v2616
        %v2622 = vmul.f32 %v2563, %v2621
        %v2623 = vrcp.pop %v2577
        %v2624 = vmul.f32 %v2577, %v2623
        %v2625 = vsub.f32 1.0, %v2624
        %v2626 = vmul.f32 %v2623, %v2625
        %v2627 = vadd.f32 %v2623, %v2626
        %vm2628 = vweird.f32 %v2577
        %vm2629 = vweird.f32 %v2623
        %vm2630 = vmor %vm2628, %vm2629
        %v2631 = vsel %vm2630, %v2623, %v2627
        %v2632 = vand.u32 2147483647, %v2577
        %vm2633 = vcmp.eq.f32.partialorder %v2632, 8.507059e+37
        %v2634 = vand.u32 %v2577, 2147483648
        %v2635 = vor.u32 1.1754944e-38, %v2634
        %v2636 = vsel %vm2633, %v2635, %v2631
        %v2637 = vmul.f32 %v2565, %v2636
        %v2638 = vld [vmem:[#allocation4] sm:$0xff]
        %v2639 = vld [vmem:[#allocation4 + $0x8] sm:$0xff]
        %v2640 = vld [vmem:[#allocation4 + $0x10] sm:$0xff]
        %v2641 = vld [vmem:[#allocation4 + $0x18] sm:$0xff]
        %v2643 = vsel %vm2541, %v2592, 0
        %2645 = vmatpush.msra.mxu0 0.0
        %2646 = vmatpush.msra.mxu0 0.0
        %2647 = vmatpush.msra.mxu0 0.0
        %2648 = vmatpush.msra.mxu0 0.0
        %2649 = vmatpush.msra.mxu0 0.0
        %2650 = vmatpush.msra.mxu0 0.0
        %2651 = vmatpush.msra.mxu0 0.0
        %2652 = vmatpush.msra.mxu0 0.0
        %2653 = vmatpush.msra.mxu0 0.0
        %2654 = vmatpush.msra.mxu0 0.0
        %2655 = vmatpush.msra.mxu0 0.0
        %2656 = vmatpush.msra.mxu0 0.0
        %2657 = vmatpush.msra.mxu0 0.0
        %2658 = vmatpush.msra.mxu0 0.0
        %2659 = vmatpush.msra.mxu0 0.0
        %2660 = vmatpush.msra.mxu0 %v2638
        %2661 = vmatmul.f32.gmra.mxu0 %v2643
        %v2662 = vpop.f32.mrf.mxu0
        %v2663 = vadd.f32 0.0, %v2662
        %2664 = vdwg.mxu0
        %v2666 = vsel %vm2541, %v2607, 0
        %2668 = vmatpush.msra.mxu0 0.0
        %2669 = vmatpush.msra.mxu0 0.0
        %2670 = vmatpush.msra.mxu0 0.0
        %2671 = vmatpush.msra.mxu0 0.0
        %2672 = vmatpush.msra.mxu0 0.0
        %2673 = vmatpush.msra.mxu0 0.0
        %2674 = vmatpush.msra.mxu0 0.0
        %2675 = vmatpush.msra.mxu0 0.0
        %2676 = vmatpush.msra.mxu0 0.0
        %2677 = vmatpush.msra.mxu0 0.0
        %2678 = vmatpush.msra.mxu0 0.0
        %2679 = vmatpush.msra.mxu0 0.0
        %2680 = vmatpush.msra.mxu0 0.0
        %2681 = vmatpush.msra.mxu0 0.0
        %2682 = vmatpush.msra.mxu0 0.0
        %2683 = vmatpush.msra.mxu0 %v2639
        %2684 = vmatmul.f32.gmra.mxu0 %v2666
        %v2685 = vpop.f32.mrf.mxu0
        %v2686 = vadd.f32 0.0, %v2685
        %2687 = vdwg.mxu0
        %v2689 = vsel %vm2541, %v2622, 0
        %2691 = vmatpush.msra.mxu0 0.0
        %2692 = vmatpush.msra.mxu0 0.0
        %2693 = vmatpush.msra.mxu0 0.0
        %2694 = vmatpush.msra.mxu0 0.0
        %2695 = vmatpush.msra.mxu0 0.0
        %2696 = vmatpush.msra.mxu0 0.0
        %2697 = vmatpush.msra.mxu0 0.0
        %2698 = vmatpush.msra.mxu0 0.0
        %2699 = vmatpush.msra.mxu0 0.0
        %2700 = vmatpush.msra.mxu0 0.0
        %2701 = vmatpush.msra.mxu0 0.0
        %2702 = vmatpush.msra.mxu0 0.0
        %2703 = vmatpush.msra.mxu0 0.0
        %2704 = vmatpush.msra.mxu0 0.0
        %2705 = vmatpush.msra.mxu0 0.0
        %2706 = vmatpush.msra.mxu0 %v2640
        %2707 = vmatmul.f32.gmra.mxu0 %v2689
        %v2708 = vpop.f32.mrf.mxu0
        %v2709 = vadd.f32 0.0, %v2708
        %2710 = vdwg.mxu0
        %v2712 = vsel %vm2541, %v2637, 0
        %2714 = vmatpush.msra.mxu0 0.0
        %2715 = vmatpush.msra.mxu0 0.0
        %2716 = vmatpush.msra.mxu0 0.0
        %2717 = vmatpush.msra.mxu0 0.0
        %2718 = vmatpush.msra.mxu0 0.0
        %2719 = vmatpush.msra.mxu0 0.0
        %2720 = vmatpush.msra.mxu0 0.0
        %2721 = vmatpush.msra.mxu0 0.0
        %2722 = vmatpush.msra.mxu0 0.0
        %2723 = vmatpush.msra.mxu0 0.0
        %2724 = vmatpush.msra.mxu0 0.0
        %2725 = vmatpush.msra.mxu0 0.0
        %2726 = vmatpush.msra.mxu0 0.0
        %2727 = vmatpush.msra.mxu0 0.0
        %2728 = vmatpush.msra.mxu0 0.0
        %2729 = vmatpush.msra.mxu0 %v2641
        %2730 = vmatmul.f32.gmra.mxu0 %v2712
        %v2731 = vpop.f32.mrf.mxu0
        %v2732 = vadd.f32 0.0, %v2731
        %2733 = vdwg.mxu0
        %2734 = vst.msk [vmem:[#allocation5] sm:$0xff] %vm746, %v2663
        %2736 = vrot.lane.b32.xlu0 %v2686, 16
        %v2737 = vpop.permute.xlu0 %2736
        %vm2739 = vcmask 261248
        %2740 = vst.msk [vmem:[#allocation5] sm:$0xff] %vm2739, %v2737
        %2742 = vrot.lane.b32.xlu0 %v2709, 32
        %v2743 = vpop.permute.xlu0 %2742
        %vm2745 = vcmask 392448
        %2746 = vst.msk [vmem:[#allocation5] sm:$0xff] %vm2745, %v2743
        %2748 = vrot.lane.b32.xlu0 %v2732, 48
        %v2749 = vpop.permute.xlu0 %2748
        %vm2751 = vcmask 523648
        %2752 = vst.msk [vmem:[#allocation5] sm:$0xff] %vm2751, %v2749
        %v2753 = vld [vmem:[#allocation5] sm:$0xff]
        %v2754 = vld [vmem:[%s8] sm:$0xff]
        %v2755 = vld [vmem:[%s8 + $0x8] sm:$0xff]
        %v2756 = vld [vmem:[%s8 + $0x10] sm:$0xff]
        %v2757 = vld [vmem:[%s8 + $0x18] sm:$0xff]
        %v2758 = vld [vmem:[%s8 + $0x20] sm:$0xff]
        %v2759 = vld [vmem:[%s8 + $0x28] sm:$0xff]
        %v2760 = vld [vmem:[%s8 + $0x30] sm:$0xff]
        %v2761 = vld [vmem:[%s8 + $0x38] sm:$0xff]
        %v2762 = vld [vmem:[%s9] sm:$0x1]
        %v2764 = vperm.slane %v2762, 0
        %v2767 = vsel %vm626, %v2753, 0
        %2769 = vmatpush.msra.mxu0 0.0
        %2770 = vmatpush.msra.mxu0 0.0
        %2771 = vmatpush.msra.mxu0 0.0
        %2772 = vmatpush.msra.mxu0 0.0
        %2773 = vmatpush.msra.mxu0 0.0
        %2774 = vmatpush.msra.mxu0 0.0
        %2775 = vmatpush.msra.mxu0 0.0
        %2776 = vmatpush.msra.mxu0 0.0
        %2777 = vmatpush.msra.mxu0 %v2761
        %2778 = vmatpush.msra.mxu0 %v2760
        %2779 = vmatpush.msra.mxu0 %v2759
        %2780 = vmatpush.msra.mxu0 %v2758
        %2781 = vmatpush.msra.mxu0 %v2757
        %2782 = vmatpush.msra.mxu0 %v2756
        %2783 = vmatpush.msra.mxu0 %v2755
        %2784 = vmatpush.msra.mxu0 %v2754
        %2785 = vmatmul.f32.gmra.mxu0 %v2767
        %v2786 = vpop.f32.mrf.mxu0
        %v2787 = vadd.f32 %v2764, %v2786
        %2788 = vdwg.mxu0
        %v2789 = vadd.f32 %v2307, %v2787
        %v2790 = vld [vmem:[%s10] sm:$0x1]
        %v2791 = vld [vmem:[%s11] sm:$0x1]
        %v2792 = vsel %vm626, %v2789, 0.0
        %2793 = vadd.xlane.f32.xlu0 %v2792
        %v2794 = vpop.xlane.xlu0 %2793
        %v2795 = vrcp.pop 64.0
        %v2796 = vmul.f32 64.0, %v2795
        %v2797 = vsub.f32 1.0, %v2796
        %v2798 = vmul.f32 %v2795, %v2797
        %v2799 = vadd.f32 %v2795, %v2798
        %vm2800 = vweird.f32 %v2795
        %v2801 = vsel %vm2800, %v2795, %v2799
        %v2802 = vmul.f32 %v2794, %v2801
        %v2803 = vsub.f32 %v2789, %v2802
        %v2804 = vmul.f32 %v2803, %v2803
        %v2805 = vsel %vm626, %v2804, 0.0
        %2806 = vadd.xlane.f32.xlu0 %v2805
        %v2807 = vpop.xlane.xlu0 %2806
        %v2808 = vmul.f32 %v2807, %v2801
        %v2809 = vadd.f32 %v2808, 1e-05
        %v2810 = vrsqrt.pop %v2809
        %v2811 = vmul.f32 %v2810, %v2809
        %v2812 = vmul.f32 %v2811, %v2810
        %v2813 = vmul.f32 0.5, %v2812
        %v2814 = vsub.f32 1.5, %v2813
        %v2815 = vmul.f32 %v2810, %v2814
        %vm2816 = vweird.f32 %v2809
        %vm2817 = vweird.f32 %v2810
        %vm2818 = vmor %vm2816, %vm2817
        %v2819 = vsel %vm2818, %v2810, %v2815
        %v2820 = vmul.f32 %v2803, %v2819
        %v2822 = vperm.slane %v2790, 0
        %v2824 = vmul.f32 %v2820, %v2822
        %v2826 = vperm.slane %v2791, 0
        %v2828 = vadd.f32 %v2824, %v2826
        %v2829 = vld [vmem:[%s12] sm:$0xff]
        %v2830 = vld [vmem:[%s12 + $0x8] sm:$0xff]
        %v2831 = vld [vmem:[%s12 + $0x10] sm:$0xff]
        %v2832 = vld [vmem:[%s12 + $0x18] sm:$0xff]
        %v2833 = vld [vmem:[%s12 + $0x20] sm:$0xff]
        %v2834 = vld [vmem:[%s12 + $0x28] sm:$0xff]
        %v2835 = vld [vmem:[%s12 + $0x30] sm:$0xff]
        %v2836 = vld [vmem:[%s12 + $0x38] sm:$0xff]
        %v2837 = vld [vmem:[%s13] sm:$0x1]
        %v2839 = vperm.slane %v2837, 0
        %v2842 = vsel %vm626, %v2828, 0
        %2844 = vmatpush.msra.mxu0 0.0
        %2845 = vmatpush.msra.mxu0 0.0
        %2846 = vmatpush.msra.mxu0 0.0
        %2847 = vmatpush.msra.mxu0 0.0
        %2848 = vmatpush.msra.mxu0 0.0
        %2849 = vmatpush.msra.mxu0 0.0
        %2850 = vmatpush.msra.mxu0 0.0
        %2851 = vmatpush.msra.mxu0 0.0
        %2852 = vmatpush.msra.mxu0 %v2836
        %2853 = vmatpush.msra.mxu0 %v2835
        %2854 = vmatpush.msra.mxu0 %v2834
        %2855 = vmatpush.msra.mxu0 %v2833
        %2856 = vmatpush.msra.mxu0 %v2832
        %2857 = vmatpush.msra.mxu0 %v2831
        %2858 = vmatpush.msra.mxu0 %v2830
        %2859 = vmatpush.msra.mxu0 %v2829
        %2860 = vmatmul.f32.gmra.mxu0 %v2842
        %v2861 = vpop.f32.mrf.mxu0
        %v2862 = vadd.f32 %v2839, %v2861
        %2863 = vdwg.mxu0
        %v2864 = vmul.f32 %v2862, %v2862
        %v2865 = vmul.f32 %v2862, %v2864
        %v2866 = vmul.f32 %v2865, 0.044715
        %v2867 = vadd.f32 %v2862, %v2866
        %v2868 = vmul.f32 %v2867, 0.7978846
        %v2869 = vtanh.pop %v2868
        %v2870 = vadd.f32 %v2869, 1.0
        %v2871 = vmul.f32 %v2870, 0.5
        %v2872 = vmul.f32 %v2862, %v2871
        %v2873 = vld [vmem:[%s14] sm:$0xff]
        %v2874 = vld [vmem:[%s14 + $0x8] sm:$0xff]
        %v2875 = vld [vmem:[%s14 + $0x10] sm:$0xff]
        %v2876 = vld [vmem:[%s14 + $0x18] sm:$0xff]
        %v2877 = vld [vmem:[%s14 + $0x20] sm:$0xff]
        %v2878 = vld [vmem:[%s14 + $0x28] sm:$0xff]
        %v2879 = vld [vmem:[%s14 + $0x30] sm:$0xff]
        %v2880 = vld [vmem:[%s14 + $0x38] sm:$0xff]
        %v2881 = vld [vmem:[%s14 + $0x40] sm:$0xff]
        %v2882 = vld [vmem:[%s14 + $0x48] sm:$0xff]
        %v2883 = vld [vmem:[%s14 + $0x50] sm:$0xff]
        %v2884 = vld [vmem:[%s14 + $0x58] sm:$0xff]
        %v2885 = vld [vmem:[%s14 + $0x60] sm:$0xff]
        %v2886 = vld [vmem:[%s14 + $0x68] sm:$0xff]
        %v2887 = vld [vmem:[%s14 + $0x70] sm:$0xff]
        %v2888 = vld [vmem:[%s14 + $0x78] sm:$0xff]
        %v2889 = vld [vmem:[%s15] sm:$0x1]
        %v2891 = vperm.slane %v2889, 0
        %2893 = vmatpush.msra.mxu0 %v2888
        %2894 = vmatpush.msra.mxu0 %v2887
        %2895 = vmatpush.msra.mxu0 %v2886
        %2896 = vmatpush.msra.mxu0 %v2885
        %2897 = vmatpush.msra.mxu0 %v2884
        %2898 = vmatpush.msra.mxu0 %v2883
        %2899 = vmatpush.msra.mxu0 %v2882
        %2900 = vmatpush.msra.mxu0 %v2881
        %2901 = vmatpush.msra.mxu0 %v2880
        %2902 = vmatpush.msra.mxu0 %v2879
        %2903 = vmatpush.msra.mxu0 %v2878
        %2904 = vmatpush.msra.mxu0 %v2877
        %2905 = vmatpush.msra.mxu0 %v2876
        %2906 = vmatpush.msra.mxu0 %v2875
        %2907 = vmatpush.msra.mxu0 %v2874
        %2908 = vmatpush.msra.mxu0 %v2873
        %2909 = vmatmul.f32.gmra.mxu0 %v2872
        %v2910 = vpop.f32.mrf.mxu0
        %v2911 = vadd.f32 %v2891, %v2910
        %2912 = vdwg.mxu0
        %v2913 = vadd.f32 %v2828, %v2911
        %v2914 = vld [vmem:[%s16] sm:$0x1]
        %v2915 = vld [vmem:[%s17] sm:$0x1]
        %v2916 = vsel %vm626, %v2913, 0.0
        %2917 = vadd.xlane.f32.xlu0 %v2916
        %v2918 = vpop.xlane.xlu0 %2917
        %v2919 = vmul.f32 %v2918, %v2801
        %v2920 = vsub.f32 %v2913, %v2919
        %v2921 = vmul.f32 %v2920, %v2920
        %v2922 = vsel %vm626, %v2921, 0.0
        %2923 = vadd.xlane.f32.xlu0 %v2922
        %v2924 = vpop.xlane.xlu0 %2923
        %v2925 = vmul.f32 %v2924, %v2801
        %v2926 = vadd.f32 %v2925, 1e-05
        %v2927 = vrsqrt.pop %v2926
        %v2928 = vmul.f32 %v2927, %v2926
        %v2929 = vmul.f32 %v2928, %v2927
        %v2930 = vmul.f32 0.5, %v2929
        %v2931 = vsub.f32 1.5, %v2930
        %v2932 = vmul.f32 %v2927, %v2931
        %vm2933 = vweird.f32 %v2926
        %vm2934 = vweird.f32 %v2927
        %vm2935 = vmor %vm2933, %vm2934
        %v2936 = vsel %vm2935, %v2927, %v2932
        %v2937 = vmul.f32 %v2920, %v2936
        %v2939 = vperm.slane %v2914, 0
        %v2941 = vmul.f32 %v2937, %v2939
        %v2943 = vperm.slane %v2915, 0
        %v2945 = vadd.f32 %v2941, %v2943
        %s2946 = scalar_lea.vmem %s6, 128
        %v2947 = vld [vmem:[%s2946] sm:$0xff]
        %v2948 = vld [vmem:[%s2946 + $0x8] sm:$0xff]
        %v2949 = vld [vmem:[%s2946 + $0x10] sm:$0xff]
        %v2950 = vld [vmem:[%s2946 + $0x18] sm:$0xff]
        %v2951 = vld [vmem:[%s2946 + $0x20] sm:$0xff]
        %v2952 = vld [vmem:[%s2946 + $0x28] sm:$0xff]
        %v2953 = vld [vmem:[%s2946 + $0x30] sm:$0xff]
        %v2954 = vld [vmem:[%s2946 + $0x38] sm:$0xff]
        %v2955 = vld [vmem:[%s2946 + $0x40] sm:$0xff]
        %v2956 = vld [vmem:[%s2946 + $0x48] sm:$0xff]
        %v2957 = vld [vmem:[%s2946 + $0x50] sm:$0xff]
        %v2958 = vld [vmem:[%s2946 + $0x58] sm:$0xff]
        %v2959 = vld [vmem:[%s2946 + $0x60] sm:$0xff]
        %v2960 = vld [vmem:[%s2946 + $0x68] sm:$0xff]
        %v2961 = vld [vmem:[%s2946 + $0x70] sm:$0xff]
        %v2962 = vld [vmem:[%s2946 + $0x78] sm:$0xff]
        %s2963 = scalar_lea.vmem %s7, 2
        %v2964 = vld [vmem:[%s2963] sm:$0x3]
        %v2966 = vperm.slane %v2964, 0
        %v2967 = vperm.slane %v2964, 1
        %v2971 = vsel %vm626, %v2945, 0
        %2973 = vmatpush.msra.mxu0 0.0
        %2974 = vmatpush.msra.mxu0 0.0
        %2975 = vmatpush.msra.mxu0 0.0
        %2976 = vmatpush.msra.mxu0 0.0
        %2977 = vmatpush.msra.mxu0 0.0
        %2978 = vmatpush.msra.mxu0 0.0
        %2979 = vmatpush.msra.mxu0 0.0
        %2980 = vmatpush.msra.mxu0 0.0
        %2981 = vmatpush.msra.mxu0 %v2961
        %2982 = vmatpush.msra.mxu0 %v2959
        %2983 = vmatpush.msra.mxu0 %v2957
        %2984 = vmatpush.msra.mxu0 %v2955
        %2985 = vmatpush.msra.mxu0 %v2953
        %2986 = vmatpush.msra.mxu0 %v2951
        %2987 = vmatpush.msra.mxu0 %v2949
        %2988 = vmatpush.msra.mxu0 %v2947
        %2989 = vmatmul.f32.gmra.mxu0 %v2971
        %v2990 = vpop.f32.mrf.mxu0
        %v2991 = vadd.f32 %v2966, %v2990
        %2992 = vdwg.mxu0
        %2993 = vmatpush.msra.mxu0 0.0
        %2994 = vmatpush.msra.mxu0 0.0
        %2995 = vmatpush.msra.mxu0 0.0
        %2996 = vmatpush.msra.mxu0 0.0
        %2997 = vmatpush.msra.mxu0 0.0
        %2998 = vmatpush.msra.mxu0 0.0
        %2999 = vmatpush.msra.mxu0 0.0
        %3000 = vmatpush.msra.mxu0 0.0
        %3001 = vmatpush.msra.mxu0 %v2962
        %3002 = vmatpush.msra.mxu0 %v2960
        %3003 = vmatpush.msra.mxu0 %v2958
        %3004 = vmatpush.msra.mxu0 %v2956
        %3005 = vmatpush.msra.mxu0 %v2954
        %3006 = vmatpush.msra.mxu0 %v2952
        %3007 = vmatpush.msra.mxu0 %v2950
        %3008 = vmatpush.msra.mxu0 %v2948
        %3009 = vmatmul.f32.gmra.mxu0 %v2971
        %v3010 = vpop.f32.mrf.mxu0
        %v3011 = vadd.f32 %v2967, %v3010
        %3012 = vdwg.mxu0
        %v3013 = vmul.f32 %v2991, 0.25
        %3014 = vst.msk [vmem:[#allocation2] sm:$0xff] %vm746, %v3013
        %3016 = vrot.lane.b32.xlu0 %v2991, 64
        %v3017 = vpop.permute.xlu0 %3016
        %3019 = vst.msk [vmem:[#allocation3] sm:$0xff] %vm746, %v3017
        %3020 = vst.msk [vmem:[#allocation4] sm:$0xff] %vm746, %v3011
        %3022 = vrot.lane.b32.xlu0 %v3013, 112
        %v3023 = vpop.permute.xlu0 %3022
        %3025 = vst.msk [vmem:[%s2386] sm:$0xff] %vm746, %v3023
        %3026 = vrot.lane.b32.xlu0 %v2991, 48
        %v3027 = vpop.permute.xlu0 %3026
        %3029 = vst.msk [vmem:[%s2391] sm:$0xff] %vm746, %v3027
        %3031 = vrot.lane.b32.xlu0 %v3011, 112
        %v3032 = vpop.permute.xlu0 %3031
        %3034 = vst.msk [vmem:[%s2397] sm:$0xff] %vm746, %v3032
        %3035 = vrot.lane.b32.xlu0 %v3013, 96
        %v3036 = vpop.permute.xlu0 %3035
        %3038 = vst.msk [vmem:[%s2402] sm:$0xff] %vm746, %v3036
        %3039 = vrot.lane.b32.xlu0 %v2991, 32
        %v3040 = vpop.permute.xlu0 %3039
        %3042 = vst.msk [vmem:[%s2407] sm:$0xff] %vm746, %v3040
        %3043 = vrot.lane.b32.xlu0 %v3011, 96
        %v3044 = vpop.permute.xlu0 %3043
        %3046 = vst.msk [vmem:[%s2412] sm:$0xff] %vm746, %v3044
        %3047 = vrot.lane.b32.xlu0 %v3013, 80
        %v3048 = vpop.permute.xlu0 %3047
        %3050 = vst.msk [vmem:[%s2417] sm:$0xff] %vm746, %v3048
        %3051 = vrot.lane.b32.xlu0 %v2991, 16
        %v3052 = vpop.permute.xlu0 %3051
        %3054 = vst.msk [vmem:[%s2422] sm:$0xff] %vm746, %v3052
        %3055 = vrot.lane.b32.xlu0 %v3011, 80
        %v3056 = vpop.permute.xlu0 %3055
        %3058 = vst.msk [vmem:[%s2427] sm:$0xff] %vm746, %v3056
        %v3059 = vld [vmem:[#allocation2] sm:$0xff]
        %v3060 = vld [vmem:[#allocation2 + $0x8] sm:$0xff]
        %v3061 = vld [vmem:[#allocation2 + $0x10] sm:$0xff]
        %v3062 = vld [vmem:[#allocation2 + $0x18] sm:$0xff]
        %v3063 = vld [vmem:[#allocation3] sm:$0xff]
        %v3064 = vld [vmem:[#allocation3 + $0x8] sm:$0xff]
        %v3065 = vld [vmem:[#allocation3 + $0x10] sm:$0xff]
        %v3066 = vld [vmem:[#allocation3 + $0x18] sm:$0xff]
        %v3068 = vsel %vm746, %v3059, 0
        %v3071 = vsel %vm746, %v3063, 0
        %3073 = vmatpush.xpose.msra.mxu0 0.0
        %3074 = vmatpush.xpose.msra.mxu0 0.0
        %3075 = vmatpush.xpose.msra.mxu0 0.0
        %3076 = vmatpush.xpose.msra.mxu0 0.0
        %3077 = vmatpush.xpose.msra.mxu0 0.0
        %3078 = vmatpush.xpose.msra.mxu0 0.0
        %3079 = vmatpush.xpose.msra.mxu0 0.0
        %3080 = vmatpush.xpose.msra.mxu0 0.0
        %3081 = vmatpush.xpose.msra.mxu0 0.0
        %3082 = vmatpush.xpose.msra.mxu0 0.0
        %3083 = vmatpush.xpose.msra.mxu0 0.0
        %3084 = vmatpush.xpose.msra.mxu0 0.0
        %3085 = vmatpush.xpose.msra.mxu0 0.0
        %3086 = vmatpush.xpose.msra.mxu0 0.0
        %3087 = vmatpush.xpose.msra.mxu0 0.0
        %3088 = vmatpush.xpose.msra.mxu0 %v3071
        %3089 = vmatmul.f32.gmra.mxu0 %v3068
        %v3090 = vpop.f32.mrf.mxu0
        %v3091 = vadd.f32 0.0, %v3090
        %3092 = vdwg.mxu0
        %v3094 = vsel %vm746, %v3060, 0
        %v3097 = vsel %vm746, %v3064, 0
        %3099 = vmatpush.xpose.msra.mxu0 0.0
        %3100 = vmatpush.xpose.msra.mxu0 0.0
        %3101 = vmatpush.xpose.msra.mxu0 0.0
        %3102 = vmatpush.xpose.msra.mxu0 0.0
        %3103 = vmatpush.xpose.msra.mxu0 0.0
        %3104 = vmatpush.xpose.msra.mxu0 0.0
        %3105 = vmatpush.xpose.msra.mxu0 0.0
        %3106 = vmatpush.xpose.msra.mxu0 0.0
        %3107 = vmatpush.xpose.msra.mxu0 0.0
        %3108 = vmatpush.xpose.msra.mxu0 0.0
        %3109 = vmatpush.xpose.msra.mxu0 0.0
        %3110 = vmatpush.xpose.msra.mxu0 0.0
        %3111 = vmatpush.xpose.msra.mxu0 0.0
        %3112 = vmatpush.xpose.msra.mxu0 0.0
        %3113 = vmatpush.xpose.msra.mxu0 0.0
        %3114 = vmatpush.xpose.msra.mxu0 %v3097
        %3115 = vmatmul.f32.gmra.mxu0 %v3094
        %v3116 = vpop.f32.mrf.mxu0
        %v3117 = vadd.f32 0.0, %v3116
        %3118 = vdwg.mxu0
        %v3120 = vsel %vm746, %v3061, 0
        %v3123 = vsel %vm746, %v3065, 0
        %3125 = vmatpush.xpose.msra.mxu0 0.0
        %3126 = vmatpush.xpose.msra.mxu0 0.0
        %3127 = vmatpush.xpose.msra.mxu0 0.0
        %3128 = vmatpush.xpose.msra.mxu0 0.0
        %3129 = vmatpush.xpose.msra.mxu0 0.0
        %3130 = vmatpush.xpose.msra.mxu0 0.0
        %3131 = vmatpush.xpose.msra.mxu0 0.0
        %3132 = vmatpush.xpose.msra.mxu0 0.0
        %3133 = vmatpush.xpose.msra.mxu0 0.0
        %3134 = vmatpush.xpose.msra.mxu0 0.0
        %3135 = vmatpush.xpose.msra.mxu0 0.0
        %3136 = vmatpush.xpose.msra.mxu0 0.0
        %3137 = vmatpush.xpose.msra.mxu0 0.0
        %3138 = vmatpush.xpose.msra.mxu0 0.0
        %3139 = vmatpush.xpose.msra.mxu0 0.0
        %3140 = vmatpush.xpose.msra.mxu0 %v3123
        %3141 = vmatmul.f32.gmra.mxu0 %v3120
        %v3142 = vpop.f32.mrf.mxu0
        %v3143 = vadd.f32 0.0, %v3142
        %3144 = vdwg.mxu0
        %v3146 = vsel %vm746, %v3062, 0
        %v3149 = vsel %vm746, %v3066, 0
        %3151 = vmatpush.xpose.msra.mxu0 0.0
        %3152 = vmatpush.xpose.msra.mxu0 0.0
        %3153 = vmatpush.xpose.msra.mxu0 0.0
        %3154 = vmatpush.xpose.msra.mxu0 0.0
        %3155 = vmatpush.xpose.msra.mxu0 0.0
        %3156 = vmatpush.xpose.msra.mxu0 0.0
        %3157 = vmatpush.xpose.msra.mxu0 0.0
        %3158 = vmatpush.xpose.msra.mxu0 0.0
        %3159 = vmatpush.xpose.msra.mxu0 0.0
        %3160 = vmatpush.xpose.msra.mxu0 0.0
        %3161 = vmatpush.xpose.msra.mxu0 0.0
        %3162 = vmatpush.xpose.msra.mxu0 0.0
        %3163 = vmatpush.xpose.msra.mxu0 0.0
        %3164 = vmatpush.xpose.msra.mxu0 0.0
        %3165 = vmatpush.xpose.msra.mxu0 0.0
        %3166 = vmatpush.xpose.msra.mxu0 %v3149
        %3167 = vmatmul.f32.gmra.mxu0 %v3146
        %v3168 = vpop.f32.mrf.mxu0
        %v3169 = vadd.f32 0.0, %v3168
        %3170 = vdwg.mxu0
        %v3171 = vsel %vm2541, %v3091, -inf
        %3172 = vmax.xlane.f32.xlu0 %v3171
        %v3173 = vpop.xlane.xlu0 %3172
        %v3174 = vsel %vm2541, %v3117, -inf
        %3175 = vmax.xlane.f32.xlu0 %v3174
        %v3176 = vpop.xlane.xlu0 %3175
        %v3177 = vsel %vm2541, %v3143, -inf
        %3178 = vmax.xlane.f32.xlu0 %v3177
        %v3179 = vpop.xlane.xlu0 %3178
        %v3180 = vsel %vm2541, %v3169, -inf
        %3181 = vmax.xlane.f32.xlu0 %v3180
        %v3182 = vpop.xlane.xlu0 %3181
        %v3183 = vsub.f32 %v3091, %v3173
        %v3184 = vsub.f32 %v3117, %v3176
        %v3185 = vsub.f32 %v3143, %v3179
        %v3186 = vsub.f32 %v3169, %v3182
        %v3187 = vmul.f32 %v3183, 1.442695
        %v3188 = vpow.pop %v3187
        %v3189 = vmul.f32 %v3184, 1.442695
        %v3190 = vpow.pop %v3189
        %v3191 = vmul.f32 %v3185, 1.442695
        %v3192 = vpow.pop %v3191
        %v3193 = vmul.f32 %v3186, 1.442695
        %v3194 = vpow.pop %v3193
        %v3195 = vsel %vm2541, %v3188, 0.0
        %3196 = vadd.xlane.f32.xlu0 %v3195
        %v3197 = vpop.xlane.xlu0 %3196
        %v3198 = vsel %vm2541, %v3190, 0.0
        %3199 = vadd.xlane.f32.xlu0 %v3198
        %v3200 = vpop.xlane.xlu0 %3199
        %v3201 = vsel %vm2541, %v3192, 0.0
        %3202 = vadd.xlane.f32.xlu0 %v3201
        %v3203 = vpop.xlane.xlu0 %3202
        %v3204 = vsel %vm2541, %v3194, 0.0
        %3205 = vadd.xlane.f32.xlu0 %v3204
        %v3206 = vpop.xlane.xlu0 %3205
        %v3207 = vrcp.pop %v3197
        %v3208 = vmul.f32 %v3197, %v3207
        %v3209 = vsub.f32 1.0, %v3208
        %v3210 = vmul.f32 %v3207, %v3209
        %v3211 = vadd.f32 %v3207, %v3210
        %vm3212 = vweird.f32 %v3197
        %vm3213 = vweird.f32 %v3207
        %vm3214 = vmor %vm3212, %vm3213
        %v3215 = vsel %vm3214, %v3207, %v3211
        %v3216 = vand.u32 2147483647, %v3197
        %vm3217 = vcmp.eq.f32.partialorder %v3216, 8.507059e+37
        %v3218 = vand.u32 %v3197, 2147483648
        %v3219 = vor.u32 1.1754944e-38, %v3218
        %v3220 = vsel %vm3217, %v3219, %v3215
        %v3221 = vmul.f32 %v3188, %v3220
        %v3222 = vrcp.pop %v3200
        %v3223 = vmul.f32 %v3200, %v3222
        %v3224 = vsub.f32 1.0, %v3223
        %v3225 = vmul.f32 %v3222, %v3224
        %v3226 = vadd.f32 %v3222, %v3225
        %vm3227 = vweird.f32 %v3200
        %vm3228 = vweird.f32 %v3222
        %vm3229 = vmor %vm3227, %vm3228
        %v3230 = vsel %vm3229, %v3222, %v3226
        %v3231 = vand.u32 2147483647, %v3200
        %vm3232 = vcmp.eq.f32.partialorder %v3231, 8.507059e+37
        %v3233 = vand.u32 %v3200, 2147483648
        %v3234 = vor.u32 1.1754944e-38, %v3233
        %v3235 = vsel %vm3232, %v3234, %v3230
        %v3236 = vmul.f32 %v3190, %v3235
        %v3237 = vrcp.pop %v3203
        %v3238 = vmul.f32 %v3203, %v3237
        %v3239 = vsub.f32 1.0, %v3238
        %v3240 = vmul.f32 %v3237, %v3239
        %v3241 = vadd.f32 %v3237, %v3240
        %vm3242 = vweird.f32 %v3203
        %vm3243 = vweird.f32 %v3237
        %vm3244 = vmor %vm3242, %vm3243
        %v3245 = vsel %vm3244, %v3237, %v3241
        %v3246 = vand.u32 2147483647, %v3203
        %vm3247 = vcmp.eq.f32.partialorder %v3246, 8.507059e+37
        %v3248 = vand.u32 %v3203, 2147483648
        %v3249 = vor.u32 1.1754944e-38, %v3248
        %v3250 = vsel %vm3247, %v3249, %v3245
        %v3251 = vmul.f32 %v3192, %v3250
        %v3252 = vrcp.pop %v3206
        %v3253 = vmul.f32 %v3206, %v3252
        %v3254 = vsub.f32 1.0, %v3253
        %v3255 = vmul.f32 %v3252, %v3254
        %v3256 = vadd.f32 %v3252, %v3255
        %vm3257 = vweird.f32 %v3206
        %vm3258 = vweird.f32 %v3252
        %vm3259 = vmor %vm3257, %vm3258
        %v3260 = vsel %vm3259, %v3252, %v3256
        %v3261 = vand.u32 2147483647, %v3206
        %vm3262 = vcmp.eq.f32.partialorder %v3261, 8.507059e+37
        %v3263 = vand.u32 %v3206, 2147483648
        %v3264 = vor.u32 1.1754944e-38, %v3263
        %v3265 = vsel %vm3262, %v3264, %v3260
        %v3266 = vmul.f32 %v3194, %v3265
        %v3267 = vld [vmem:[#allocation4] sm:$0xff]
        %v3268 = vld [vmem:[#allocation4 + $0x8] sm:$0xff]
        %v3269 = vld [vmem:[#allocation4 + $0x10] sm:$0xff]
        %v3270 = vld [vmem:[#allocation4 + $0x18] sm:$0xff]
        %v3272 = vsel %vm2541, %v3221, 0
        %3274 = vmatpush.msra.mxu0 0.0
        %3275 = vmatpush.msra.mxu0 0.0
        %3276 = vmatpush.msra.mxu0 0.0
        %3277 = vmatpush.msra.mxu0 0.0
        %3278 = vmatpush.msra.mxu0 0.0
        %3279 = vmatpush.msra.mxu0 0.0
        %3280 = vmatpush.msra.mxu0 0.0
        %3281 = vmatpush.msra.mxu0 0.0
        %3282 = vmatpush.msra.mxu0 0.0
        %3283 = vmatpush.msra.mxu0 0.0
        %3284 = vmatpush.msra.mxu0 0.0
        %3285 = vmatpush.msra.mxu0 0.0
        %3286 = vmatpush.msra.mxu0 0.0
        %3287 = vmatpush.msra.mxu0 0.0
        %3288 = vmatpush.msra.mxu0 0.0
        %3289 = vmatpush.msra.mxu0 %v3267
        %3290 = vmatmul.f32.gmra.mxu0 %v3272
        %v3291 = vpop.f32.mrf.mxu0
        %v3292 = vadd.f32 0.0, %v3291
        %3293 = vdwg.mxu0
        %v3295 = vsel %vm2541, %v3236, 0
        %3297 = vmatpush.msra.mxu0 0.0
        %3298 = vmatpush.msra.mxu0 0.0
        %3299 = vmatpush.msra.mxu0 0.0
        %3300 = vmatpush.msra.mxu0 0.0
        %3301 = vmatpush.msra.mxu0 0.0
        %3302 = vmatpush.msra.mxu0 0.0
        %3303 = vmatpush.msra.mxu0 0.0
        %3304 = vmatpush.msra.mxu0 0.0
        %3305 = vmatpush.msra.mxu0 0.0
        %3306 = vmatpush.msra.mxu0 0.0
        %3307 = vmatpush.msra.mxu0 0.0
        %3308 = vmatpush.msra.mxu0 0.0
        %3309 = vmatpush.msra.mxu0 0.0
        %3310 = vmatpush.msra.mxu0 0.0
        %3311 = vmatpush.msra.mxu0 0.0
        %3312 = vmatpush.msra.mxu0 %v3268
        %3313 = vmatmul.f32.gmra.mxu0 %v3295
        %v3314 = vpop.f32.mrf.mxu0
        %v3315 = vadd.f32 0.0, %v3314
        %3316 = vdwg.mxu0
        %v3318 = vsel %vm2541, %v3251, 0
        %3320 = vmatpush.msra.mxu0 0.0
        %3321 = vmatpush.msra.mxu0 0.0
        %3322 = vmatpush.msra.mxu0 0.0
        %3323 = vmatpush.msra.mxu0 0.0
        %3324 = vmatpush.msra.mxu0 0.0
        %3325 = vmatpush.msra.mxu0 0.0
        %3326 = vmatpush.msra.mxu0 0.0
        %3327 = vmatpush.msra.mxu0 0.0
        %3328 = vmatpush.msra.mxu0 0.0
        %3329 = vmatpush.msra.mxu0 0.0
        %3330 = vmatpush.msra.mxu0 0.0
        %3331 = vmatpush.msra.mxu0 0.0
        %3332 = vmatpush.msra.mxu0 0.0
        %3333 = vmatpush.msra.mxu0 0.0
        %3334 = vmatpush.msra.mxu0 0.0
        %3335 = vmatpush.msra.mxu0 %v3269
        %3336 = vmatmul.f32.gmra.mxu0 %v3318
        %v3337 = vpop.f32.mrf.mxu0
        %v3338 = vadd.f32 0.0, %v3337
        %3339 = vdwg.mxu0
        %v3341 = vsel %vm2541, %v3266, 0
        %3343 = vmatpush.msra.mxu0 0.0
        %3344 = vmatpush.msra.mxu0 0.0
        %3345 = vmatpush.msra.mxu0 0.0
        %3346 = vmatpush.msra.mxu0 0.0
        %3347 = vmatpush.msra.mxu0 0.0
        %3348 = vmatpush.msra.mxu0 0.0
        %3349 = vmatpush.msra.mxu0 0.0
        %3350 = vmatpush.msra.mxu0 0.0
        %3351 = vmatpush.msra.mxu0 0.0
        %3352 = vmatpush.msra.mxu0 0.0
        %3353 = vmatpush.msra.mxu0 0.0
        %3354 = vmatpush.msra.mxu0 0.0
        %3355 = vmatpush.msra.mxu0 0.0
        %3356 = vmatpush.msra.mxu0 0.0
        %3357 = vmatpush.msra.mxu0 0.0
        %3358 = vmatpush.msra.mxu0 %v3270
        %3359 = vmatmul.f32.gmra.mxu0 %v3341
        %v3360 = vpop.f32.mrf.mxu0
        %v3361 = vadd.f32 0.0, %v3360
        %3362 = vdwg.mxu0
        %3363 = vst.msk [vmem:[#allocation5] sm:$0xff] %vm746, %v3292
        %3365 = vrot.lane.b32.xlu0 %v3315, 16
        %v3366 = vpop.permute.xlu0 %3365
        %3368 = vst.msk [vmem:[#allocation5] sm:$0xff] %vm2739, %v3366
        %3370 = vrot.lane.b32.xlu0 %v3338, 32
        %v3371 = vpop.permute.xlu0 %3370
        %3373 = vst.msk [vmem:[#allocation5] sm:$0xff] %vm2745, %v3371
        %3375 = vrot.lane.b32.xlu0 %v3361, 48
        %v3376 = vpop.permute.xlu0 %3375
        %3378 = vst.msk [vmem:[#allocation5] sm:$0xff] %vm2751, %v3376
        %v3379 = vld [vmem:[#allocation5] sm:$0xff]
        %s3380 = scalar_lea.vmem %s8, 64
        %v3381 = vld [vmem:[%s3380] sm:$0xff]
        %v3382 = vld [vmem:[%s3380 + $0x8] sm:$0xff]
        %v3383 = vld [vmem:[%s3380 + $0x10] sm:$0xff]
        %v3384 = vld [vmem:[%s3380 + $0x18] sm:$0xff]
        %v3385 = vld [vmem:[%s3380 + $0x20] sm:$0xff]
        %v3386 = vld [vmem:[%s3380 + $0x28] sm:$0xff]
        %v3387 = vld [vmem:[%s3380 + $0x30] sm:$0xff]
        %v3388 = vld [vmem:[%s3380 + $0x38] sm:$0xff]
        %s3389 = scalar_lea.vmem %s9, 1
        %v3390 = vld [vmem:[%s3389] sm:$0x1]
        %v3392 = vperm.slane %v3390, 0
        %v3395 = vsel %vm626, %v3379, 0
        %3397 = vmatpush.msra.mxu0 0.0
        %3398 = vmatpush.msra.mxu0 0.0
        %3399 = vmatpush.msra.mxu0 0.0
        %3400 = vmatpush.msra.mxu0 0.0
        %3401 = vmatpush.msra.mxu0 0.0
        %3402 = vmatpush.msra.mxu0 0.0
        %3403 = vmatpush.msra.mxu0 0.0
        %3404 = vmatpush.msra.mxu0 0.0
        %3405 = vmatpush.msra.mxu0 %v3388
        %3406 = vmatpush.msra.mxu0 %v3387
        %3407 = vmatpush.msra.mxu0 %v3386
        %3408 = vmatpush.msra.mxu0 %v3385
        %3409 = vmatpush.msra.mxu0 %v3384
        %3410 = vmatpush.msra.mxu0 %v3383
        %3411 = vmatpush.msra.mxu0 %v3382
        %3412 = vmatpush.msra.mxu0 %v3381
        %3413 = vmatmul.f32.gmra.mxu0 %v3395
        %v3414 = vpop.f32.mrf.mxu0
        %v3415 = vadd.f32 %v3392, %v3414
        %3416 = vdwg.mxu0
        %v3417 = vadd.f32 %v2945, %v3415
        %s3418 = scalar_lea.vmem %s10, 1
        %v3419 = vld [vmem:[%s3418] sm:$0x1]
        %s3420 = scalar_lea.vmem %s11, 1
        %v3421 = vld [vmem:[%s3420] sm:$0x1]
        %v3422 = vsel %vm626, %v3417, 0.0
        %3423 = vadd.xlane.f32.xlu0 %v3422
        %v3424 = vpop.xlane.xlu0 %3423
        %v3425 = vmul.f32 %v3424, %v2801
        %v3426 = vsub.f32 %v3417, %v3425
        %v3427 = vmul.f32 %v3426, %v3426
        %v3428 = vsel %vm626, %v3427, 0.0
        %3429 = vadd.xlane.f32.xlu0 %v3428
        %v3430 = vpop.xlane.xlu0 %3429
        %v3431 = vmul.f32 %v3430, %v2801
        %v3432 = vadd.f32 %v3431, 1e-05
        %v3433 = vrsqrt.pop %v3432
        %v3434 = vmul.f32 %v3433, %v3432
        %v3435 = vmul.f32 %v3434, %v3433
        %v3436 = vmul.f32 0.5, %v3435
        %v3437 = vsub.f32 1.5, %v3436
        %v3438 = vmul.f32 %v3433, %v3437
        %vm3439 = vweird.f32 %v3432
        %vm3440 = vweird.f32 %v3433
        %vm3441 = vmor %vm3439, %vm3440
        %v3442 = vsel %vm3441, %v3433, %v3438
        %v3443 = vmul.f32 %v3426, %v3442
        %v3445 = vperm.slane %v3419, 0
        %v3447 = vmul.f32 %v3443, %v3445
        %v3449 = vperm.slane %v3421, 0
        %v3451 = vadd.f32 %v3447, %v3449
        %s3452 = scalar_lea.vmem %s12, 64
        %v3453 = vld [vmem:[%s3452] sm:$0xff]
        %v3454 = vld [vmem:[%s3452 + $0x8] sm:$0xff]
        %v3455 = vld [vmem:[%s3452 + $0x10] sm:$0xff]
        %v3456 = vld [vmem:[%s3452 + $0x18] sm:$0xff]
        %v3457 = vld [vmem:[%s3452 + $0x20] sm:$0xff]
        %v3458 = vld [vmem:[%s3452 + $0x28] sm:$0xff]
        %v3459 = vld [vmem:[%s3452 + $0x30] sm:$0xff]
        %v3460 = vld [vmem:[%s3452 + $0x38] sm:$0xff]
        %s3461 = scalar_lea.vmem %s13, 1
        %v3462 = vld [vmem:[%s3461] sm:$0x1]
        %v3464 = vperm.slane %v3462, 0
        %v3467 = vsel %vm626, %v3451, 0
        %3469 = vmatpush.msra.mxu0 0.0
        %3470 = vmatpush.msra.mxu0 0.0
        %3471 = vmatpush.msra.mxu0 0.0
        %3472 = vmatpush.msra.mxu0 0.0
        %3473 = vmatpush.msra.mxu0 0.0
        %3474 = vmatpush.msra.mxu0 0.0
        %3475 = vmatpush.msra.mxu0 0.0
        %3476 = vmatpush.msra.mxu0 0.0
        %3477 = vmatpush.msra.mxu0 %v3460
        %3478 = vmatpush.msra.mxu0 %v3459
        %3479 = vmatpush.msra.mxu0 %v3458
        %3480 = vmatpush.msra.mxu0 %v3457
        %3481 = vmatpush.msra.mxu0 %v3456
        %3482 = vmatpush.msra.mxu0 %v3455
        %3483 = vmatpush.msra.mxu0 %v3454
        %3484 = vmatpush.msra.mxu0 %v3453
        %3485 = vmatmul.f32.gmra.mxu0 %v3467
        %v3486 = vpop.f32.mrf.mxu0
        %v3487 = vadd.f32 %v3464, %v3486
        %3488 = vdwg.mxu0
        %v3489 = vmul.f32 %v3487, %v3487
        %v3490 = vmul.f32 %v3487, %v3489
        %v3491 = vmul.f32 %v3490, 0.044715
        %v3492 = vadd.f32 %v3487, %v3491
        %v3493 = vmul.f32 %v3492, 0.7978846
        %v3494 = vtanh.pop %v3493
        %v3495 = vadd.f32 %v3494, 1.0
        %v3496 = vmul.f32 %v3495, 0.5
        %v3497 = vmul.f32 %v3487, %v3496
        %s3498 = scalar_lea.vmem %s14, 128
        %v3499 = vld [vmem:[%s3498] sm:$0xff]
        %v3500 = vld [vmem:[%s3498 + $0x8] sm:$0xff]
        %v3501 = vld [vmem:[%s3498 + $0x10] sm:$0xff]
        %v3502 = vld [vmem:[%s3498 + $0x18] sm:$0xff]
        %v3503 = vld [vmem:[%s3498 + $0x20] sm:$0xff]
        %v3504 = vld [vmem:[%s3498 + $0x28] sm:$0xff]
        %v3505 = vld [vmem:[%s3498 + $0x30] sm:$0xff]
        %v3506 = vld [vmem:[%s3498 + $0x38] sm:$0xff]
        %v3507 = vld [vmem:[%s3498 + $0x40] sm:$0xff]
        %v3508 = vld [vmem:[%s3498 + $0x48] sm:$0xff]
        %v3509 = vld [vmem:[%s3498 + $0x50] sm:$0xff]
        %v3510 = vld [vmem:[%s3498 + $0x58] sm:$0xff]
        %v3511 = vld [vmem:[%s3498 + $0x60] sm:$0xff]
        %v3512 = vld [vmem:[%s3498 + $0x68] sm:$0xff]
        %v3513 = vld [vmem:[%s3498 + $0x70] sm:$0xff]
        %v3514 = vld [vmem:[%s3498 + $0x78] sm:$0xff]
        %s3515 = scalar_lea.vmem %s15, 1
        %v3516 = vld [vmem:[%s3515] sm:$0x1]
        %v3518 = vperm.slane %v3516, 0
        %3520 = vmatpush.msra.mxu0 %v3514
        %3521 = vmatpush.msra.mxu0 %v3513
        %3522 = vmatpush.msra.mxu0 %v3512
        %3523 = vmatpush.msra.mxu0 %v3511
        %3524 = vmatpush.msra.mxu0 %v3510
        %3525 = vmatpush.msra.mxu0 %v3509
        %3526 = vmatpush.msra.mxu0 %v3508
        %3527 = vmatpush.msra.mxu0 %v3507
        %3528 = vmatpush.msra.mxu0 %v3506
        %3529 = vmatpush.msra.mxu0 %v3505
        %3530 = vmatpush.msra.mxu0 %v3504
        %3531 = vmatpush.msra.mxu0 %v3503
        %3532 = vmatpush.msra.mxu0 %v3502
        %3533 = vmatpush.msra.mxu0 %v3501
        %3534 = vmatpush.msra.mxu0 %v3500
        %3535 = vmatpush.msra.mxu0 %v3499
        %3536 = vmatmul.f32.gmra.mxu0 %v3497
        %v3537 = vpop.f32.mrf.mxu0
        %v3538 = vadd.f32 %v3518, %v3537
        %3539 = vdwg.mxu0
        %v3540 = vadd.f32 %v3451, %v3538
        %s3541 = scalar_lea.vmem %s16, 1
        %v3542 = vld [vmem:[%s3541] sm:$0x1]
        %s3543 = scalar_lea.vmem %s17, 1
        %v3544 = vld [vmem:[%s3543] sm:$0x1]
        %v3545 = vsel %vm626, %v3540, 0.0
        %3546 = vadd.xlane.f32.xlu0 %v3545
        %v3547 = vpop.xlane.xlu0 %3546
        %v3548 = vmul.f32 %v3547, %v2801
        %v3549 = vsub.f32 %v3540, %v3548
        %v3550 = vmul.f32 %v3549, %v3549
        %v3551 = vsel %vm626, %v3550, 0.0
        %3552 = vadd.xlane.f32.xlu0 %v3551
        %v3553 = vpop.xlane.xlu0 %3552
        %v3554 = vmul.f32 %v3553, %v2801
        %v3555 = vadd.f32 %v3554, 1e-05
        %v3556 = vrsqrt.pop %v3555
        %v3557 = vmul.f32 %v3556, %v3555
        %v3558 = vmul.f32 %v3557, %v3556
        %v3559 = vmul.f32 0.5, %v3558
        %v3560 = vsub.f32 1.5, %v3559
        %v3561 = vmul.f32 %v3556, %v3560
        %vm3562 = vweird.f32 %v3555
        %vm3563 = vweird.f32 %v3556
        %vm3564 = vmor %vm3562, %vm3563
        %v3565 = vsel %vm3564, %v3556, %v3561
        %v3566 = vmul.f32 %v3549, %v3565
        %v3568 = vperm.slane %v3542, 0
        %v3570 = vmul.f32 %v3566, %v3568
        %v3572 = vperm.slane %v3544, 0
        %v3574 = vadd.f32 %v3570, %v3572
        %3575 = vst.msk [vmem:[%s568] sm:$0xff] %vm626, %v3574
        %s3576 = sand.u32 %s423, 1
        %s3577 = scalar_lea.sflag [#allocation7], %s3576
        %s3578 = sand.u32 %s423, 1
        %s3579 = smul.addr %s3578, 8
        %s3580 = scalar_lea.vmem [#allocation6], %s3579
        // Predicated region
        $region93: #{_lambda_.1} parent=91 // pred_check
          %p3581 = pneg %p433
        $region94: #{_lambda_.1} parent=91 // pred_check_branch
          %3583 = sbr.rel (%p3581) target = $region96
        $region95: #{_lambda_.1} parent=91 // pred_region
          %3585 = vsyncadd %s3577, 0
          %s3586 = smul.addr %s32, 8
          %s3587 = scalar_lea.hbm %s18, %s3586
          %s3589 = sshll.u32 %s3580, 4
          %s3590 = int_to_ptr.vmem [resolvable:$true] %s3589
          %s3591 = sshll.u32 %s3587, 4
          %s3592 = int_to_ptr.hbm [resolvable:$true] %s3591
          %3594 = dma.vmem_to_hbm [thread:$0]  %s3590, 128, %s3592, %s3577
        $region96: #{_lambda_.1} parent=91 // pred_fallthru
          _
      $region92: #{_lambda_.1} parent=5 // pred_fallthru
        _
      %p3595 = scmp.le.s32.totalorder 2, %s27
      // Predicated region
      $region97: #{_lambda_.1} parent=5 // pred_check
        %p3596 = pneg %p3595
      $region98: #{_lambda_.1} parent=5 // pred_check_branch
        %3598 = sbr.rel (%p3596) target = $region100
      $region99: #{_lambda_.1} parent=5 // pred_region
        %s3599 = ssub.s32 %s27, 2
        // Predicated region
        $region101: #{_lambda_.1} parent=99 // pred_check
          %p3600 = pneg %p439
        $region102: #{_lambda_.1} parent=99 // pred_check_branch
          %3602 = sbr.rel (%p3600) target = $region104
        $region103: #{_lambda_.1} parent=99 // pred_region
          %s3603 = sand.u32 %s424, 1
          %s3604 = scalar_lea.sflag [#allocation7], %s3603
          %s3605 = sand.u32 %s424, 1
          %s3606 = smul.addr %s3605, 8
          %s3607 = scalar_lea.vmem [#allocation6], %s3606
          %3609 = dma.done %s3604, 128
        $region104: #{_lambda_.1} parent=99 // pred_fallthru
          _
      $region100: #{_lambda_.1} parent=5 // pred_fallthru
        _
    $region6: #{_lambda_.1} parent=1 // loop_footer
      %s31 = sadd.s32 1, %s27
    $region7: #{_lambda_.1} parent=1 // loop_footer_branch
      %26 = sbr.rel target = $region3
    $region8: #{_lambda_.1} parent=1 // loop_exit
      _
    %3610 = vsyncpa [#allocation7], 1
    %s3611 = scalar_lea.sflag [#allocation7], 1
    %3612 = vsyncpa %s3611, 1

</llo_original>
